<compile_context>
chip_gen: v7x
topology: tpu7x:2x2x1
jax: 0.10.0
libtpu: 0.0.40
codegen_flags: <defaults>
</compile_context>

<pallas_src>
import numpy as np
import jax
import jax.numpy as jnp
from jax.experimental import pallas as pl
from jax.experimental.pallas import tpu as pltpu

MXU_DTYPE = jnp.bfloat16          # matmul input dtype; accumulation is f32
_SHIFTS = (0, 1, 5, 6)            # row offsets for the 4 block taps (dy*5 + dx)


# ----------------------------------------------------------------------------
# Pallas kernels
# ----------------------------------------------------------------------------
def _conv_stack_kernel(x_ref, w1_ref, b1_ref, w2_ref, b2_ref, o_ref):
    """conv1+ReLU+pool+conv2+ReLU+pool for ONE sample.

    The image arrives space-to-depth(8): XS[R, C] with R = HB*5 + WB
    (block row/col, block 4 is a zero halo) and C = hb*24 + wb*3 + cin
    (within-block row/col, input channel).  Writing a pooled conv1 output
    position as (ph, pw) = (4A+e, 4B+f), every pixel its 5x5 conv + 2x2
    max-pool window needs lives in block (A+dy, B+dx), dy,dx in {0,1}.  So
    conv1 (all 4 pool quadrants at once) is 4 matmuls of row-shifted slices
    XS[r + dy*5 + dx, :] against pre-scattered weights whose 512 columns are
    [pool quadrant (4) x 128] x [e, f, out-channel]; the 2x2 max-pool is an
    elementwise max over the 4 column groups (bias/ReLU commute with it).
    conv2 repeats the identical pattern on conv1's output, whose rows/columns
    were produced directly in the layout conv2 expects.  All weight
    scattering is done once at pack time (pack_params).
    """
    xs = x_ref[0]                                             # (25, 192) f32

    # ---- conv1 + bias + ReLU + 2x2/2 max-pool -> h1 (19, 128) --------------
    acc1 = jnp.zeros((19, 512), jnp.float32)
    for t, sh in enumerate(_SHIFTS):
        acc1 += jnp.dot(xs[sh:sh + 19, :].astype(MXU_DTYPE), w1_ref[t],
                        preferred_element_type=jnp.float32)
    h1 = jnp.maximum(jnp.maximum(acc1[:, 0:128], acc1[:, 128:256]),
                     jnp.maximum(acc1[:, 256:384], acc1[:, 384:512]))
    h1 = jnp.maximum(h1 + b1_ref[...], 0.0)                   # (19, 128) f32

    # ---- conv2 + bias + ReLU + 2x2/2 max-pool -> h2 (13, 128) --------------
    acc2 = jnp.zeros((13, 512), jnp.float32)
    for t, sh in enumerate(_SHIFTS):
        acc2 += jnp.dot(h1[sh:sh + 13, :].astype(MXU_DTYPE), w2_ref[t],
                        preferred_element_type=jnp.float32)
    h2 = jnp.maximum(jnp.maximum(acc2[:, 0:128], acc2[:, 128:256]),
                     jnp.maximum(acc2[:, 256:384], acc2[:, 384:512]))
    h2 = jnp.maximum(h2 + b2_ref[...], 0.0)                   # (13, 128) f32

    o_ref[0] = h2.astype(o_ref.dtype)


def _fc_stack_kernel(x_ref, w1_ref, b1_ref, w2_ref, b2_ref, w3_ref, b3_ref,
                     o_ref):
    """fc1 -> ReLU -> fc2 -> ReLU -> fc3; all weights resident in VMEM."""
    h = jnp.dot(x_ref[0], w1_ref[...], preferred_element_type=jnp.float32)
    h = jnp.maximum(h + b1_ref[...], 0.0)
    h = jnp.dot(h.astype(MXU_DTYPE), w2_ref[...],
                preferred_element_type=jnp.float32)
    h = jnp.maximum(h + b2_ref[...], 0.0)
    h = jnp.dot(h.astype(MXU_DTYPE), w3_ref[...],
                preferred_element_type=jnp.float32)
    o_ref[0] = (h + b3_ref[...]).astype(o_ref.dtype)


# ----------------------------------------------------------------------------
# Pallas wrappers
# ----------------------------------------------------------------------------
def conv_stack(xs, packed):
    """xs: (B, 25, 192) space-to-depth images -> (B, 13, 128) features."""
    B = xs.shape[0]
    return pl.pallas_call(
        _conv_stack_kernel,
        out_shape=jax.ShapeDtypeStruct((B, 13, 128), MXU_DTYPE),
        grid=(B,),
        in_specs=[
            pl.BlockSpec((1, 25, 192), lambda b: (b, 0, 0)),
            pl.BlockSpec((4, 192, 512), lambda b: (0, 0, 0)),
            pl.BlockSpec((1, 128), lambda b: (0, 0)),
            pl.BlockSpec((4, 128, 512), lambda b: (0, 0, 0)),
            pl.BlockSpec((1, 128), lambda b: (0, 0)),
        ],
        out_specs=pl.BlockSpec((1, 13, 128), lambda b: (b, 0, 0)),
        compiler_params=pltpu.CompilerParams(
            dimension_semantics=("parallel",)),
    )(xs, packed["w1"], packed["b1"], packed["w2"], packed["b2"])


def fc_stack(feats, packed):
    """feats: (B, 13, 128) -> logits (B, 10)."""
    B = feats.shape[0]
    tb = 8 if B % 8 == 0 else 1          # >=2 grid blocks at tiny batch (v7x)
    g = B // tb
    x = feats.reshape(g, tb, 13 * 128)
    out = pl.pallas_call(
        _fc_stack_kernel,
        out_shape=jax.ShapeDtypeStruct((g, tb, 128), jnp.float32),
        grid=(g,),
        in_specs=[
            pl.BlockSpec((1, tb, 13 * 128), lambda i: (i, 0, 0)),
            pl.BlockSpec((13 * 128, 128), lambda i: (0, 0)),
            pl.BlockSpec((1, 128), lambda i: (0, 0)),
            pl.BlockSpec((128, 128), lambda i: (0, 0)),
            pl.BlockSpec((1, 128), lambda i: (0, 0)),
            pl.BlockSpec((128, 128), lambda i: (0, 0)),
            pl.BlockSpec((1, 128), lambda i: (0, 0)),
        ],
        out_specs=pl.BlockSpec((1, tb, 128), lambda i: (i, 0, 0)),
        compiler_params=pltpu.CompilerParams(
            dimension_semantics=("parallel",)),
    )(x, packed["wf1"], packed["bf1"], packed["wf2"], packed["bf2"],
      packed["wf3"], packed["bf3"])
    return out.reshape(B, 128)[:, :10]


def prep_inputs(x_nchw):
    """(B, 3, 32, 32) NCHW -> (B, 25, 192) space-to-depth(8) + zero halo.

    Row = HB*5 + WB (block 4 = zeros), Col = hb*24 + wb*3 + c.  A handful of
    tiny XLA ops on the raw 24 KB input - no im2col, no lane padding.
    """
    B = x_nchw.shape[0]
    x = jnp.transpose(x_nchw, (0, 2, 3, 1))                   # (B, 32, 32, 3)
    x = x.reshape(B, 4, 8, 4, 8, 3)
    x = jnp.transpose(x, (0, 1, 3, 2, 4, 5))                  # (B,HB,WB,hb,wb,c)
    x = x.reshape(B, 4, 4, 192)
    x = jnp.pad(x, ((0, 0), (0, 1), (0, 1), (0, 0)))          # halo blocks = 0
    return x.reshape(B, 25, 192)


@jax.jit
def forward(packed, x_nchw):
    xs = prep_inputs(x_nchw)
    feats = conv_stack(xs, packed)
    return fc_stack(feats, packed)


# ----------------------------------------------------------------------------
# Parameter init / one-time weight repack
# ----------------------------------------------------------------------------
def init_params(key):
    """Deterministic init mirroring PyTorch defaults (U(+-1/sqrt(fan_in)))."""
    ks = jax.random.split(key, 10)

    def u(k, shape, fan_in):
        bound = 1.0 / np.sqrt(float(fan_in))
        return jax.random.uniform(k, shape, jnp.float32, -bound, bound)

    return {
        "conv1_w": u(ks[0], (6, 3, 5, 5), 3 * 25),
        "conv1_b": u(ks[1], (6,), 3 * 25),
        "conv2_w": u(ks[2], (16, 6, 5, 5), 6 * 25),
        "conv2_b": u(ks[3], (16,), 6 * 25),
        "fc1_w": u(ks[4], (120, 400), 400),   # PyTorch Linear: (out, in)
        "fc1_b": u(ks[5], (120,), 400),
        "fc2_w": u(ks[6], (84, 120), 120),
        "fc2_b": u(ks[7], (84,), 120),
        "fc3_w": u(ks[8], (10, 84), 84),
        "fc3_b": u(ks[9], (10,), 84),
    }


def pack_params(params):
    """Host-side, one-time scatter of torch-layout weights into the matrices
    the two kernels consume (bf16 for MXU inputs, f32 biases)."""
    c1w = np.asarray(params["conv1_w"], np.float32)
    c1b = np.asarray(params["conv1_b"], np.float32)
    c2w = np.asarray(params["conv2_w"], np.float32)
    c2b = np.asarray(params["conv2_b"], np.float32)
    f1w = np.asarray(params["fc1_w"], np.float32)
    f1b = np.asarray(params["fc1_b"], np.float32)
    f2w = np.asarray(params["fc2_w"], np.float32)
    f2b = np.asarray(params["fc2_b"], np.float32)
    f3w = np.asarray(params["fc3_w"], np.float32)
    f3b = np.asarray(params["fc3_b"], np.float32)

    # conv1: pooled output (ph, pw) = (4A+e, 4B+f); pool quadrant (dh, dw);
    # conv tap (i, j).  Input row 8A + (2e+dh+i) lives in s2d block
    # A + (2e+dh+i)//8, within-block row (2e+dh+i)%8 (same for columns).
    w1 = np.zeros((4, 192, 512), np.float32)
    for dh in range(2):
        for dw in range(2):
            quad = dh * 2 + dw
            for e in range(4):
                for f in range(4):
                    for i in range(5):
                        for j in range(5):
                            ty, hb = divmod(2 * e + dh + i, 8)
                            tx, wb = divmod(2 * f + dw + j, 8)
                            t = ty * 2 + tx
                            k0 = hb * 24 + wb * 3
                            n0 = quad * 128 + e * 24 + f * 6
                            w1[t, k0:k0 + 3, n0:n0 + 6] = c1w[:, :, i, j].T
    b1 = np.zeros((1, 128), np.float32)
    for e in range(4):
        for f in range(4):
            b1[0, e * 24 + f * 6:e * 24 + f * 6 + 6] = c1b

    # conv2: pooled output (ph2, pw2) = (2P+a, 2Q+b); conv1-output row
    # 2*ph2+dh+i = 4P + (2a+dh+i) -> h1 row-block P + (..)//4, parity (..)%4,
    # which is exactly how conv1's output columns were packed above.
    w2 = np.zeros((4, 128, 512), np.float32)
    for dh in range(2):
        for dw in range(2):
            quad = dh * 2 + dw
            for a in range(2):
                for b in range(2):
                    pc = a * 2 + b
                    for i in range(5):
                        for j in range(5):
                            ty, e = divmod(2 * a + dh + i, 4)
                            tx, f = divmod(2 * b + dw + j, 4)
                            t = ty * 2 + tx
                            k0 = e * 24 + f * 6
                            n0 = quad * 128 + pc * 16
                            w2[t, k0:k0 + 6, n0:n0 + 16] = c2w[:, :, i, j].T
    b2 = np.zeros((1, 128), np.float32)
    for pc in range(4):
        b2[0, pc * 16:pc * 16 + 16] = c2b

    # fc1: rows follow the flattened (13, 128) conv-stack output.  Only the
    # 400 slots holding real conv2 activations receive (permuted) torch fc1
    # weights; garbage slots keep zero weight and never contribute.
    wf1 = np.zeros((13 * 128, 128), np.float32)
    for ph in range(5):
        for pw in range(5):
            P, a = divmod(ph, 2)
            Q, b = divmod(pw, 2)
            row = P * 5 + Q
            for oc in range(16):
                m = row * 128 + (a * 2 + b) * 16 + oc
                wf1[m, :120] = f1w[:, oc * 25 + ph * 5 + pw]
    bf1 = np.zeros((1, 128), np.float32)
    bf1[0, :120] = f1b
    wf2 = np.zeros((128, 128), np.float32)
    wf2[:120, :84] = f2w.T
    bf2 = np.zeros((1, 128), np.float32)
    bf2[0, :84] = f2b
    wf3 = np.zeros((128, 128), np.float32)
    wf3[:84, :10] = f3w.T
    bf3 = np.zeros((1, 128), np.float32)
    bf3[0, :10] = f3b

    as_mxu = lambda arr: jnp.asarray(arr, MXU_DTYPE)
    as_f32 = lambda arr: jnp.asarray(arr, jnp.float32)
    return {"w1": as_mxu(w1), "b1": as_f32(b1),
            "w2": as_mxu(w2), "b2": as_f32(b2),
            "wf1": as_mxu(wf1), "bf1": as_f32(bf1),
            "wf2": as_mxu(wf2), "bf2": as_f32(bf2),
            "wf3": as_mxu(wf3), "bf3": as_f32(bf3)}


# ----------------------------------------------------------------------------
# Pure-JAX reference (for the correctness assert only)
# ----------------------------------------------------------------------------
@jax.jit
def ref_forward(params, x):
    dn = ("NCHW", "OIHW", "NCHW")
    y = jax.lax.conv_general_dilated(x, params["conv1_w"], (1, 1), "VALID",
                                     dimension_numbers=dn)
    y = jnp.maximum(y + params["conv1_b"][None, :, None, None], 0.0)
    y = jax.lax.reduce_window(y, -jnp.inf, jax.lax.max,
                              (1, 1, 2, 2), (1, 1, 2, 2), "VALID")
    y = jax.lax.conv_general_dilated(y, params["conv2_w"], (1, 1), "VALID",
                                     dimension_numbers=dn)
    y = jnp.maximum(y + params["conv2_b"][None, :, None, None], 0.0)
    y = jax.lax.reduce_window(y, -jnp.inf, jax.lax.max,
                              (1, 1, 2, 2), (1, 1, 2, 2), "VALID")
    y = y.reshape(y.shape[0], 400)                       # NCHW flatten (torch)
    y = jnp.maximum(y @ params["fc1_w"].T + params["fc1_b"], 0.0)
    y = jnp.maximum(y @ params["fc2_w"].T + params["fc2_b"], 0.0)
    return y @ params["fc3_w"].T + params["fc3_b"]


if __name__ == "__main__":
    key = jax.random.PRNGKey(0)
    pkey, xkey = jax.random.split(key)
    params = init_params(pkey)
    packed = pack_params(params)                          # one-time repack
    # 32x32 input is required by the module's flatten to 16*5*5.
    x = jax.random.normal(xkey, (2, 3, 32, 32), jnp.float32)

    out = forward(packed, x)
    jax.block_until_ready(out)
    assert out.shape == (2, 10) and out.dtype == jnp.float32

    ref = ref_forward(params, x)
    err = float(jnp.max(jnp.abs(out - ref)))
    assert err < 5e-2, f"kernel/reference mismatch: max abs err = {err}"
    print("KERNEL_OK")
</pallas_src>

<mosaic_0001>
module attributes {stable_mosaic.version = 11 : i64} {
  func.func @_conv_stack_kernel(%arg0: i32, %arg1: memref<1x25x192xf32, #tpu.memory_space<vmem>>, %arg2: memref<4x192x512xbf16, #tpu.memory_space<vmem>>, %arg3: memref<1x128xf32, #tpu.memory_space<vmem>>, %arg4: memref<4x128x512xbf16, #tpu.memory_space<vmem>>, %arg5: memref<1x128xf32, #tpu.memory_space<vmem>>, %arg6: memref<1x13x128xbf16, #tpu.memory_space<vmem>>) attributes {dimension_semantics = [#tpu.dimension_semantics<parallel>], iteration_bounds = array<i64: 2>, scalar_prefetch = 0 : i64, scratch_operands = 0 : i64, tpu.core_type = #tpu.core_type<tc>, window_params = [{transform_indices = @transform_0, window_bounds = array<i64: 1, 25, 192>}, {pipeline_mode = #tpu.pipeline_mode<synchronous>, transform_indices = @transform_1, window_bounds = array<i64: 4, 192, 512>}, {pipeline_mode = #tpu.pipeline_mode<synchronous>, transform_indices = @transform_2, window_bounds = array<i64: 1, 128>}, {pipeline_mode = #tpu.pipeline_mode<synchronous>, transform_indices = @transform_3, window_bounds = array<i64: 4, 128, 512>}, {pipeline_mode = #tpu.pipeline_mode<synchronous>, transform_indices = @transform_4, window_bounds = array<i64: 1, 128>}, {transform_indices = @transform_5, window_bounds = array<i64: 1, 13, 128>}]} {
    %c0 = arith.constant 0 : index
    %c0_0 = arith.constant 0 : index
    %c0_1 = arith.constant 0 : index
    %0 = vector.load %arg1[%c0, %c0_0, %c0_1] : memref<1x25x192xf32, #tpu.memory_space<vmem>>, vector<1x25x192xf32>
    %1 = vector.shape_cast %0 : vector<1x25x192xf32> to vector<25x192xf32>
    %cst = arith.constant 0.000000e+00 : f32
    %2 = vector.broadcast %cst : f32 to vector<19x512xf32>
    %3 = vector.extract_strided_slice %1 {offsets = [0, 0], sizes = [19, 192], strides = [1, 1]} : vector<25x192xf32> to vector<19x192xf32>
    %4 = arith.truncf %3 : vector<19x192xf32> to vector<19x192xbf16>
    %c0_2 = arith.constant 0 : index
    %c0_3 = arith.constant 0 : index
    %c0_4 = arith.constant 0 : index
    %5 = vector.load %arg2[%c0_2, %c0_3, %c0_4] : memref<4x192x512xbf16, #tpu.memory_space<vmem>>, vector<1x192x512xbf16>
    %6 = vector.shape_cast %5 : vector<1x192x512xbf16> to vector<192x512xbf16>
    %cst_5 = arith.constant dense<0.000000e+00> : vector<19x512xf32>
    %7 = tpu.matmul %4, %6, %cst_5 {dimension_numbers = #tpu.dot_dimension_numbers<[1], [0], [0], [1], [0, 0, 1, 1], [], []>} : vector<19x192xbf16>, vector<192x512xbf16>, vector<19x512xf32> -> vector<19x512xf32>
    %8 = arith.addf %2, %7 : vector<19x512xf32>
    %9 = vector.extract_strided_slice %1 {offsets = [1, 0], sizes = [19, 192], strides = [1, 1]} : vector<25x192xf32> to vector<19x192xf32>
    %10 = arith.truncf %9 : vector<19x192xf32> to vector<19x192xbf16>
    %c1 = arith.constant 1 : index
    %c0_6 = arith.constant 0 : index
    %c0_7 = arith.constant 0 : index
    %11 = vector.load %arg2[%c1, %c0_6, %c0_7] : memref<4x192x512xbf16, #tpu.memory_space<vmem>>, vector<1x192x512xbf16>
    %12 = vector.shape_cast %11 : vector<1x192x512xbf16> to vector<192x512xbf16>
    %cst_8 = arith.constant dense<0.000000e+00> : vector<19x512xf32>
    %13 = tpu.matmul %10, %12, %cst_8 {dimension_numbers = #tpu.dot_dimension_numbers<[1], [0], [0], [1], [0, 0, 1, 1], [], []>} : vector<19x192xbf16>, vector<192x512xbf16>, vector<19x512xf32> -> vector<19x512xf32>
    %14 = arith.addf %8, %13 : vector<19x512xf32>
    %15 = vector.extract_strided_slice %1 {offsets = [5, 0], sizes = [19, 192], strides = [1, 1]} : vector<25x192xf32> to vector<19x192xf32>
    %16 = arith.truncf %15 : vector<19x192xf32> to vector<19x192xbf16>
    %c2 = arith.constant 2 : index
    %c0_9 = arith.constant 0 : index
    %c0_10 = arith.constant 0 : index
    %17 = vector.load %arg2[%c2, %c0_9, %c0_10] : memref<4x192x512xbf16, #tpu.memory_space<vmem>>, vector<1x192x512xbf16>
    %18 = vector.shape_cast %17 : vector<1x192x512xbf16> to vector<192x512xbf16>
    %cst_11 = arith.constant dense<0.000000e+00> : vector<19x512xf32>
    %19 = tpu.matmul %16, %18, %cst_11 {dimension_numbers = #tpu.dot_dimension_numbers<[1], [0], [0], [1], [0, 0, 1, 1], [], []>} : vector<19x192xbf16>, vector<192x512xbf16>, vector<19x512xf32> -> vector<19x512xf32>
    %20 = arith.addf %14, %19 : vector<19x512xf32>
    %21 = vector.extract_strided_slice %1 {offsets = [6, 0], sizes = [19, 192], strides = [1, 1]} : vector<25x192xf32> to vector<19x192xf32>
    %22 = arith.truncf %21 : vector<19x192xf32> to vector<19x192xbf16>
    %c3 = arith.constant 3 : index
    %c0_12 = arith.constant 0 : index
    %c0_13 = arith.constant 0 : index
    %23 = vector.load %arg2[%c3, %c0_12, %c0_13] : memref<4x192x512xbf16, #tpu.memory_space<vmem>>, vector<1x192x512xbf16>
    %24 = vector.shape_cast %23 : vector<1x192x512xbf16> to vector<192x512xbf16>
    %cst_14 = arith.constant dense<0.000000e+00> : vector<19x512xf32>
    %25 = tpu.matmul %22, %24, %cst_14 {dimension_numbers = #tpu.dot_dimension_numbers<[1], [0], [0], [1], [0, 0, 1, 1], [], []>} : vector<19x192xbf16>, vector<192x512xbf16>, vector<19x512xf32> -> vector<19x512xf32>
    %26 = arith.addf %20, %25 : vector<19x512xf32>
    %27 = vector.extract_strided_slice %26 {offsets = [0, 0], sizes = [19, 128], strides = [1, 1]} : vector<19x512xf32> to vector<19x128xf32>
    %28 = vector.extract_strided_slice %26 {offsets = [0, 128], sizes = [19, 128], strides = [1, 1]} : vector<19x512xf32> to vector<19x128xf32>
    %29 = arith.maximumf %27, %28 : vector<19x128xf32>
    %30 = vector.extract_strided_slice %26 {offsets = [0, 256], sizes = [19, 128], strides = [1, 1]} : vector<19x512xf32> to vector<19x128xf32>
    %31 = vector.extract_strided_slice %26 {offsets = [0, 384], sizes = [19, 128], strides = [1, 1]} : vector<19x512xf32> to vector<19x128xf32>
    %32 = arith.maximumf %30, %31 : vector<19x128xf32>
    %33 = arith.maximumf %29, %32 : vector<19x128xf32>
    %c0_15 = arith.constant 0 : index
    %c0_16 = arith.constant 0 : index
    %34 = vector.load %arg3[%c0_15, %c0_16] : memref<1x128xf32, #tpu.memory_space<vmem>>, vector<1x128xf32>
    %35 = vector.broadcast %34 : vector<1x128xf32> to vector<19x128xf32>
    %36 = arith.addf %33, %35 : vector<19x128xf32>
    %cst_17 = arith.constant 0.000000e+00 : f32
    %37 = vector.broadcast %cst_17 : f32 to vector<19x128xf32>
    %38 = arith.maximumf %36, %37 : vector<19x128xf32>
    %cst_18 = arith.constant 0.000000e+00 : f32
    %39 = vector.broadcast %cst_18 : f32 to vector<13x512xf32>
    %40 = vector.extract_strided_slice %38 {offsets = [0, 0], sizes = [13, 128], strides = [1, 1]} : vector<19x128xf32> to vector<13x128xf32>
    %41 = arith.truncf %40 : vector<13x128xf32> to vector<13x128xbf16>
    %c0_19 = arith.constant 0 : index
    %c0_20 = arith.constant 0 : index
    %c0_21 = arith.constant 0 : index
    %42 = vector.load %arg4[%c0_19, %c0_20, %c0_21] : memref<4x128x512xbf16, #tpu.memory_space<vmem>>, vector<1x128x512xbf16>
    %43 = vector.shape_cast %42 : vector<1x128x512xbf16> to vector<128x512xbf16>
    %cst_22 = arith.constant dense<0.000000e+00> : vector<13x512xf32>
    %44 = tpu.matmul %41, %43, %cst_22 {dimension_numbers = #tpu.dot_dimension_numbers<[1], [0], [0], [1], [0, 0, 1, 1], [], []>} : vector<13x128xbf16>, vector<128x512xbf16>, vector<13x512xf32> -> vector<13x512xf32>
    %45 = arith.addf %39, %44 : vector<13x512xf32>
    %46 = vector.extract_strided_slice %38 {offsets = [1, 0], sizes = [13, 128], strides = [1, 1]} : vector<19x128xf32> to vector<13x128xf32>
    %47 = arith.truncf %46 : vector<13x128xf32> to vector<13x128xbf16>
    %c1_23 = arith.constant 1 : index
    %c0_24 = arith.constant 0 : index
    %c0_25 = arith.constant 0 : index
    %48 = vector.load %arg4[%c1_23, %c0_24, %c0_25] : memref<4x128x512xbf16, #tpu.memory_space<vmem>>, vector<1x128x512xbf16>
    %49 = vector.shape_cast %48 : vector<1x128x512xbf16> to vector<128x512xbf16>
    %cst_26 = arith.constant dense<0.000000e+00> : vector<13x512xf32>
    %50 = tpu.matmul %47, %49, %cst_26 {dimension_numbers = #tpu.dot_dimension_numbers<[1], [0], [0], [1], [0, 0, 1, 1], [], []>} : vector<13x128xbf16>, vector<128x512xbf16>, vector<13x512xf32> -> vector<13x512xf32>
    %51 = arith.addf %45, %50 : vector<13x512xf32>
    %52 = vector.extract_strided_slice %38 {offsets = [5, 0], sizes = [13, 128], strides = [1, 1]} : vector<19x128xf32> to vector<13x128xf32>
    %53 = arith.truncf %52 : vector<13x128xf32> to vector<13x128xbf16>
    %c2_27 = arith.constant 2 : index
    %c0_28 = arith.constant 0 : index
    %c0_29 = arith.constant 0 : index
    %54 = vector.load %arg4[%c2_27, %c0_28, %c0_29] : memref<4x128x512xbf16, #tpu.memory_space<vmem>>, vector<1x128x512xbf16>
    %55 = vector.shape_cast %54 : vector<1x128x512xbf16> to vector<128x512xbf16>
    %cst_30 = arith.constant dense<0.000000e+00> : vector<13x512xf32>
    %56 = tpu.matmul %53, %55, %cst_30 {dimension_numbers = #tpu.dot_dimension_numbers<[1], [0], [0], [1], [0, 0, 1, 1], [], []>} : vector<13x128xbf16>, vector<128x512xbf16>, vector<13x512xf32> -> vector<13x512xf32>
    %57 = arith.addf %51, %56 : vector<13x512xf32>
    %58 = vector.extract_strided_slice %38 {offsets = [6, 0], sizes = [13, 128], strides = [1, 1]} : vector<19x128xf32> to vector<13x128xf32>
    %59 = arith.truncf %58 : vector<13x128xf32> to vector<13x128xbf16>
    %c3_31 = arith.constant 3 : index
    %c0_32 = arith.constant 0 : index
    %c0_33 = arith.constant 0 : index
    %60 = vector.load %arg4[%c3_31, %c0_32, %c0_33] : memref<4x128x512xbf16, #tpu.memory_space<vmem>>, vector<1x128x512xbf16>
    %61 = vector.shape_cast %60 : vector<1x128x512xbf16> to vector<128x512xbf16>
    %cst_34 = arith.constant dense<0.000000e+00> : vector<13x512xf32>
    %62 = tpu.matmul %59, %61, %cst_34 {dimension_numbers = #tpu.dot_dimension_numbers<[1], [0], [0], [1], [0, 0, 1, 1], [], []>} : vector<13x128xbf16>, vector<128x512xbf16>, vector<13x512xf32> -> vector<13x512xf32>
    %63 = arith.addf %57, %62 : vector<13x512xf32>
    %64 = vector.extract_strided_slice %63 {offsets = [0, 0], sizes = [13, 128], strides = [1, 1]} : vector<13x512xf32> to vector<13x128xf32>
    %65 = vector.extract_strided_slice %63 {offsets = [0, 128], sizes = [13, 128], strides = [1, 1]} : vector<13x512xf32> to vector<13x128xf32>
    %66 = arith.maximumf %64, %65 : vector<13x128xf32>
    %67 = vector.extract_strided_slice %63 {offsets = [0, 256], sizes = [13, 128], strides = [1, 1]} : vector<13x512xf32> to vector<13x128xf32>
    %68 = vector.extract_strided_slice %63 {offsets = [0, 384], sizes = [13, 128], strides = [1, 1]} : vector<13x512xf32> to vector<13x128xf32>
    %69 = arith.maximumf %67, %68 : vector<13x128xf32>
    %70 = arith.maximumf %66, %69 : vector<13x128xf32>
    %c0_35 = arith.constant 0 : index
    %c0_36 = arith.constant 0 : index
    %71 = vector.load %arg5[%c0_35, %c0_36] : memref<1x128xf32, #tpu.memory_space<vmem>>, vector<1x128xf32>
    %72 = vector.broadcast %71 : vector<1x128xf32> to vector<13x128xf32>
    %73 = arith.addf %70, %72 : vector<13x128xf32>
    %cst_37 = arith.constant 0.000000e+00 : f32
    %74 = vector.broadcast %cst_37 : f32 to vector<13x128xf32>
    %75 = arith.maximumf %73, %74 : vector<13x128xf32>
    %76 = arith.truncf %75 : vector<13x128xf32> to vector<13x128xbf16>
    %c0_38 = arith.constant 0 : index
    %c0_39 = arith.constant 0 : index
    %c0_40 = arith.constant 0 : index
    %77 = vector.load %arg6[%c0_38, %c0_39, %c0_40] : memref<1x13x128xbf16, #tpu.memory_space<vmem>>, vector<1x13x128xbf16>
    %78 = vector.shape_cast %77 : vector<1x13x128xbf16> to vector<13x128xbf16>
    %79 = vector.shape_cast %76 : vector<13x128xbf16> to vector<1x13x128xbf16>
    tpu.vector_store %arg6[%c0_38, %c0_39, %c0_40], %79 {strides = array<i32>} : memref<1x13x128xbf16, #tpu.memory_space<vmem>>, vector<1x13x128xbf16>,
    return
  }
  func.func @transform_0(%arg0: i32) -> (i32, i32, i32) {
    %c0_i32 = arith.constant 0 : i32
    %c0_i32_0 = arith.constant 0 : i32
    %c0_i32_1 = arith.constant 0 : i32
    return %arg0, %c0_i32, %c0_i32_0 : i32, i32, i32
  }
  func.func @transform_1(%arg0: i32) -> (i32, i32, i32) {
    %c0_i32 = arith.constant 0 : i32
    %c0_i32_0 = arith.constant 0 : i32
    %c0_i32_1 = arith.constant 0 : i32
    %c0_i32_2 = arith.constant 0 : i32
    return %c0_i32, %c0_i32_0, %c0_i32_1 : i32, i32, i32
  }
  func.func @transform_2(%arg0: i32) -> (i32, i32) {
    %c0_i32 = arith.constant 0 : i32
    %c0_i32_0 = arith.constant 0 : i32
    %c0_i32_1 = arith.constant 0 : i32
    return %c0_i32, %c0_i32_0 : i32, i32
  }
  func.func @transform_3(%arg0: i32) -> (i32, i32, i32) {
    %c0_i32 = arith.constant 0 : i32
    %c0_i32_0 = arith.constant 0 : i32
    %c0_i32_1 = arith.constant 0 : i32
    %c0_i32_2 = arith.constant 0 : i32
    return %c0_i32, %c0_i32_0, %c0_i32_1 : i32, i32, i32
  }
  func.func @transform_4(%arg0: i32) -> (i32, i32) {
    %c0_i32 = arith.constant 0 : i32
    %c0_i32_0 = arith.constant 0 : i32
    %c0_i32_1 = arith.constant 0 : i32
    return %c0_i32, %c0_i32_0 : i32, i32
  }
  func.func @transform_5(%arg0: i32) -> (i32, i32, i32) {
    %c0_i32 = arith.constant 0 : i32
    %c0_i32_0 = arith.constant 0 : i32
    %c0_i32_1 = arith.constant 0 : i32
    return %arg0, %c0_i32, %c0_i32_0 : i32, i32, i32
  }
}

module attributes {stable_mosaic.version = 11 : i64} {
  func.func @_fc_stack_kernel(%arg0: i32, %arg1: memref<1x1x1664xbf16, #tpu.memory_space<vmem>>, %arg2: memref<1664x128xbf16, #tpu.memory_space<vmem>>, %arg3: memref<1x128xf32, #tpu.memory_space<vmem>>, %arg4: memref<128x128xbf16, #tpu.memory_space<vmem>>, %arg5: memref<1x128xf32, #tpu.memory_space<vmem>>, %arg6: memref<128x128xbf16, #tpu.memory_space<vmem>>, %arg7: memref<1x128xf32, #tpu.memory_space<vmem>>, %arg8: memref<1x1x128xf32, #tpu.memory_space<vmem>>) attributes {dimension_semantics = [#tpu.dimension_semantics<parallel>], iteration_bounds = array<i64: 2>, scalar_prefetch = 0 : i64, scratch_operands = 0 : i64, tpu.core_type = #tpu.core_type<tc>, window_params = [{transform_indices = @transform_0, window_bounds = array<i64: 1, 1, 1664>}, {pipeline_mode = #tpu.pipeline_mode<synchronous>, transform_indices = @transform_1, window_bounds = array<i64: 1664, 128>}, {pipeline_mode = #tpu.pipeline_mode<synchronous>, transform_indices = @transform_2, window_bounds = array<i64: 1, 128>}, {pipeline_mode = #tpu.pipeline_mode<synchronous>, transform_indices = @transform_3, window_bounds = array<i64: 128, 128>}, {pipeline_mode = #tpu.pipeline_mode<synchronous>, transform_indices = @transform_4, window_bounds = array<i64: 1, 128>}, {pipeline_mode = #tpu.pipeline_mode<synchronous>, transform_indices = @transform_5, window_bounds = array<i64: 128, 128>}, {pipeline_mode = #tpu.pipeline_mode<synchronous>, transform_indices = @transform_6, window_bounds = array<i64: 1, 128>}, {transform_indices = @transform_7, window_bounds = array<i64: 1, 1, 128>}]} {
    %c0 = arith.constant 0 : index
    %c0_0 = arith.constant 0 : index
    %c0_1 = arith.constant 0 : index
    %0 = vector.load %arg1[%c0, %c0_0, %c0_1] : memref<1x1x1664xbf16, #tpu.memory_space<vmem>>, vector<1x1x1664xbf16>
    %1 = vector.shape_cast %0 : vector<1x1x1664xbf16> to vector<1x1664xbf16>
    %c0_2 = arith.constant 0 : index
    %c0_3 = arith.constant 0 : index
    %2 = vector.load %arg2[%c0_2, %c0_3] : memref<1664x128xbf16, #tpu.memory_space<vmem>>, vector<1664x128xbf16>
    %cst = arith.constant dense<0.000000e+00> : vector<1x128xf32>
    %3 = tpu.matmul %1, %2, %cst {dimension_numbers = #tpu.dot_dimension_numbers<[1], [0], [0], [1], [0, 0, 1, 1], [], []>} : vector<1x1664xbf16>, vector<1664x128xbf16>, vector<1x128xf32> -> vector<1x128xf32>
    %c0_4 = arith.constant 0 : index
    %c0_5 = arith.constant 0 : index
    %4 = vector.load %arg3[%c0_4, %c0_5] : memref<1x128xf32, #tpu.memory_space<vmem>>, vector<1x128xf32>
    %5 = arith.addf %3, %4 : vector<1x128xf32>
    %cst_6 = arith.constant 0.000000e+00 : f32
    %6 = vector.broadcast %cst_6 : f32 to vector<1x128xf32>
    %7 = arith.maximumf %5, %6 : vector<1x128xf32>
    %8 = arith.truncf %7 : vector<1x128xf32> to vector<1x128xbf16>
    %c0_7 = arith.constant 0 : index
    %c0_8 = arith.constant 0 : index
    %9 = vector.load %arg4[%c0_7, %c0_8] : memref<128x128xbf16, #tpu.memory_space<vmem>>, vector<128x128xbf16>
    %cst_9 = arith.constant dense<0.000000e+00> : vector<1x128xf32>
    %10 = tpu.matmul %8, %9, %cst_9 {dimension_numbers = #tpu.dot_dimension_numbers<[1], [0], [0], [1], [0, 0, 1, 1], [], []>} : vector<1x128xbf16>, vector<128x128xbf16>, vector<1x128xf32> -> vector<1x128xf32>
    %c0_10 = arith.constant 0 : index
    %c0_11 = arith.constant 0 : index
    %11 = vector.load %arg5[%c0_10, %c0_11] : memref<1x128xf32, #tpu.memory_space<vmem>>, vector<1x128xf32>
    %12 = arith.addf %10, %11 : vector<1x128xf32>
    %cst_12 = arith.constant 0.000000e+00 : f32
    %13 = vector.broadcast %cst_12 : f32 to vector<1x128xf32>
    %14 = arith.maximumf %12, %13 : vector<1x128xf32>
    %15 = arith.truncf %14 : vector<1x128xf32> to vector<1x128xbf16>
    %c0_13 = arith.constant 0 : index
    %c0_14 = arith.constant 0 : index
    %16 = vector.load %arg6[%c0_13, %c0_14] : memref<128x128xbf16, #tpu.memory_space<vmem>>, vector<128x128xbf16>
    %cst_15 = arith.constant dense<0.000000e+00> : vector<1x128xf32>
    %17 = tpu.matmul %15, %16, %cst_15 {dimension_numbers = #tpu.dot_dimension_numbers<[1], [0], [0], [1], [0, 0, 1, 1], [], []>} : vector<1x128xbf16>, vector<128x128xbf16>, vector<1x128xf32> -> vector<1x128xf32>
    %c0_16 = arith.constant 0 : index
    %c0_17 = arith.constant 0 : index
    %18 = vector.load %arg7[%c0_16, %c0_17] : memref<1x128xf32, #tpu.memory_space<vmem>>, vector<1x128xf32>
    %19 = arith.addf %17, %18 : vector<1x128xf32>
    %c0_18 = arith.constant 0 : index
    %c0_19 = arith.constant 0 : index
    %c0_20 = arith.constant 0 : index
    %20 = vector.load %arg8[%c0_18, %c0_19, %c0_20] : memref<1x1x128xf32, #tpu.memory_space<vmem>>, vector<1x1x128xf32>
    %21 = vector.shape_cast %20 : vector<1x1x128xf32> to vector<1x128xf32>
    %22 = vector.shape_cast %19 : vector<1x128xf32> to vector<1x1x128xf32>
    tpu.vector_store %arg8[%c0_18, %c0_19, %c0_20], %22 {strides = array<i32>} : memref<1x1x128xf32, #tpu.memory_space<vmem>>, vector<1x1x128xf32>,
    return
  }
  func.func @transform_0(%arg0: i32) -> (i32, i32, i32) {
    %c0_i32 = arith.constant 0 : i32
    %c0_i32_0 = arith.constant 0 : i32
    %c0_i32_1 = arith.constant 0 : i32
    return %arg0, %c0_i32, %c0_i32_0 : i32, i32, i32
  }
  func.func @transform_1(%arg0: i32) -> (i32, i32) {
    %c0_i32 = arith.constant 0 : i32
    %c0_i32_0 = arith.constant 0 : i32
    %c0_i32_1 = arith.constant 0 : i32
    return %c0_i32, %c0_i32_0 : i32, i32
  }
  func.func @transform_2(%arg0: i32) -> (i32, i32) {
    %c0_i32 = arith.constant 0 : i32
    %c0_i32_0 = arith.constant 0 : i32
    %c0_i32_1 = arith.constant 0 : i32
    return %c0_i32, %c0_i32_0 : i32, i32
  }
  func.func @transform_3(%arg0: i32) -> (i32, i32) {
    %c0_i32 = arith.constant 0 : i32
    %c0_i32_0 = arith.constant 0 : i32
    %c0_i32_1 = arith.constant 0 : i32
    return %c0_i32, %c0_i32_0 : i32, i32
  }
  func.func @transform_4(%arg0: i32) -> (i32, i32) {
    %c0_i32 = arith.constant 0 : i32
    %c0_i32_0 = arith.constant 0 : i32
    %c0_i32_1 = arith.constant 0 : i32
    return %c0_i32, %c0_i32_0 : i32, i32
  }
  func.func @transform_5(%arg0: i32) -> (i32, i32) {
    %c0_i32 = arith.constant 0 : i32
    %c0_i32_0 = arith.constant 0 : i32
    %c0_i32_1 = arith.constant 0 : i32
    return %c0_i32, %c0_i32_0 : i32, i32
  }
  func.func @transform_6(%arg0: i32) -> (i32, i32) {
    %c0_i32 = arith.constant 0 : i32
    %c0_i32_0 = arith.constant 0 : i32
    %c0_i32_1 = arith.constant 0 : i32
    return %c0_i32, %c0_i32_0 : i32, i32
  }
  func.func @transform_7(%arg0: i32) -> (i32, i32, i32) {
    %c0_i32 = arith.constant 0 : i32
    %c0_i32_0 = arith.constant 0 : i32
    %c0_i32_1 = arith.constant 0 : i32
    return %arg0, %c0_i32, %c0_i32_0 : i32, i32, i32
  }
}

</mosaic_0001>

<llo_original>
// kernel: forward.3
$region0: #{forward.3}
  #allocation0 [shape = 'u32[]', space=smem, size = 0x4, offset = 0x4, fixed_abs, tag = 'smem constant byte address 0x4 - core index']
  #allocation1 [shape = 'u32[144,128]{1,0:T(1,128)}', space=vmem, size = 0x12000, scoped, tag = 'internal scratch']
  %s0 = inlined_call_operand.vmem [shape: bf16[2,1,1664], index: 0, kind: input, shape index: {}]
  %s1 = inlined_call_operand.vmem [shape: bf16[1664,128], index: 1, kind: input, shape index: {}]
  %s2 = inlined_call_operand.vmem [shape: f32[1,128], index: 2, kind: input, shape index: {}]
  %s3 = inlined_call_operand.vmem [shape: bf16[128,128], index: 3, kind: input, shape index: {}]
  %s4 = inlined_call_operand.vmem [shape: f32[1,128], index: 4, kind: input, shape index: {}]
  %s5 = inlined_call_operand.vmem [shape: bf16[128,128], index: 5, kind: input, shape index: {}]
  %s6 = inlined_call_operand.vmem [shape: f32[1,128], index: 6, kind: input, shape index: {}]
  %s7 = inlined_call_operand.hbm [shape: f32[2,1,128], index: 7, kind: output, shape index: {}]
  %s8 = sld [smem:[#allocation0]]
  $region61: #{forward.3} parent=0
    _
  %s10 = ssub.s32 1, %s8
  %s11 = scalar_select 0, %s10, %s8
  $region1: #{forward.3} parent=0
    #allocation2 [shape = 'u8[1024]{0}', space=vmem, size = 0x400, scoped, tag = 'output window, operand 0']
    #allocation3 [shape = 's32[2]{0}', space=sflag, size = 0x8, scoped, tag = 'scoped memory for forward.3']
    %12 = vsyncpa [#allocation3], 0
    %s13 = scalar_lea.sflag [#allocation3], 1
    %14 = vsyncpa %s13, 0
    loop: start=0, step=1, limit=4
    $region2: #{forward.3} parent=1 // loop_pre_header
      _
    $region3: #{forward.3} parent=1 // loop_header
      %s16 = sphi 0, %s20
      %p17 = scmp.ge.s32.totalorder %s16, 4
      %s26 = sphi 0, %s28
      %s29 = sphi 0, %s26
      %s30 = sphi 0, %s29
      %s46 = sphi 0, %s30
      %s50 = sphi 0, %s50
      %s52 = sphi 0, %s50
      %s53 = sphi 0, %s52
      %s67 = sphi 0, %s53
      %s71 = sphi 0, %s71
      %s73 = sphi 0, %s71
      %s74 = sphi 0, %s73
      %s88 = sphi 0, %s74
      %s92 = sphi 0, %s92
      %s94 = sphi 0, %s92
      %s95 = sphi 0, %s94
      %s109 = sphi 0, %s95
      %s113 = sphi 0, %s113
      %s115 = sphi 0, %s113
      %s116 = sphi 0, %s115
      %s130 = sphi 0, %s116
      %s134 = sphi 0, %s134
      %s136 = sphi 0, %s134
      %s137 = sphi 0, %s136
      %s151 = sphi 0, %s137
      %s155 = sphi 0, %s155
      %s157 = sphi 0, %s155
      %s158 = sphi 0, %s157
      %s172 = sphi 0, %s158
      %s178 = sphi 0, %s180
      %s181 = sphi 0, %s178
      %s182 = sphi 0, %s181
      %s198 = sphi 0, %s182
    $region4: #{forward.3} parent=1 // loop_header_branch
      %19 = sbr.rel (%p17) target = $region8
    $region5: #{forward.3} parent=1 // loop_body
      %s21 = ssub.s32 %s16, 1
      %s22 = ssub.s32 %s16, 2
      %s23 = sadd.s32 %s16, 1
      %s24 = ssub.s32 %s16, %s23
      %p25 = scmp.eq.s32.totalorder %s24, 0
      %s27 = sadd.s32 %s26, 1
      %s28 = scalar_select %p25, %s26, %s27
      %p31 = pneg %p25
      %p32 = scmp.eq.s32.totalorder %s16, 1
      %p33 = por %p31, %p32
      %p34 = scmp.ne.s32.totalorder %s26, %s29
      %p35 = scmp.eq.s32.totalorder %s16, 0
      %p36 = por %p34, %p35
      %p37 = scmp.ne.s32.totalorder %s26, %s29
      %p38 = scmp.eq.s32.totalorder %s21, 1
      %p39 = por %p37, %p38
      %p40 = scmp.ne.s32.totalorder %s29, %s30
      %p41 = scmp.eq.s32.totalorder %s21, 0
      %p42 = por %p40, %p41
      %p43 = scmp.ne.s32.totalorder %s29, %s30
      %p44 = scmp.eq.s32.totalorder %s22, 1
      %p45 = por %p43, %p44
      %p47 = scmp.ne.s32.totalorder %s30, %s46
      %p48 = scmp.eq.s32.totalorder %s22, 0
      %p49 = por %p47, %p48
      %s51 = sadd.s32 %s50, 1
      %p54 = scmp.eq.s32.totalorder %s16, 1
      %p55 = scmp.ne.s32.totalorder %s50, %s52
      %p56 = scmp.eq.s32.totalorder %s16, 0
      %p57 = por %p55, %p56
      %p58 = scmp.ne.s32.totalorder %s50, %s52
      %p59 = scmp.eq.s32.totalorder %s21, 1
      %p60 = por %p58, %p59
      %p61 = scmp.ne.s32.totalorder %s52, %s53
      %p62 = scmp.eq.s32.totalorder %s21, 0
      %p63 = por %p61, %p62
      %p64 = scmp.ne.s32.totalorder %s52, %s53
      %p65 = scmp.eq.s32.totalorder %s22, 1
      %p66 = por %p64, %p65
      %p68 = scmp.ne.s32.totalorder %s53, %s67
      %p69 = scmp.eq.s32.totalorder %s22, 0
      %p70 = por %p68, %p69
      %s72 = sadd.s32 %s71, 1
      %p75 = scmp.eq.s32.totalorder %s16, 1
      %p76 = scmp.ne.s32.totalorder %s71, %s73
      %p77 = scmp.eq.s32.totalorder %s16, 0
      %p78 = por %p76, %p77
      %p79 = scmp.ne.s32.totalorder %s71, %s73
      %p80 = scmp.eq.s32.totalorder %s21, 1
      %p81 = por %p79, %p80
      %p82 = scmp.ne.s32.totalorder %s73, %s74
      %p83 = scmp.eq.s32.totalorder %s21, 0
      %p84 = por %p82, %p83
      %p85 = scmp.ne.s32.totalorder %s73, %s74
      %p86 = scmp.eq.s32.totalorder %s22, 1
      %p87 = por %p85, %p86
      %p89 = scmp.ne.s32.totalorder %s74, %s88
      %p90 = scmp.eq.s32.totalorder %s22, 0
      %p91 = por %p89, %p90
      %s93 = sadd.s32 %s92, 1
      %p96 = scmp.eq.s32.totalorder %s16, 1
      %p97 = scmp.ne.s32.totalorder %s92, %s94
      %p98 = scmp.eq.s32.totalorder %s16, 0
      %p99 = por %p97, %p98
      %p100 = scmp.ne.s32.totalorder %s92, %s94
      %p101 = scmp.eq.s32.totalorder %s21, 1
      %p102 = por %p100, %p101
      %p103 = scmp.ne.s32.totalorder %s94, %s95
      %p104 = scmp.eq.s32.totalorder %s21, 0
      %p105 = por %p103, %p104
      %p106 = scmp.ne.s32.totalorder %s94, %s95
      %p107 = scmp.eq.s32.totalorder %s22, 1
      %p108 = por %p106, %p107
      %p110 = scmp.ne.s32.totalorder %s95, %s109
      %p111 = scmp.eq.s32.totalorder %s22, 0
      %p112 = por %p110, %p111
      %s114 = sadd.s32 %s113, 1
      %p117 = scmp.eq.s32.totalorder %s16, 1
      %p118 = scmp.ne.s32.totalorder %s113, %s115
      %p119 = scmp.eq.s32.totalorder %s16, 0
      %p120 = por %p118, %p119
      %p121 = scmp.ne.s32.totalorder %s113, %s115
      %p122 = scmp.eq.s32.totalorder %s21, 1
      %p123 = por %p121, %p122
      %p124 = scmp.ne.s32.totalorder %s115, %s116
      %p125 = scmp.eq.s32.totalorder %s21, 0
      %p126 = por %p124, %p125
      %p127 = scmp.ne.s32.totalorder %s115, %s116
      %p128 = scmp.eq.s32.totalorder %s22, 1
      %p129 = por %p127, %p128
      %p131 = scmp.ne.s32.totalorder %s116, %s130
      %p132 = scmp.eq.s32.totalorder %s22, 0
      %p133 = por %p131, %p132
      %s135 = sadd.s32 %s134, 1
      %p138 = scmp.eq.s32.totalorder %s16, 1
      %p139 = scmp.ne.s32.totalorder %s134, %s136
      %p140 = scmp.eq.s32.totalorder %s16, 0
      %p141 = por %p139, %p140
      %p142 = scmp.ne.s32.totalorder %s134, %s136
      %p143 = scmp.eq.s32.totalorder %s21, 1
      %p144 = por %p142, %p143
      %p145 = scmp.ne.s32.totalorder %s136, %s137
      %p146 = scmp.eq.s32.totalorder %s21, 0
      %p147 = por %p145, %p146
      %p148 = scmp.ne.s32.totalorder %s136, %s137
      %p149 = scmp.eq.s32.totalorder %s22, 1
      %p150 = por %p148, %p149
      %p152 = scmp.ne.s32.totalorder %s137, %s151
      %p153 = scmp.eq.s32.totalorder %s22, 0
      %p154 = por %p152, %p153
      %s156 = sadd.s32 %s155, 1
      %p159 = scmp.eq.s32.totalorder %s16, 1
      %p160 = scmp.ne.s32.totalorder %s155, %s157
      %p161 = scmp.eq.s32.totalorder %s16, 0
      %p162 = por %p160, %p161
      %p163 = scmp.ne.s32.totalorder %s155, %s157
      %p164 = scmp.eq.s32.totalorder %s21, 1
      %p165 = por %p163, %p164
      %p166 = scmp.ne.s32.totalorder %s157, %s158
      %p167 = scmp.eq.s32.totalorder %s21, 0
      %p168 = por %p166, %p167
      %p169 = scmp.ne.s32.totalorder %s157, %s158
      %p170 = scmp.eq.s32.totalorder %s22, 1
      %p171 = por %p169, %p170
      %p173 = scmp.ne.s32.totalorder %s158, %s172
      %p174 = scmp.eq.s32.totalorder %s22, 0
      %p175 = por %p173, %p174
      %s176 = ssub.s32 %s16, %s23
      %p177 = scmp.eq.s32.totalorder %s176, 0
      %s179 = sadd.s32 %s178, 1
      %s180 = scalar_select %p177, %s178, %s179
      %p183 = pneg %p177
      %p184 = scmp.eq.s32.totalorder %s16, 1
      %p185 = por %p183, %p184
      %p186 = scmp.ne.s32.totalorder %s178, %s181
      %p187 = scmp.eq.s32.totalorder %s16, 0
      %p188 = por %p186, %p187
      %p189 = scmp.ne.s32.totalorder %s178, %s181
      %p190 = scmp.eq.s32.totalorder %s21, 1
      %p191 = por %p189, %p190
      %p192 = scmp.ne.s32.totalorder %s181, %s182
      %p193 = scmp.eq.s32.totalorder %s21, 0
      %p194 = por %p192, %p193
      %p195 = scmp.ne.s32.totalorder %s181, %s182
      %p196 = scmp.eq.s32.totalorder %s22, 1
      %p197 = por %p195, %p196
      %p199 = scmp.ne.s32.totalorder %s182, %s198
      %p200 = scmp.eq.s32.totalorder %s22, 0
      %p201 = por %p199, %p200
      %p202 = scmp.le.s32.totalorder 1, %s16
      %p203 = scmp.lt.s32.totalorder %s16, 3
      %p204 = pnand %p202, %p203
      %p205 = pneg %p204
      // Predicated region
      $region9: #{forward.3} parent=5 // pred_check
        _
      $region10: #{forward.3} parent=5 // pred_check_branch
        %207 = sbr.rel (%p204) target = $region12
      $region11: #{forward.3} parent=5 // pred_region
        %s208 = ssub.s32 %s16, 1
        // Predicated region
        $region13: #{forward.3} parent=11 // pred_check
          %p209 = pneg %p63
        $region14: #{forward.3} parent=11 // pred_check_branch
          %211 = sbr.rel (%p209) target = $region16
        $region15: #{forward.3} parent=11 // pred_region
          _
        $region16: #{forward.3} parent=11 // pred_fallthru
          _
        // Predicated region
        $region17: #{forward.3} parent=11 // pred_check
          %p212 = pneg %p84
        $region18: #{forward.3} parent=11 // pred_check_branch
          %214 = sbr.rel (%p212) target = $region20
        $region19: #{forward.3} parent=11 // pred_region
          _
        $region20: #{forward.3} parent=11 // pred_fallthru
          _
        // Predicated region
        $region21: #{forward.3} parent=11 // pred_check
          %p215 = pneg %p105
        $region22: #{forward.3} parent=11 // pred_check_branch
          %217 = sbr.rel (%p215) target = $region24
        $region23: #{forward.3} parent=11 // pred_region
          _
        $region24: #{forward.3} parent=11 // pred_fallthru
          _
        // Predicated region
        $region25: #{forward.3} parent=11 // pred_check
          %p218 = pneg %p126
        $region26: #{forward.3} parent=11 // pred_check_branch
          %220 = sbr.rel (%p218) target = $region28
        $region27: #{forward.3} parent=11 // pred_region
          _
        $region28: #{forward.3} parent=11 // pred_fallthru
          _
        // Predicated region
        $region29: #{forward.3} parent=11 // pred_check
          %p221 = pneg %p147
        $region30: #{forward.3} parent=11 // pred_check_branch
          %223 = sbr.rel (%p221) target = $region32
        $region31: #{forward.3} parent=11 // pred_region
          _
        $region32: #{forward.3} parent=11 // pred_fallthru
          _
        // Predicated region
        $region33: #{forward.3} parent=11 // pred_check
          %p224 = pneg %p168
        $region34: #{forward.3} parent=11 // pred_check_branch
          %226 = sbr.rel (%p224) target = $region36
        $region35: #{forward.3} parent=11 // pred_region
          _
        $region36: #{forward.3} parent=11 // pred_fallthru
          _
      $region12: #{forward.3} parent=5 // pred_fallthru
        _
      %p227 = scmp.lt.s32.totalorder %s16, 2
      // Predicated region
      $region37: #{forward.3} parent=5 // pred_check
        %p228 = pneg %p227
      $region38: #{forward.3} parent=5 // pred_check_branch
        %230 = sbr.rel (%p228) target = $region40
      $region39: #{forward.3} parent=5 // pred_region
        // Predicated region
        $region41: #{forward.3} parent=39 // pred_check
          %p231 = pneg %p36
        $region42: #{forward.3} parent=39 // pred_check_branch
          %233 = sbr.rel (%p231) target = $region44
        $region43: #{forward.3} parent=39 // pred_region
          %p234 = scmp.lt.s32.totalorder %s16, 1
          %s235 = scalar_select %p234, %s16, 1
          %s236 = smul.addr %s235, 13
          %s237 = scalar_lea.vmem %s0, %s236
        $region44: #{forward.3} parent=39 // pred_fallthru
          _
      $region40: #{forward.3} parent=5 // pred_fallthru
        _
      %p238 = scmp.le.s32.totalorder 1, %s16
      %p239 = scmp.lt.s32.totalorder %s16, 3
      %p240 = pnand %p238, %p239
      %p241 = pneg %p240
      // Predicated region
      $region45: #{forward.3} parent=5 // pred_check
        _
      $region46: #{forward.3} parent=5 // pred_check_branch
        %243 = sbr.rel (%p240) target = $region48
      $region47: #{forward.3} parent=5 // pred_region
        %s244 = ssub.s32 %s16, 1
        %p245 = scmp.lt.s32.totalorder %s21, 1
        %s246 = scalar_select %p245, %s21, 1
        %s247 = smul.addr %s246, 13
        %s248 = scalar_lea.vmem %s0, %s247
        %p249 = pneg %p42
        %p250 = pneg %p39
        %p251 = pneg %p63
        %p252 = pneg %p60
        %p253 = pneg %p84
        %p254 = pneg %p81
        %p255 = pneg %p105
        %p256 = pneg %p102
        %p257 = pneg %p126
        %p258 = pneg %p123
        %p259 = pneg %p147
        %p260 = pneg %p144
        %p261 = pneg %p168
        %p262 = pneg %p165
        %p263 = pneg %p194
        %p264 = pneg %p191
        %s265 = sand.u32 %s181, 1
        %s266 = scalar_lea.sflag [#allocation3], %s265
        %s267 = sand.u32 %s181, 1
        %s268 = scalar_lea.vmem [#allocation2], %s267
        %p269 = scmp.lt.s32.totalorder %s21, 1
        %s270 = scalar_select %p269, %s21, 1
        %s271 = smul.addr %s270, 13
        %s272 = scalar_lea.vmem %s0, %s271
        %v274 = vld [vmem:[%s272] sm:$0xff]
        %v275 = vld [vmem:[%s272 + $0x8] sm:$0x1f]
        %v276 = vld [vmem:[%s1] sm:$0xf]
        %v277 = vld [vmem:[%s1 + $0x4] sm:$0xf]
        %v278 = vld [vmem:[%s1 + $0x8] sm:$0xf]
        %v279 = vld [vmem:[%s1 + $0xc] sm:$0xf]
        %v280 = vld [vmem:[%s1 + $0x10] sm:$0xf]
        %v281 = vld [vmem:[%s1 + $0x14] sm:$0xf]
        %v282 = vld [vmem:[%s1 + $0x18] sm:$0xf]
        %v283 = vld [vmem:[%s1 + $0x1c] sm:$0xf]
        %v284 = vld [vmem:[%s1 + $0x20] sm:$0xf]
        %v285 = vld [vmem:[%s1 + $0x24] sm:$0xf]
        %v286 = vld [vmem:[%s1 + $0x28] sm:$0xf]
        %v287 = vld [vmem:[%s1 + $0x2c] sm:$0xf]
        %v288 = vld [vmem:[%s1 + $0x30] sm:$0xf]
        %v289 = vld [vmem:[%s1 + $0x34] sm:$0xf]
        %v290 = vld [vmem:[%s1 + $0x38] sm:$0xf]
        %v291 = vld [vmem:[%s1 + $0x3c] sm:$0xf]
        %v292 = vld [vmem:[%s1 + $0x40] sm:$0xf]
        %v293 = vld [vmem:[%s1 + $0x44] sm:$0xf]
        %v294 = vld [vmem:[%s1 + $0x48] sm:$0xf]
        %v295 = vld [vmem:[%s1 + $0x4c] sm:$0xf]
        %v296 = vld [vmem:[%s1 + $0x50] sm:$0xf]
        %v297 = vld [vmem:[%s1 + $0x54] sm:$0xf]
        %v298 = vld [vmem:[%s1 + $0x58] sm:$0xf]
        %v299 = vld [vmem:[%s1 + $0x5c] sm:$0xf]
        %v300 = vld [vmem:[%s1 + $0x60] sm:$0xf]
        %v301 = vld [vmem:[%s1 + $0x64] sm:$0xf]
        %v302 = vld [vmem:[%s1 + $0x68] sm:$0xf]
        %v303 = vld [vmem:[%s1 + $0x6c] sm:$0xf]
        %v304 = vld [vmem:[%s1 + $0x70] sm:$0xf]
        %v305 = vld [vmem:[%s1 + $0x74] sm:$0xf]
        %v306 = vld [vmem:[%s1 + $0x78] sm:$0xf]
        %v307 = vld [vmem:[%s1 + $0x7c] sm:$0xf]
        %v308 = vld [vmem:[%s1 + $0x80] sm:$0xf]
        %v309 = vld [vmem:[%s1 + $0x84] sm:$0xf]
        %v310 = vld [vmem:[%s1 + $0x88] sm:$0xf]
        %v311 = vld [vmem:[%s1 + $0x8c] sm:$0xf]
        %v312 = vld [vmem:[%s1 + $0x90] sm:$0xf]
        %v313 = vld [vmem:[%s1 + $0x94] sm:$0xf]
        %v314 = vld [vmem:[%s1 + $0x98] sm:$0xf]
        %v315 = vld [vmem:[%s1 + $0x9c] sm:$0xf]
        %v316 = vld [vmem:[%s1 + $0xa0] sm:$0xf]
        %v317 = vld [vmem:[%s1 + $0xa4] sm:$0xf]
        %v318 = vld [vmem:[%s1 + $0xa8] sm:$0xf]
        %v319 = vld [vmem:[%s1 + $0xac] sm:$0xf]
        %v320 = vld [vmem:[%s1 + $0xb0] sm:$0xf]
        %v321 = vld [vmem:[%s1 + $0xb4] sm:$0xf]
        %v322 = vld [vmem:[%s1 + $0xb8] sm:$0xf]
        %v323 = vld [vmem:[%s1 + $0xbc] sm:$0xf]
        %v324 = vld [vmem:[%s1 + $0xc0] sm:$0xf]
        %v325 = vld [vmem:[%s1 + $0xc4] sm:$0xf]
        %v326 = vld [vmem:[%s1 + $0xc8] sm:$0xf]
        %v327 = vld [vmem:[%s1 + $0xcc] sm:$0xf]
        %v328 = vld [vmem:[%s1 + $0xd0] sm:$0xf]
        %v329 = vld [vmem:[%s1 + $0xd4] sm:$0xf]
        %v330 = vld [vmem:[%s1 + $0xd8] sm:$0xf]
        %v331 = vld [vmem:[%s1 + $0xdc] sm:$0xf]
        %v332 = vld [vmem:[%s1 + $0xe0] sm:$0xf]
        %v333 = vld [vmem:[%s1 + $0xe4] sm:$0xf]
        %v334 = vld [vmem:[%s1 + $0xe8] sm:$0xf]
        %v335 = vld [vmem:[%s1 + $0xec] sm:$0xf]
        %v336 = vld [vmem:[%s1 + $0xf0] sm:$0xf]
        %v337 = vld [vmem:[%s1 + $0xf4] sm:$0xf]
        %v338 = vld [vmem:[%s1 + $0xf8] sm:$0xf]
        %v339 = vld [vmem:[%s1 + $0xfc] sm:$0xf]
        %v340 = vld [vmem:[%s1 + $0x100] sm:$0xf]
        %v341 = vld [vmem:[%s1 + $0x104] sm:$0xf]
        %v342 = vld [vmem:[%s1 + $0x108] sm:$0xf]
        %v343 = vld [vmem:[%s1 + $0x10c] sm:$0xf]
        %v344 = vld [vmem:[%s1 + $0x110] sm:$0xf]
        %v345 = vld [vmem:[%s1 + $0x114] sm:$0xf]
        %v346 = vld [vmem:[%s1 + $0x118] sm:$0xf]
        %v347 = vld [vmem:[%s1 + $0x11c] sm:$0xf]
        %v348 = vld [vmem:[%s1 + $0x120] sm:$0xf]
        %v349 = vld [vmem:[%s1 + $0x124] sm:$0xf]
        %v350 = vld [vmem:[%s1 + $0x128] sm:$0xf]
        %v351 = vld [vmem:[%s1 + $0x12c] sm:$0xf]
        %v352 = vld [vmem:[%s1 + $0x130] sm:$0xf]
        %v353 = vld [vmem:[%s1 + $0x134] sm:$0xf]
        %v354 = vld [vmem:[%s1 + $0x138] sm:$0xf]
        %v355 = vld [vmem:[%s1 + $0x13c] sm:$0xf]
        %v356 = vld [vmem:[%s1 + $0x140] sm:$0xf]
        %v357 = vld [vmem:[%s1 + $0x144] sm:$0xf]
        %v358 = vld [vmem:[%s1 + $0x148] sm:$0xf]
        %v359 = vld [vmem:[%s1 + $0x14c] sm:$0xf]
        %v360 = vld [vmem:[%s1 + $0x150] sm:$0xf]
        %v361 = vld [vmem:[%s1 + $0x154] sm:$0xf]
        %v362 = vld [vmem:[%s1 + $0x158] sm:$0xf]
        %v363 = vld [vmem:[%s1 + $0x15c] sm:$0xf]
        %v364 = vld [vmem:[%s1 + $0x160] sm:$0xf]
        %v365 = vld [vmem:[%s1 + $0x164] sm:$0xf]
        %v366 = vld [vmem:[%s1 + $0x168] sm:$0xf]
        %v367 = vld [vmem:[%s1 + $0x16c] sm:$0xf]
        %v368 = vld [vmem:[%s1 + $0x170] sm:$0xf]
        %v369 = vld [vmem:[%s1 + $0x174] sm:$0xf]
        %v370 = vld [vmem:[%s1 + $0x178] sm:$0xf]
        %v371 = vld [vmem:[%s1 + $0x17c] sm:$0xf]
        %v372 = vld [vmem:[%s1 + $0x180] sm:$0xf]
        %v373 = vld [vmem:[%s1 + $0x184] sm:$0xf]
        %v374 = vld [vmem:[%s1 + $0x188] sm:$0xf]
        %v375 = vld [vmem:[%s1 + $0x18c] sm:$0xf]
        %v376 = vld [vmem:[%s1 + $0x190] sm:$0xf]
        %v377 = vld [vmem:[%s1 + $0x194] sm:$0xf]
        %v378 = vld [vmem:[%s1 + $0x198] sm:$0xf]
        %v379 = vld [vmem:[%s1 + $0x19c] sm:$0xf]
        %v380 = vld [vmem:[%s1 + $0x1a0] sm:$0xf]
        %v381 = vld [vmem:[%s1 + $0x1a4] sm:$0xf]
        %v382 = vld [vmem:[%s1 + $0x1a8] sm:$0xf]
        %v383 = vld [vmem:[%s1 + $0x1ac] sm:$0xf]
        %v384 = vld [vmem:[%s1 + $0x1b0] sm:$0xf]
        %v385 = vld [vmem:[%s1 + $0x1b4] sm:$0xf]
        %v386 = vld [vmem:[%s1 + $0x1b8] sm:$0xf]
        %v387 = vld [vmem:[%s1 + $0x1bc] sm:$0xf]
        %v388 = vld [vmem:[%s1 + $0x1c0] sm:$0xf]
        %v389 = vld [vmem:[%s1 + $0x1c4] sm:$0xf]
        %v390 = vld [vmem:[%s1 + $0x1c8] sm:$0xf]
        %v391 = vld [vmem:[%s1 + $0x1cc] sm:$0xf]
        %v392 = vld [vmem:[%s1 + $0x1d0] sm:$0xf]
        %v393 = vld [vmem:[%s1 + $0x1d4] sm:$0xf]
        %v394 = vld [vmem:[%s1 + $0x1d8] sm:$0xf]
        %v395 = vld [vmem:[%s1 + $0x1dc] sm:$0xf]
        %v396 = vld [vmem:[%s1 + $0x1e0] sm:$0xf]
        %v397 = vld [vmem:[%s1 + $0x1e4] sm:$0xf]
        %v398 = vld [vmem:[%s1 + $0x1e8] sm:$0xf]
        %v399 = vld [vmem:[%s1 + $0x1ec] sm:$0xf]
        %v400 = vld [vmem:[%s1 + $0x1f0] sm:$0xf]
        %v401 = vld [vmem:[%s1 + $0x1f4] sm:$0xf]
        %v402 = vld [vmem:[%s1 + $0x1f8] sm:$0xf]
        %v403 = vld [vmem:[%s1 + $0x1fc] sm:$0xf]
        %v404 = vld [vmem:[%s1 + $0x200] sm:$0xf]
        %v405 = vld [vmem:[%s1 + $0x204] sm:$0xf]
        %v406 = vld [vmem:[%s1 + $0x208] sm:$0xf]
        %v407 = vld [vmem:[%s1 + $0x20c] sm:$0xf]
        %v408 = vld [vmem:[%s1 + $0x210] sm:$0xf]
        %v409 = vld [vmem:[%s1 + $0x214] sm:$0xf]
        %v410 = vld [vmem:[%s1 + $0x218] sm:$0xf]
        %v411 = vld [vmem:[%s1 + $0x21c] sm:$0xf]
        %v412 = vld [vmem:[%s1 + $0x220] sm:$0xf]
        %v413 = vld [vmem:[%s1 + $0x224] sm:$0xf]
        %v414 = vld [vmem:[%s1 + $0x228] sm:$0xf]
        %v415 = vld [vmem:[%s1 + $0x22c] sm:$0xf]
        %v416 = vld [vmem:[%s1 + $0x230] sm:$0xf]
        %v417 = vld [vmem:[%s1 + $0x234] sm:$0xf]
        %v418 = vld [vmem:[%s1 + $0x238] sm:$0xf]
        %v419 = vld [vmem:[%s1 + $0x23c] sm:$0xf]
        %v420 = vld [vmem:[%s1 + $0x240] sm:$0xf]
        %v421 = vld [vmem:[%s1 + $0x244] sm:$0xf]
        %v422 = vld [vmem:[%s1 + $0x248] sm:$0xf]
        %v423 = vld [vmem:[%s1 + $0x24c] sm:$0xf]
        %v424 = vld [vmem:[%s1 + $0x250] sm:$0xf]
        %v425 = vld [vmem:[%s1 + $0x254] sm:$0xf]
        %v426 = vld [vmem:[%s1 + $0x258] sm:$0xf]
        %v427 = vld [vmem:[%s1 + $0x25c] sm:$0xf]
        %v428 = vld [vmem:[%s1 + $0x260] sm:$0xf]
        %v429 = vld [vmem:[%s1 + $0x264] sm:$0xf]
        %v430 = vld [vmem:[%s1 + $0x268] sm:$0xf]
        %v431 = vld [vmem:[%s1 + $0x26c] sm:$0xf]
        %v432 = vld [vmem:[%s1 + $0x270] sm:$0xf]
        %v433 = vld [vmem:[%s1 + $0x274] sm:$0xf]
        %v434 = vld [vmem:[%s1 + $0x278] sm:$0xf]
        %v435 = vld [vmem:[%s1 + $0x27c] sm:$0xf]
        %v436 = vld [vmem:[%s1 + $0x280] sm:$0xf]
        %v437 = vld [vmem:[%s1 + $0x284] sm:$0xf]
        %v438 = vld [vmem:[%s1 + $0x288] sm:$0xf]
        %v439 = vld [vmem:[%s1 + $0x28c] sm:$0xf]
        %v440 = vld [vmem:[%s1 + $0x290] sm:$0xf]
        %v441 = vld [vmem:[%s1 + $0x294] sm:$0xf]
        %v442 = vld [vmem:[%s1 + $0x298] sm:$0xf]
        %v443 = vld [vmem:[%s1 + $0x29c] sm:$0xf]
        %v444 = vld [vmem:[%s1 + $0x2a0] sm:$0xf]
        %v445 = vld [vmem:[%s1 + $0x2a4] sm:$0xf]
        %v446 = vld [vmem:[%s1 + $0x2a8] sm:$0xf]
        %v447 = vld [vmem:[%s1 + $0x2ac] sm:$0xf]
        %v448 = vld [vmem:[%s1 + $0x2b0] sm:$0xf]
        %v449 = vld [vmem:[%s1 + $0x2b4] sm:$0xf]
        %v450 = vld [vmem:[%s1 + $0x2b8] sm:$0xf]
        %v451 = vld [vmem:[%s1 + $0x2bc] sm:$0xf]
        %v452 = vld [vmem:[%s1 + $0x2c0] sm:$0xf]
        %v453 = vld [vmem:[%s1 + $0x2c4] sm:$0xf]
        %v454 = vld [vmem:[%s1 + $0x2c8] sm:$0xf]
        %v455 = vld [vmem:[%s1 + $0x2cc] sm:$0xf]
        %v456 = vld [vmem:[%s1 + $0x2d0] sm:$0xf]
        %v457 = vld [vmem:[%s1 + $0x2d4] sm:$0xf]
        %v458 = vld [vmem:[%s1 + $0x2d8] sm:$0xf]
        %v459 = vld [vmem:[%s1 + $0x2dc] sm:$0xf]
        %v460 = vld [vmem:[%s1 + $0x2e0] sm:$0xf]
        %v461 = vld [vmem:[%s1 + $0x2e4] sm:$0xf]
        %v462 = vld [vmem:[%s1 + $0x2e8] sm:$0xf]
        %v463 = vld [vmem:[%s1 + $0x2ec] sm:$0xf]
        %v464 = vld [vmem:[%s1 + $0x2f0] sm:$0xf]
        %v465 = vld [vmem:[%s1 + $0x2f4] sm:$0xf]
        %v466 = vld [vmem:[%s1 + $0x2f8] sm:$0xf]
        %v467 = vld [vmem:[%s1 + $0x2fc] sm:$0xf]
        %v468 = vld [vmem:[%s1 + $0x300] sm:$0xf]
        %v469 = vld [vmem:[%s1 + $0x304] sm:$0xf]
        %v470 = vld [vmem:[%s1 + $0x308] sm:$0xf]
        %v471 = vld [vmem:[%s1 + $0x30c] sm:$0xf]
        %v472 = vld [vmem:[%s1 + $0x310] sm:$0xf]
        %v473 = vld [vmem:[%s1 + $0x314] sm:$0xf]
        %v474 = vld [vmem:[%s1 + $0x318] sm:$0xf]
        %v475 = vld [vmem:[%s1 + $0x31c] sm:$0xf]
        %v476 = vld [vmem:[%s1 + $0x320] sm:$0xf]
        %v477 = vld [vmem:[%s1 + $0x324] sm:$0xf]
        %v478 = vld [vmem:[%s1 + $0x328] sm:$0xf]
        %v479 = vld [vmem:[%s1 + $0x32c] sm:$0xf]
        %v480 = vld [vmem:[%s1 + $0x330] sm:$0xf]
        %v481 = vld [vmem:[%s1 + $0x334] sm:$0xf]
        %v482 = vld [vmem:[%s1 + $0x338] sm:$0xf]
        %v483 = vld [vmem:[%s1 + $0x33c] sm:$0xf]
        %v484 = vld [vmem:[%s2] sm:$0x1]
        %v487 = vcombine.high %v274, %v274
        %v489 = vunpack.c.l.s4 1966171168
        %v490 = vunpack.c.0.s8 %v489
        %v491 = vlaneseq
        %v492 = vshrl.u32 %v491, 7
        %v493 = vsub.s32 %v490, %v492
        %v494 = vrot.slane %v274, %v493
        %v496 = vunpack.c.l.s4 1966171168
        %v497 = vunpack.c.0.s8 %v496
        %v498 = vlaneseq
        %v499 = vshrl.u32 %v498, 7
        %v500 = vsub.s32 %v497, %v499
        %v501 = vrot.slane %v487, %v500
        %v502 = vcombine.high %v494, %v494
        %v503 = vcombine.high %v501, %v501
        %v505 = vunpack.c.l.s4 1966171168
        %v506 = vunpack.c.0.s8 %v505
        %v507 = vlaneseq
        %v508 = vshrl.u32 %v507, 7
        %v509 = vsub.s32 %v506, %v508
        %v510 = vrot.slane %v494, %v509
        %v512 = vunpack.c.l.s4 1966171168
        %v513 = vunpack.c.0.s8 %v512
        %v514 = vlaneseq
        %v515 = vshrl.u32 %v514, 7
        %v516 = vsub.s32 %v513, %v515
        %v517 = vrot.slane %v501, %v516
        %v519 = vunpack.c.l.s4 1966171168
        %v520 = vunpack.c.0.s8 %v519
        %v521 = vlaneseq
        %v522 = vshrl.u32 %v521, 7
        %v523 = vsub.s32 %v520, %v522
        %v524 = vrot.slane %v502, %v523
        %v526 = vunpack.c.l.s4 1966171168
        %v527 = vunpack.c.0.s8 %v526
        %v528 = vlaneseq
        %v529 = vshrl.u32 %v528, 7
        %v530 = vsub.s32 %v527, %v529
        %v531 = vrot.slane %v503, %v530
        %v532 = vcombine.high %v510, %v510
        %v533 = vcombine.high %v517, %v517
        %v534 = vcombine.high %v524, %v524
        %v535 = vcombine.high %v531, %v531
        %v536 = vcombine.high %v275, %v275
        %v538 = vunpack.c.l.s4 1966171168
        %v539 = vunpack.c.0.s8 %v538
        %v540 = vlaneseq
        %v541 = vshrl.u32 %v540, 7
        %v542 = vsub.s32 %v539, %v541
        %v543 = vrot.slane %v275, %v542
        %v545 = vunpack.c.l.s4 1966171168
        %v546 = vunpack.c.0.s8 %v545
        %v547 = vlaneseq
        %v548 = vshrl.u32 %v547, 7
        %v549 = vsub.s32 %v546, %v548
        %v550 = vrot.slane %v536, %v549
        %v551 = vcombine.high %v543, %v543
        %v553 = vunpack.c.l.s4 1966171168
        %v554 = vunpack.c.0.s8 %v553
        %v555 = vlaneseq
        %v556 = vshrl.u32 %v555, 7
        %v557 = vsub.s32 %v554, %v556
        %v558 = vrot.slane %v543, %v557
        %v560 = vunpack.c.l.s4 1966171168
        %v561 = vunpack.c.0.s8 %v560
        %v562 = vlaneseq
        %v563 = vshrl.u32 %v562, 7
        %v564 = vsub.s32 %v561, %v563
        %v565 = vrot.slane %v550, %v564
        %v567 = vunpack.c.l.s4 1966171168
        %v568 = vunpack.c.0.s8 %v567
        %v569 = vlaneseq
        %v570 = vshrl.u32 %v569, 7
        %v571 = vsub.s32 %v568, %v570
        %v572 = vrot.slane %v551, %v571
        %v573 = vcombine.high %v558, %v558
        %v574 = vcombine.high %v572, %v572
        %v796 = vunpack.c.l.b16 %v276
        %v797 = vunpack.c.l.b16 %v277
        %v798 = vunpack.c.l.b16 %v278
        %v799 = vunpack.c.l.b16 %v279
        %v800 = vunpack.c.l.b16 %v280
        %v801 = vunpack.c.l.b16 %v281
        %v802 = vunpack.c.l.b16 %v282
        %v803 = vunpack.c.l.b16 %v283
        %v804 = vunpack.c.l.b16 %v284
        %v805 = vunpack.c.l.b16 %v285
        %v806 = vunpack.c.l.b16 %v286
        %v807 = vunpack.c.l.b16 %v287
        %v808 = vunpack.c.l.b16 %v288
        %v809 = vunpack.c.l.b16 %v289
        %v810 = vunpack.c.l.b16 %v290
        %v811 = vunpack.c.l.b16 %v291
        %v812 = vunpack.c.l.b16 %v292
        %v813 = vunpack.c.l.b16 %v293
        %v814 = vunpack.c.l.b16 %v294
        %v815 = vunpack.c.l.b16 %v295
        %v816 = vunpack.c.l.b16 %v296
        %v817 = vunpack.c.l.b16 %v297
        %v818 = vunpack.c.l.b16 %v298
        %v819 = vunpack.c.l.b16 %v299
        %v820 = vunpack.c.l.b16 %v300
        %v821 = vunpack.c.l.b16 %v301
        %v822 = vunpack.c.l.b16 %v302
        %v823 = vunpack.c.l.b16 %v303
        %v824 = vunpack.c.l.b16 %v304
        %v825 = vunpack.c.l.b16 %v305
        %v826 = vunpack.c.l.b16 %v306
        %v827 = vunpack.c.l.b16 %v307
        %v828 = vunpack.c.l.b16 %v308
        %v829 = vunpack.c.l.b16 %v309
        %v830 = vunpack.c.l.b16 %v310
        %v831 = vunpack.c.l.b16 %v311
        %v832 = vunpack.c.l.b16 %v312
        %v833 = vunpack.c.l.b16 %v313
        %v834 = vunpack.c.l.b16 %v314
        %v835 = vunpack.c.l.b16 %v315
        %v836 = vunpack.c.l.b16 %v316
        %v837 = vunpack.c.l.b16 %v317
        %v838 = vunpack.c.l.b16 %v318
        %v839 = vunpack.c.l.b16 %v319
        %v840 = vunpack.c.l.b16 %v320
        %v841 = vunpack.c.l.b16 %v321
        %v842 = vunpack.c.l.b16 %v322
        %v843 = vunpack.c.l.b16 %v323
        %v844 = vunpack.c.l.b16 %v324
        %v845 = vunpack.c.l.b16 %v325
        %v846 = vunpack.c.l.b16 %v326
        %v847 = vunpack.c.l.b16 %v327
        %v848 = vunpack.c.l.b16 %v328
        %v849 = vunpack.c.l.b16 %v329
        %v850 = vunpack.c.l.b16 %v330
        %v851 = vunpack.c.l.b16 %v331
        %v852 = vunpack.c.l.b16 %v332
        %v853 = vunpack.c.l.b16 %v333
        %v854 = vunpack.c.l.b16 %v334
        %v855 = vunpack.c.l.b16 %v335
        %v856 = vunpack.c.l.b16 %v336
        %v857 = vunpack.c.l.b16 %v337
        %v858 = vunpack.c.l.b16 %v338
        %v859 = vunpack.c.l.b16 %v339
        %v860 = vunpack.c.l.b16 %v340
        %v861 = vunpack.c.l.b16 %v341
        %v862 = vunpack.c.l.b16 %v342
        %v863 = vunpack.c.l.b16 %v343
        %v864 = vunpack.c.l.b16 %v344
        %v865 = vunpack.c.l.b16 %v345
        %v866 = vunpack.c.l.b16 %v346
        %v867 = vunpack.c.l.b16 %v347
        %v868 = vunpack.c.l.b16 %v348
        %v869 = vunpack.c.l.b16 %v349
        %v870 = vunpack.c.l.b16 %v350
        %v871 = vunpack.c.l.b16 %v351
        %v872 = vunpack.c.l.b16 %v352
        %v873 = vunpack.c.l.b16 %v353
        %v874 = vunpack.c.l.b16 %v354
        %v875 = vunpack.c.l.b16 %v355
        %v876 = vunpack.c.l.b16 %v356
        %v877 = vunpack.c.l.b16 %v357
        %v878 = vunpack.c.l.b16 %v358
        %v879 = vunpack.c.l.b16 %v359
        %v880 = vunpack.c.l.b16 %v360
        %v881 = vunpack.c.l.b16 %v361
        %v882 = vunpack.c.l.b16 %v362
        %v883 = vunpack.c.l.b16 %v363
        %v884 = vunpack.c.l.b16 %v364
        %v885 = vunpack.c.l.b16 %v365
        %v886 = vunpack.c.l.b16 %v366
        %v887 = vunpack.c.l.b16 %v367
        %v888 = vunpack.c.l.b16 %v368
        %v889 = vunpack.c.l.b16 %v369
        %v890 = vunpack.c.l.b16 %v370
        %v891 = vunpack.c.l.b16 %v371
        %v892 = vunpack.c.l.b16 %v372
        %v893 = vunpack.c.l.b16 %v373
        %v894 = vunpack.c.l.b16 %v374
        %v895 = vunpack.c.l.b16 %v375
        %v896 = vunpack.c.l.b16 %v376
        %v897 = vunpack.c.l.b16 %v377
        %v898 = vunpack.c.l.b16 %v378
        %v899 = vunpack.c.l.b16 %v379
        %v900 = vunpack.c.l.b16 %v380
        %v901 = vunpack.c.l.b16 %v381
        %v902 = vunpack.c.l.b16 %v382
        %v903 = vunpack.c.l.b16 %v383
        %v904 = vunpack.c.l.b16 %v384
        %v905 = vunpack.c.l.b16 %v385
        %v906 = vunpack.c.l.b16 %v386
        %v907 = vunpack.c.l.b16 %v387
        %v908 = vunpack.c.l.b16 %v388
        %v909 = vunpack.c.l.b16 %v389
        %v910 = vunpack.c.l.b16 %v390
        %v911 = vunpack.c.l.b16 %v391
        %v912 = vunpack.c.l.b16 %v392
        %v913 = vunpack.c.l.b16 %v393
        %v914 = vunpack.c.l.b16 %v394
        %v915 = vunpack.c.l.b16 %v395
        %v916 = vunpack.c.l.b16 %v396
        %v917 = vunpack.c.l.b16 %v397
        %v918 = vunpack.c.l.b16 %v398
        %v919 = vunpack.c.l.b16 %v399
        %v920 = vunpack.c.l.b16 %v400
        %v921 = vunpack.c.l.b16 %v401
        %v922 = vunpack.c.l.b16 %v402
        %v923 = vunpack.c.l.b16 %v403
        %v924 = vunpack.c.l.b16 %v404
        %v925 = vunpack.c.l.b16 %v405
        %v926 = vunpack.c.l.b16 %v406
        %v927 = vunpack.c.l.b16 %v407
        %v928 = vunpack.c.l.b16 %v408
        %v929 = vunpack.c.l.b16 %v409
        %v930 = vunpack.c.l.b16 %v410
        %v931 = vunpack.c.l.b16 %v411
        %v932 = vunpack.c.l.b16 %v412
        %v933 = vunpack.c.l.b16 %v413
        %v934 = vunpack.c.l.b16 %v414
        %v935 = vunpack.c.l.b16 %v415
        %v936 = vunpack.c.l.b16 %v416
        %v937 = vunpack.c.l.b16 %v417
        %v938 = vunpack.c.l.b16 %v418
        %v939 = vunpack.c.l.b16 %v419
        %v940 = vunpack.c.l.b16 %v420
        %v941 = vunpack.c.l.b16 %v421
        %v942 = vunpack.c.l.b16 %v422
        %v943 = vunpack.c.l.b16 %v423
        %v944 = vunpack.c.l.b16 %v424
        %v945 = vunpack.c.l.b16 %v425
        %v946 = vunpack.c.l.b16 %v426
        %v947 = vunpack.c.l.b16 %v427
        %v948 = vunpack.c.l.b16 %v428
        %v949 = vunpack.c.l.b16 %v429
        %v950 = vunpack.c.l.b16 %v430
        %v951 = vunpack.c.l.b16 %v431
        %v952 = vunpack.c.l.b16 %v432
        %v953 = vunpack.c.l.b16 %v433
        %v954 = vunpack.c.l.b16 %v434
        %v955 = vunpack.c.l.b16 %v435
        %v956 = vunpack.c.l.b16 %v436
        %v957 = vunpack.c.l.b16 %v437
        %v958 = vunpack.c.l.b16 %v438
        %v959 = vunpack.c.l.b16 %v439
        %v960 = vunpack.c.l.b16 %v440
        %v961 = vunpack.c.l.b16 %v441
        %v962 = vunpack.c.l.b16 %v442
        %v963 = vunpack.c.l.b16 %v443
        %v964 = vunpack.c.l.b16 %v444
        %v965 = vunpack.c.l.b16 %v445
        %v966 = vunpack.c.l.b16 %v446
        %v967 = vunpack.c.l.b16 %v447
        %v968 = vunpack.c.l.b16 %v448
        %v969 = vunpack.c.l.b16 %v449
        %v970 = vunpack.c.l.b16 %v450
        %v971 = vunpack.c.l.b16 %v451
        %v972 = vunpack.c.l.b16 %v452
        %v973 = vunpack.c.l.b16 %v453
        %v974 = vunpack.c.l.b16 %v454
        %v975 = vunpack.c.l.b16 %v455
        %v976 = vunpack.c.l.b16 %v456
        %v977 = vunpack.c.l.b16 %v457
        %v978 = vunpack.c.l.b16 %v458
        %v979 = vunpack.c.l.b16 %v459
        %v980 = vunpack.c.l.b16 %v460
        %v981 = vunpack.c.l.b16 %v461
        %v982 = vunpack.c.l.b16 %v462
        %v983 = vunpack.c.l.b16 %v463
        %v984 = vunpack.c.l.b16 %v464
        %v985 = vunpack.c.l.b16 %v465
        %v986 = vunpack.c.l.b16 %v466
        %v987 = vunpack.c.l.b16 %v467
        %v988 = vunpack.c.l.b16 %v468
        %v989 = vunpack.c.l.b16 %v469
        %v990 = vunpack.c.l.b16 %v470
        %v991 = vunpack.c.l.b16 %v471
        %v992 = vunpack.c.l.b16 %v472
        %v993 = vunpack.c.l.b16 %v473
        %v994 = vunpack.c.l.b16 %v474
        %v995 = vunpack.c.l.b16 %v475
        %v996 = vunpack.c.l.b16 %v476
        %v997 = vunpack.c.l.b16 %v477
        %v998 = vunpack.c.l.b16 %v478
        %v999 = vunpack.c.l.b16 %v479
        %v1000 = vunpack.c.l.b16 %v480
        %v1001 = vunpack.c.l.b16 %v481
        %v1002 = vunpack.c.l.b16 %v482
        %v1003 = vunpack.c.l.b16 %v483
        %v1004 = vpack.c.b16 %v797, %v796
        %v1005 = vpack.c.b16 %v799, %v798
        %v1006 = vpack.c.b16 %v801, %v800
        %v1007 = vpack.c.b16 %v803, %v802
        %v1008 = vpack.c.b16 %v805, %v804
        %v1009 = vpack.c.b16 %v807, %v806
        %v1010 = vpack.c.b16 %v809, %v808
        %v1011 = vpack.c.b16 %v811, %v810
        %v1012 = vpack.c.b16 %v813, %v812
        %v1013 = vpack.c.b16 %v815, %v814
        %v1014 = vpack.c.b16 %v817, %v816
        %v1015 = vpack.c.b16 %v819, %v818
        %v1016 = vpack.c.b16 %v821, %v820
        %v1017 = vpack.c.b16 %v823, %v822
        %v1018 = vpack.c.b16 %v825, %v824
        %v1019 = vpack.c.b16 %v827, %v826
        %v1020 = vpack.c.b16 %v829, %v828
        %v1021 = vpack.c.b16 %v831, %v830
        %v1022 = vpack.c.b16 %v833, %v832
        %v1023 = vpack.c.b16 %v835, %v834
        %v1024 = vpack.c.b16 %v837, %v836
        %v1025 = vpack.c.b16 %v839, %v838
        %v1026 = vpack.c.b16 %v841, %v840
        %v1027 = vpack.c.b16 %v843, %v842
        %v1028 = vpack.c.b16 %v845, %v844
        %v1029 = vpack.c.b16 %v847, %v846
        %v1030 = vpack.c.b16 %v849, %v848
        %v1031 = vpack.c.b16 %v851, %v850
        %v1032 = vpack.c.b16 %v853, %v852
        %v1033 = vpack.c.b16 %v855, %v854
        %v1034 = vpack.c.b16 %v857, %v856
        %v1035 = vpack.c.b16 %v859, %v858
        %v1036 = vpack.c.b16 %v861, %v860
        %v1037 = vpack.c.b16 %v863, %v862
        %v1038 = vpack.c.b16 %v865, %v864
        %v1039 = vpack.c.b16 %v867, %v866
        %v1040 = vpack.c.b16 %v869, %v868
        %v1041 = vpack.c.b16 %v871, %v870
        %v1042 = vpack.c.b16 %v873, %v872
        %v1043 = vpack.c.b16 %v875, %v874
        %v1044 = vpack.c.b16 %v877, %v876
        %v1045 = vpack.c.b16 %v879, %v878
        %v1046 = vpack.c.b16 %v881, %v880
        %v1047 = vpack.c.b16 %v883, %v882
        %v1048 = vpack.c.b16 %v885, %v884
        %v1049 = vpack.c.b16 %v887, %v886
        %v1050 = vpack.c.b16 %v889, %v888
        %v1051 = vpack.c.b16 %v891, %v890
        %v1052 = vpack.c.b16 %v893, %v892
        %v1053 = vpack.c.b16 %v895, %v894
        %v1054 = vpack.c.b16 %v897, %v896
        %v1055 = vpack.c.b16 %v899, %v898
        %v1056 = vpack.c.b16 %v901, %v900
        %v1057 = vpack.c.b16 %v903, %v902
        %v1058 = vpack.c.b16 %v905, %v904
        %v1059 = vpack.c.b16 %v907, %v906
        %v1060 = vpack.c.b16 %v909, %v908
        %v1061 = vpack.c.b16 %v911, %v910
        %v1062 = vpack.c.b16 %v913, %v912
        %v1063 = vpack.c.b16 %v915, %v914
        %v1064 = vpack.c.b16 %v917, %v916
        %v1065 = vpack.c.b16 %v919, %v918
        %v1066 = vpack.c.b16 %v921, %v920
        %v1067 = vpack.c.b16 %v923, %v922
        %v1068 = vpack.c.b16 %v925, %v924
        %v1069 = vpack.c.b16 %v927, %v926
        %v1070 = vpack.c.b16 %v929, %v928
        %v1071 = vpack.c.b16 %v931, %v930
        %v1072 = vpack.c.b16 %v933, %v932
        %v1073 = vpack.c.b16 %v935, %v934
        %v1074 = vpack.c.b16 %v937, %v936
        %v1075 = vpack.c.b16 %v939, %v938
        %v1076 = vpack.c.b16 %v941, %v940
        %v1077 = vpack.c.b16 %v943, %v942
        %v1078 = vpack.c.b16 %v945, %v944
        %v1079 = vpack.c.b16 %v947, %v946
        %v1080 = vpack.c.b16 %v949, %v948
        %v1081 = vpack.c.b16 %v951, %v950
        %v1082 = vpack.c.b16 %v953, %v952
        %v1083 = vpack.c.b16 %v955, %v954
        %v1084 = vpack.c.b16 %v957, %v956
        %v1085 = vpack.c.b16 %v959, %v958
        %v1086 = vpack.c.b16 %v961, %v960
        %v1087 = vpack.c.b16 %v963, %v962
        %v1088 = vpack.c.b16 %v965, %v964
        %v1089 = vpack.c.b16 %v967, %v966
        %v1090 = vpack.c.b16 %v969, %v968
        %v1091 = vpack.c.b16 %v971, %v970
        %v1092 = vpack.c.b16 %v973, %v972
        %v1093 = vpack.c.b16 %v975, %v974
        %v1094 = vpack.c.b16 %v977, %v976
        %v1095 = vpack.c.b16 %v979, %v978
        %v1096 = vpack.c.b16 %v981, %v980
        %v1097 = vpack.c.b16 %v983, %v982
        %v1098 = vpack.c.b16 %v985, %v984
        %v1099 = vpack.c.b16 %v987, %v986
        %v1100 = vpack.c.b16 %v989, %v988
        %v1101 = vpack.c.b16 %v991, %v990
        %v1102 = vpack.c.b16 %v993, %v992
        %v1103 = vpack.c.b16 %v995, %v994
        %v1104 = vpack.c.b16 %v997, %v996
        %v1105 = vpack.c.b16 %v999, %v998
        %v1106 = vpack.c.b16 %v1001, %v1000
        %v1107 = vpack.c.b16 %v1003, %v1002
        %1212 = vmatprep.subr.bf16.mxu0 0
        %1213 = vmatpush1.bf16.msra.mxu0 %v1004
        %1214 = vmatprep.subr.bf16.mxu0 0
        %1215 = vmatpush1.bf16.msra.mxu0 %v1005
        %1216 = vmatprep.subr.bf16.mxu0 0
        %1217 = vmatpush1.bf16.msra.mxu0 %v1006
        %1218 = vmatprep.subr.bf16.mxu0 0
        %1219 = vmatpush1.bf16.msra.mxu0 %v1007
        %1220 = vmatprep.subr.bf16.mxu0 0
        %1221 = vmatpush1.bf16.msra.mxu0 %v1008
        %1222 = vmatprep.subr.bf16.mxu0 0
        %1223 = vmatpush1.bf16.msra.mxu0 %v1009
        %1224 = vmatprep.subr.bf16.mxu0 0
        %1225 = vmatpush1.bf16.msra.mxu0 %v1010
        %1226 = vmatprep.subr.bf16.mxu0 0
        %1227 = vmatpush1.bf16.msra.mxu0 %v1011
        %1228 = vmatprep.subr.bf16.mxu0 0
        %1229 = vmatpush1.bf16.msra.mxu0 %v1012
        %1230 = vmatprep.subr.bf16.mxu0 0
        %1231 = vmatpush1.bf16.msra.mxu0 %v1013
        %1232 = vmatprep.subr.bf16.mxu0 0
        %1233 = vmatpush1.bf16.msra.mxu0 %v1014
        %1234 = vmatprep.subr.bf16.mxu0 0
        %1235 = vmatpush1.bf16.msra.mxu0 %v1015
        %1236 = vmatprep.subr.bf16.mxu0 0
        %1237 = vmatpush1.bf16.msra.mxu0 %v1016
        %1238 = vmatprep.subr.bf16.mxu0 0
        %1239 = vmatpush1.bf16.msra.mxu0 %v1017
        %1240 = vmatprep.subr.bf16.mxu0 0
        %1241 = vmatpush1.bf16.msra.mxu0 %v1018
        %1242 = vmatprep.subr.bf16.mxu0 0
        %1243 = vmatpush1.bf16.msra.mxu0 %v1019
        %1244 = vmatprep.mubr.bf16.mxu0 %v524
        %1245 = vmatmul.mubr.bf16.gmra.mrb[0].mxu0 %v510
        %v1246 = vpop.f32.mrb[0].mxu0
        %v1247 = vadd.f32 %v484, %v1246
        %v1248 = vpop.f32.mrb[0].mxu0
        %v1249 = vpop.f32.mrb[0].mxu0
        %v1250 = vpop.f32.mrb[0].mxu0
        %1251 = vdwg.mxu0
        %1252 = vmatprep.subr.bf16.mxu0 0
        %1253 = vmatpush1.bf16.msra.mxu0 %v1020
        %1254 = vmatprep.subr.bf16.mxu0 0
        %1255 = vmatpush1.bf16.msra.mxu0 %v1021
        %1256 = vmatprep.subr.bf16.mxu0 0
        %1257 = vmatpush1.bf16.msra.mxu0 %v1022
        %1258 = vmatprep.subr.bf16.mxu0 0
        %1259 = vmatpush1.bf16.msra.mxu0 %v1023
        %1260 = vmatprep.subr.bf16.mxu0 0
        %1261 = vmatpush1.bf16.msra.mxu0 %v1024
        %1262 = vmatprep.subr.bf16.mxu0 0
        %1263 = vmatpush1.bf16.msra.mxu0 %v1025
        %1264 = vmatprep.subr.bf16.mxu0 0
        %1265 = vmatpush1.bf16.msra.mxu0 %v1026
        %1266 = vmatprep.subr.bf16.mxu0 0
        %1267 = vmatpush1.bf16.msra.mxu0 %v1027
        %1268 = vmatprep.subr.bf16.mxu0 0
        %1269 = vmatpush1.bf16.msra.mxu0 %v1028
        %1270 = vmatprep.subr.bf16.mxu0 0
        %1271 = vmatpush1.bf16.msra.mxu0 %v1029
        %1272 = vmatprep.subr.bf16.mxu0 0
        %1273 = vmatpush1.bf16.msra.mxu0 %v1030
        %1274 = vmatprep.subr.bf16.mxu0 0
        %1275 = vmatpush1.bf16.msra.mxu0 %v1031
        %1276 = vmatprep.subr.bf16.mxu0 0
        %1277 = vmatpush1.bf16.msra.mxu0 %v1032
        %1278 = vmatprep.subr.bf16.mxu0 0
        %1279 = vmatpush1.bf16.msra.mxu0 %v1033
        %1280 = vmatprep.subr.bf16.mxu0 0
        %1281 = vmatpush1.bf16.msra.mxu0 %v1034
        %1282 = vmatprep.subr.bf16.mxu0 0
        %1283 = vmatpush1.bf16.msra.mxu0 %v1035
        %1284 = vmatprep.mubr.bf16.mxu0 %v534
        %1285 = vmatmul.mubr.bf16.gmra.mrb[0].mxu0 %v532
        %v1286 = vpop.f32.mrb[0].mxu0
        %v1287 = vadd.f32 %v1247, %v1286
        %v1288 = vpop.f32.mrb[0].mxu0
        %v1289 = vpop.f32.mrb[0].mxu0
        %v1290 = vpop.f32.mrb[0].mxu0
        %1291 = vdwg.mxu0
        %1292 = vmatprep.subr.bf16.mxu0 0
        %1293 = vmatpush1.bf16.msra.mxu0 %v1036
        %1294 = vmatprep.subr.bf16.mxu0 0
        %1295 = vmatpush1.bf16.msra.mxu0 %v1037
        %1296 = vmatprep.subr.bf16.mxu0 0
        %1297 = vmatpush1.bf16.msra.mxu0 %v1038
        %1298 = vmatprep.subr.bf16.mxu0 0
        %1299 = vmatpush1.bf16.msra.mxu0 %v1039
        %1300 = vmatprep.subr.bf16.mxu0 0
        %1301 = vmatpush1.bf16.msra.mxu0 %v1040
        %1302 = vmatprep.subr.bf16.mxu0 0
        %1303 = vmatpush1.bf16.msra.mxu0 %v1041
        %1304 = vmatprep.subr.bf16.mxu0 0
        %1305 = vmatpush1.bf16.msra.mxu0 %v1042
        %1306 = vmatprep.subr.bf16.mxu0 0
        %1307 = vmatpush1.bf16.msra.mxu0 %v1043
        %1308 = vmatprep.subr.bf16.mxu0 0
        %1309 = vmatpush1.bf16.msra.mxu0 %v1044
        %1310 = vmatprep.subr.bf16.mxu0 0
        %1311 = vmatpush1.bf16.msra.mxu0 %v1045
        %1312 = vmatprep.subr.bf16.mxu0 0
        %1313 = vmatpush1.bf16.msra.mxu0 %v1046
        %1314 = vmatprep.subr.bf16.mxu0 0
        %1315 = vmatpush1.bf16.msra.mxu0 %v1047
        %1316 = vmatprep.subr.bf16.mxu0 0
        %1317 = vmatpush1.bf16.msra.mxu0 %v1048
        %1318 = vmatprep.subr.bf16.mxu0 0
        %1319 = vmatpush1.bf16.msra.mxu0 %v1049
        %1320 = vmatprep.subr.bf16.mxu0 0
        %1321 = vmatpush1.bf16.msra.mxu0 %v1050
        %1322 = vmatprep.subr.bf16.mxu0 0
        %1323 = vmatpush1.bf16.msra.mxu0 %v1051
        %1324 = vmatprep.mubr.bf16.mxu0 %v531
        %1325 = vmatmul.mubr.bf16.gmra.mrb[0].mxu0 %v517
        %v1326 = vpop.f32.mrb[0].mxu0
        %v1327 = vadd.f32 %v1287, %v1326
        %v1328 = vpop.f32.mrb[0].mxu0
        %v1329 = vpop.f32.mrb[0].mxu0
        %v1330 = vpop.f32.mrb[0].mxu0
        %1331 = vdwg.mxu0
        %1332 = vmatprep.subr.bf16.mxu0 0
        %1333 = vmatpush1.bf16.msra.mxu0 %v1052
        %1334 = vmatprep.subr.bf16.mxu0 0
        %1335 = vmatpush1.bf16.msra.mxu0 %v1053
        %1336 = vmatprep.subr.bf16.mxu0 0
        %1337 = vmatpush1.bf16.msra.mxu0 %v1054
        %1338 = vmatprep.subr.bf16.mxu0 0
        %1339 = vmatpush1.bf16.msra.mxu0 %v1055
        %1340 = vmatprep.subr.bf16.mxu0 0
        %1341 = vmatpush1.bf16.msra.mxu0 %v1056
        %1342 = vmatprep.subr.bf16.mxu0 0
        %1343 = vmatpush1.bf16.msra.mxu0 %v1057
        %1344 = vmatprep.subr.bf16.mxu0 0
        %1345 = vmatpush1.bf16.msra.mxu0 %v1058
        %1346 = vmatprep.subr.bf16.mxu0 0
        %1347 = vmatpush1.bf16.msra.mxu0 %v1059
        %1348 = vmatprep.subr.bf16.mxu0 0
        %1349 = vmatpush1.bf16.msra.mxu0 %v1060
        %1350 = vmatprep.subr.bf16.mxu0 0
        %1351 = vmatpush1.bf16.msra.mxu0 %v1061
        %1352 = vmatprep.subr.bf16.mxu0 0
        %1353 = vmatpush1.bf16.msra.mxu0 %v1062
        %1354 = vmatprep.subr.bf16.mxu0 0
        %1355 = vmatpush1.bf16.msra.mxu0 %v1063
        %1356 = vmatprep.subr.bf16.mxu0 0
        %1357 = vmatpush1.bf16.msra.mxu0 %v1064
        %1358 = vmatprep.subr.bf16.mxu0 0
        %1359 = vmatpush1.bf16.msra.mxu0 %v1065
        %1360 = vmatprep.subr.bf16.mxu0 0
        %1361 = vmatpush1.bf16.msra.mxu0 %v1066
        %1362 = vmatprep.subr.bf16.mxu0 0
        %1363 = vmatpush1.bf16.msra.mxu0 %v1067
        %1364 = vmatprep.mubr.bf16.mxu0 %v535
        %1365 = vmatmul.mubr.bf16.gmra.mrb[0].mxu0 %v533
        %v1366 = vpop.f32.mrb[0].mxu0
        %v1367 = vadd.f32 %v1327, %v1366
        %v1368 = vpop.f32.mrb[0].mxu0
        %v1369 = vpop.f32.mrb[0].mxu0
        %v1370 = vpop.f32.mrb[0].mxu0
        %1371 = vdwg.mxu0
        %1372 = vmatprep.subr.bf16.mxu0 0
        %1373 = vmatpush1.bf16.msra.mxu0 %v1068
        %1374 = vmatprep.subr.bf16.mxu0 0
        %1375 = vmatpush1.bf16.msra.mxu0 %v1069
        %1376 = vmatprep.subr.bf16.mxu0 0
        %1377 = vmatpush1.bf16.msra.mxu0 %v1070
        %1378 = vmatprep.subr.bf16.mxu0 0
        %1379 = vmatpush1.bf16.msra.mxu0 %v1071
        %1380 = vmatprep.subr.bf16.mxu0 0
        %1381 = vmatpush1.bf16.msra.mxu0 %v1072
        %1382 = vmatprep.subr.bf16.mxu0 0
        %1383 = vmatpush1.bf16.msra.mxu0 %v1073
        %1384 = vmatprep.subr.bf16.mxu0 0
        %1385 = vmatpush1.bf16.msra.mxu0 %v1074
        %1386 = vmatprep.subr.bf16.mxu0 0
        %1387 = vmatpush1.bf16.msra.mxu0 %v1075
        %1388 = vmatprep.subr.bf16.mxu0 0
        %1389 = vmatpush1.bf16.msra.mxu0 %v1076
        %1390 = vmatprep.subr.bf16.mxu0 0
        %1391 = vmatpush1.bf16.msra.mxu0 %v1077
        %1392 = vmatprep.subr.bf16.mxu0 0
        %1393 = vmatpush1.bf16.msra.mxu0 %v1078
        %1394 = vmatprep.subr.bf16.mxu0 0
        %1395 = vmatpush1.bf16.msra.mxu0 %v1079
        %1396 = vmatprep.subr.bf16.mxu0 0
        %1397 = vmatpush1.bf16.msra.mxu0 %v1080
        %1398 = vmatprep.subr.bf16.mxu0 0
        %1399 = vmatpush1.bf16.msra.mxu0 %v1081
        %1400 = vmatprep.subr.bf16.mxu0 0
        %1401 = vmatpush1.bf16.msra.mxu0 %v1082
        %1402 = vmatprep.subr.bf16.mxu0 0
        %1403 = vmatpush1.bf16.msra.mxu0 %v1083
        %1404 = vmatprep.mubr.bf16.mxu0 %v572
        %1405 = vmatmul.mubr.bf16.gmra.mrb[0].mxu0 %v558
        %v1406 = vpop.f32.mrb[0].mxu0
        %v1407 = vadd.f32 %v1367, %v1406
        %v1408 = vpop.f32.mrb[0].mxu0
        %v1409 = vpop.f32.mrb[0].mxu0
        %v1410 = vpop.f32.mrb[0].mxu0
        %1411 = vdwg.mxu0
        %1412 = vmatprep.subr.bf16.mxu0 0
        %1413 = vmatpush1.bf16.msra.mxu0 %v1084
        %1414 = vmatprep.subr.bf16.mxu0 0
        %1415 = vmatpush1.bf16.msra.mxu0 %v1085
        %1416 = vmatprep.subr.bf16.mxu0 0
        %1417 = vmatpush1.bf16.msra.mxu0 %v1086
        %1418 = vmatprep.subr.bf16.mxu0 0
        %1419 = vmatpush1.bf16.msra.mxu0 %v1087
        %1420 = vmatprep.subr.bf16.mxu0 0
        %1421 = vmatpush1.bf16.msra.mxu0 %v1088
        %1422 = vmatprep.subr.bf16.mxu0 0
        %1423 = vmatpush1.bf16.msra.mxu0 %v1089
        %1424 = vmatprep.subr.bf16.mxu0 0
        %1425 = vmatpush1.bf16.msra.mxu0 %v1090
        %1426 = vmatprep.subr.bf16.mxu0 0
        %1427 = vmatpush1.bf16.msra.mxu0 %v1091
        %1428 = vmatprep.subr.bf16.mxu0 0
        %1429 = vmatpush1.bf16.msra.mxu0 %v1092
        %1430 = vmatprep.subr.bf16.mxu0 0
        %1431 = vmatpush1.bf16.msra.mxu0 %v1093
        %1432 = vmatprep.subr.bf16.mxu0 0
        %1433 = vmatpush1.bf16.msra.mxu0 %v1094
        %1434 = vmatprep.subr.bf16.mxu0 0
        %1435 = vmatpush1.bf16.msra.mxu0 %v1095
        %1436 = vmatprep.subr.bf16.mxu0 0
        %1437 = vmatpush1.bf16.msra.mxu0 %v1096
        %1438 = vmatprep.subr.bf16.mxu0 0
        %1439 = vmatpush1.bf16.msra.mxu0 %v1097
        %1440 = vmatprep.subr.bf16.mxu0 0
        %1441 = vmatpush1.bf16.msra.mxu0 %v1098
        %1442 = vmatprep.subr.bf16.mxu0 0
        %1443 = vmatpush1.bf16.msra.mxu0 %v1099
        %1444 = vmatprep.mubr.bf16.mxu0 %v574
        %1445 = vmatmul.mubr.bf16.gmra.mrb[0].mxu0 %v573
        %v1446 = vpop.f32.mrb[0].mxu0
        %v1447 = vadd.f32 %v1407, %v1446
        %v1448 = vpop.f32.mrb[0].mxu0
        %v1449 = vpop.f32.mrb[0].mxu0
        %v1450 = vpop.f32.mrb[0].mxu0
        %1451 = vdwg.mxu0
        %1452 = vmatprep.subr.bf16.mxu0 0
        %1453 = vmatpush1.bf16.msra.mxu0 %v1100
        %1454 = vmatprep.subr.bf16.mxu0 0
        %1455 = vmatpush1.bf16.msra.mxu0 %v1101
        %1456 = vmatprep.subr.bf16.mxu0 0
        %1457 = vmatpush1.bf16.msra.mxu0 %v1102
        %1458 = vmatprep.subr.bf16.mxu0 0
        %1459 = vmatpush1.bf16.msra.mxu0 %v1103
        %1460 = vmatprep.subr.bf16.mxu0 0
        %1461 = vmatpush1.bf16.msra.mxu0 %v1104
        %1462 = vmatprep.subr.bf16.mxu0 0
        %1463 = vmatpush1.bf16.msra.mxu0 %v1105
        %1464 = vmatprep.subr.bf16.mxu0 0
        %1465 = vmatpush1.bf16.msra.mxu0 %v1106
        %1466 = vmatprep.subr.bf16.mxu0 0
        %1467 = vmatpush1.bf16.msra.mxu0 %v1107
        %1468 = vmatprep.subr.bf16.mxu0 0
        %1469 = vmatpush1.bf16.msra.mxu0 0
        %1470 = vmatprep.subr.bf16.mxu0 0
        %1471 = vmatpush1.bf16.msra.mxu0 0
        %1472 = vmatprep.subr.bf16.mxu0 0
        %1473 = vmatpush1.bf16.msra.mxu0 0
        %1474 = vmatprep.subr.bf16.mxu0 0
        %1475 = vmatpush1.bf16.msra.mxu0 0
        %1476 = vmatprep.subr.bf16.mxu0 0
        %1477 = vmatpush1.bf16.msra.mxu0 0
        %1478 = vmatprep.subr.bf16.mxu0 0
        %1479 = vmatpush1.bf16.msra.mxu0 0
        %1480 = vmatprep.subr.bf16.mxu0 0
        %1481 = vmatpush1.bf16.msra.mxu0 0
        %1482 = vmatprep.subr.bf16.mxu0 0
        %1483 = vmatpush1.bf16.msra.mxu0 0
        %1484 = vmatprep.mubr.bf16.mxu0 0
        %1485 = vmatmul.mubr.bf16.gmra.mrb[0].mxu0 %v565
        %v1486 = vpop.f32.mrb[0].mxu0
        %v1487 = vadd.f32 %v1447, %v1486
        %v1488 = vpop.f32.mrb[0].mxu0
        %v1489 = vpop.f32.mrb[0].mxu0
        %v1490 = vpop.f32.mrb[0].mxu0
        %1491 = vdwg.mxu0
        %v1492 = vmax.f32 %v1487, 0.0
        %v1493 = vpack.c.bf16 %v1492, %v1492
        %v1494 = vld [vmem:[%s3] sm:$0xf]
        %v1495 = vld [vmem:[%s3 + $0x4] sm:$0xf]
        %v1496 = vld [vmem:[%s3 + $0x8] sm:$0xf]
        %v1497 = vld [vmem:[%s3 + $0xc] sm:$0xf]
        %v1498 = vld [vmem:[%s3 + $0x10] sm:$0xf]
        %v1499 = vld [vmem:[%s3 + $0x14] sm:$0xf]
        %v1500 = vld [vmem:[%s3 + $0x18] sm:$0xf]
        %v1501 = vld [vmem:[%s3 + $0x1c] sm:$0xf]
        %v1502 = vld [vmem:[%s3 + $0x20] sm:$0xf]
        %v1503 = vld [vmem:[%s3 + $0x24] sm:$0xf]
        %v1504 = vld [vmem:[%s3 + $0x28] sm:$0xf]
        %v1505 = vld [vmem:[%s3 + $0x2c] sm:$0xf]
        %v1506 = vld [vmem:[%s3 + $0x30] sm:$0xf]
        %v1507 = vld [vmem:[%s3 + $0x34] sm:$0xf]
        %v1508 = vld [vmem:[%s3 + $0x38] sm:$0xf]
        %v1509 = vld [vmem:[%s3 + $0x3c] sm:$0xf]
        %v1510 = vld [vmem:[%s4] sm:$0x1]
        %v1527 = vunpack.c.l.b16 %v1494
        %v1528 = vunpack.c.l.b16 %v1495
        %v1529 = vunpack.c.l.b16 %v1496
        %v1530 = vunpack.c.l.b16 %v1497
        %v1531 = vunpack.c.l.b16 %v1498
        %v1532 = vunpack.c.l.b16 %v1499
        %v1533 = vunpack.c.l.b16 %v1500
        %v1534 = vunpack.c.l.b16 %v1501
        %v1535 = vunpack.c.l.b16 %v1502
        %v1536 = vunpack.c.l.b16 %v1503
        %v1537 = vunpack.c.l.b16 %v1504
        %v1538 = vunpack.c.l.b16 %v1505
        %v1539 = vunpack.c.l.b16 %v1506
        %v1540 = vunpack.c.l.b16 %v1507
        %v1541 = vunpack.c.l.b16 %v1508
        %v1542 = vunpack.c.l.b16 %v1509
        %v1543 = vpack.c.b16 %v1528, %v1527
        %v1544 = vpack.c.b16 %v1530, %v1529
        %v1545 = vpack.c.b16 %v1532, %v1531
        %v1546 = vpack.c.b16 %v1534, %v1533
        %v1547 = vpack.c.b16 %v1536, %v1535
        %v1548 = vpack.c.b16 %v1538, %v1537
        %v1549 = vpack.c.b16 %v1540, %v1539
        %v1550 = vpack.c.b16 %v1542, %v1541
        %1559 = vmatprep.subr.bf16.mxu0 0
        %1560 = vmatpush1.bf16.msra.mxu0 %v1543
        %1561 = vmatprep.subr.bf16.mxu0 0
        %1562 = vmatpush1.bf16.msra.mxu0 %v1544
        %1563 = vmatprep.subr.bf16.mxu0 0
        %1564 = vmatpush1.bf16.msra.mxu0 %v1545
        %1565 = vmatprep.subr.bf16.mxu0 0
        %1566 = vmatpush1.bf16.msra.mxu0 %v1546
        %1567 = vmatprep.subr.bf16.mxu0 0
        %1568 = vmatpush1.bf16.msra.mxu0 %v1547
        %1569 = vmatprep.subr.bf16.mxu0 0
        %1570 = vmatpush1.bf16.msra.mxu0 %v1548
        %1571 = vmatprep.subr.bf16.mxu0 0
        %1572 = vmatpush1.bf16.msra.mxu0 %v1549
        %1573 = vmatprep.subr.bf16.mxu0 0
        %1574 = vmatpush1.bf16.msra.mxu0 %v1550
        %1575 = vmatprep.subr.bf16.mxu0 0
        %1576 = vmatpush1.bf16.msra.mxu0 0
        %1577 = vmatprep.subr.bf16.mxu0 0
        %1578 = vmatpush1.bf16.msra.mxu0 0
        %1579 = vmatprep.subr.bf16.mxu0 0
        %1580 = vmatpush1.bf16.msra.mxu0 0
        %1581 = vmatprep.subr.bf16.mxu0 0
        %1582 = vmatpush1.bf16.msra.mxu0 0
        %1583 = vmatprep.subr.bf16.mxu0 0
        %1584 = vmatpush1.bf16.msra.mxu0 0
        %1585 = vmatprep.subr.bf16.mxu0 0
        %1586 = vmatpush1.bf16.msra.mxu0 0
        %1587 = vmatprep.subr.bf16.mxu0 0
        %1588 = vmatpush1.bf16.msra.mxu0 0
        %1589 = vmatprep.subr.bf16.mxu0 0
        %1590 = vmatpush1.bf16.msra.mxu0 0
        %1591 = vmatprep.mubr.bf16.mxu0 0
        %1592 = vmatmul.mubr.bf16.gmra.mrb[0].mxu0 %v1493
        %v1593 = vpop.f32.mrb[0].mxu0
        %v1594 = vadd.f32 %v1510, %v1593
        %v1595 = vpop.f32.mrb[0].mxu0
        %v1596 = vpop.f32.mrb[0].mxu0
        %v1597 = vpop.f32.mrb[0].mxu0
        %1598 = vdwg.mxu0
        %v1599 = vmax.f32 %v1594, 0.0
        %v1600 = vpack.c.bf16 %v1599, %v1599
        %v1601 = vld [vmem:[%s5] sm:$0xf]
        %v1602 = vld [vmem:[%s5 + $0x4] sm:$0xf]
        %v1603 = vld [vmem:[%s5 + $0x8] sm:$0xf]
        %v1604 = vld [vmem:[%s5 + $0xc] sm:$0xf]
        %v1605 = vld [vmem:[%s5 + $0x10] sm:$0xf]
        %v1606 = vld [vmem:[%s5 + $0x14] sm:$0xf]
        %v1607 = vld [vmem:[%s5 + $0x18] sm:$0xf]
        %v1608 = vld [vmem:[%s5 + $0x1c] sm:$0xf]
        %v1609 = vld [vmem:[%s5 + $0x20] sm:$0xf]
        %v1610 = vld [vmem:[%s5 + $0x24] sm:$0xf]
        %v1611 = vld [vmem:[%s5 + $0x28] sm:$0xf]
        %v1612 = vld [vmem:[%s5 + $0x2c] sm:$0xf]
        %v1613 = vld [vmem:[%s5 + $0x30] sm:$0xf]
        %v1614 = vld [vmem:[%s5 + $0x34] sm:$0xf]
        %v1615 = vld [vmem:[%s5 + $0x38] sm:$0xf]
        %v1616 = vld [vmem:[%s5 + $0x3c] sm:$0xf]
        %v1617 = vld [vmem:[%s6] sm:$0x1]
        %v1634 = vunpack.c.l.b16 %v1601
        %v1635 = vunpack.c.l.b16 %v1602
        %v1636 = vunpack.c.l.b16 %v1603
        %v1637 = vunpack.c.l.b16 %v1604
        %v1638 = vunpack.c.l.b16 %v1605
        %v1639 = vunpack.c.l.b16 %v1606
        %v1640 = vunpack.c.l.b16 %v1607
        %v1641 = vunpack.c.l.b16 %v1608
        %v1642 = vunpack.c.l.b16 %v1609
        %v1643 = vunpack.c.l.b16 %v1610
        %v1644 = vunpack.c.l.b16 %v1611
        %v1645 = vunpack.c.l.b16 %v1612
        %v1646 = vunpack.c.l.b16 %v1613
        %v1647 = vunpack.c.l.b16 %v1614
        %v1648 = vunpack.c.l.b16 %v1615
        %v1649 = vunpack.c.l.b16 %v1616
        %v1650 = vpack.c.b16 %v1635, %v1634
        %v1651 = vpack.c.b16 %v1637, %v1636
        %v1652 = vpack.c.b16 %v1639, %v1638
        %v1653 = vpack.c.b16 %v1641, %v1640
        %v1654 = vpack.c.b16 %v1643, %v1642
        %v1655 = vpack.c.b16 %v1645, %v1644
        %v1656 = vpack.c.b16 %v1647, %v1646
        %v1657 = vpack.c.b16 %v1649, %v1648
        %1666 = vmatprep.subr.bf16.mxu0 0
        %1667 = vmatpush1.bf16.msra.mxu0 %v1650
        %1668 = vmatprep.subr.bf16.mxu0 0
        %1669 = vmatpush1.bf16.msra.mxu0 %v1651
        %1670 = vmatprep.subr.bf16.mxu0 0
        %1671 = vmatpush1.bf16.msra.mxu0 %v1652
        %1672 = vmatprep.subr.bf16.mxu0 0
        %1673 = vmatpush1.bf16.msra.mxu0 %v1653
        %1674 = vmatprep.subr.bf16.mxu0 0
        %1675 = vmatpush1.bf16.msra.mxu0 %v1654
        %1676 = vmatprep.subr.bf16.mxu0 0
        %1677 = vmatpush1.bf16.msra.mxu0 %v1655
        %1678 = vmatprep.subr.bf16.mxu0 0
        %1679 = vmatpush1.bf16.msra.mxu0 %v1656
        %1680 = vmatprep.subr.bf16.mxu0 0
        %1681 = vmatpush1.bf16.msra.mxu0 %v1657
        %1682 = vmatprep.subr.bf16.mxu0 0
        %1683 = vmatpush1.bf16.msra.mxu0 0
        %1684 = vmatprep.subr.bf16.mxu0 0
        %1685 = vmatpush1.bf16.msra.mxu0 0
        %1686 = vmatprep.subr.bf16.mxu0 0
        %1687 = vmatpush1.bf16.msra.mxu0 0
        %1688 = vmatprep.subr.bf16.mxu0 0
        %1689 = vmatpush1.bf16.msra.mxu0 0
        %1690 = vmatprep.subr.bf16.mxu0 0
        %1691 = vmatpush1.bf16.msra.mxu0 0
        %1692 = vmatprep.subr.bf16.mxu0 0
        %1693 = vmatpush1.bf16.msra.mxu0 0
        %1694 = vmatprep.subr.bf16.mxu0 0
        %1695 = vmatpush1.bf16.msra.mxu0 0
        %1696 = vmatprep.subr.bf16.mxu0 0
        %1697 = vmatpush1.bf16.msra.mxu0 0
        %1698 = vmatprep.mubr.bf16.mxu0 0
        %1699 = vmatmul.mubr.bf16.gmra.mrb[0].mxu0 %v1600
        %v1700 = vpop.f32.mrb[0].mxu0
        %v1701 = vadd.f32 %v1617, %v1700
        %v1702 = vpop.f32.mrb[0].mxu0
        %v1703 = vpop.f32.mrb[0].mxu0
        %v1704 = vpop.f32.mrb[0].mxu0
        %1705 = vdwg.mxu0
        %1706 = vst [vmem:[%s268] sm:$0x1] %v1701
        %s1707 = sand.u32 %s181, 1
        %s1708 = scalar_lea.sflag [#allocation3], %s1707
        %s1709 = sand.u32 %s181, 1
        %s1710 = scalar_lea.vmem [#allocation2], %s1709
        // Predicated region
        $region49: #{forward.3} parent=47 // pred_check
          %p1711 = pneg %p191
        $region50: #{forward.3} parent=47 // pred_check_branch
          %1713 = sbr.rel (%p1711) target = $region52
        $region51: #{forward.3} parent=47 // pred_region
          %s1715 = ssub.s32 16, 16
          %1716 = vsyncadd %s1708, %s1715
          %s1717 = smul.addr %s21, 16
          %s1718 = scalar_lea.hbm %s7, %s1717
          %s1720 = sshll.u32 %s1710, 4
          %s1721 = int_to_ptr.vmem [resolvable:$true] %s1720
          %1723 = dma.vmem_to_hbm [thread:$0]  %s1721, 16, %s1718, %s1708
        $region52: #{forward.3} parent=47 // pred_fallthru
          _
      $region48: #{forward.3} parent=5 // pred_fallthru
        _
      %p1724 = scmp.le.s32.totalorder 2, %s16
      // Predicated region
      $region53: #{forward.3} parent=5 // pred_check
        %p1725 = pneg %p1724
      $region54: #{forward.3} parent=5 // pred_check_branch
        %1727 = sbr.rel (%p1725) target = $region56
      $region55: #{forward.3} parent=5 // pred_region
        %s1728 = ssub.s32 %s16, 2
        // Predicated region
        $region57: #{forward.3} parent=55 // pred_check
          %p1729 = pneg %p197
        $region58: #{forward.3} parent=55 // pred_check_branch
          %1731 = sbr.rel (%p1729) target = $region60
        $region59: #{forward.3} parent=55 // pred_region
          %s1732 = sand.u32 %s182, 1
          %s1733 = scalar_lea.sflag [#allocation3], %s1732
          %s1734 = sand.u32 %s182, 1
          %s1735 = scalar_lea.vmem [#allocation2], %s1734
          %1736 = dma.done %s1733, 16
        $region60: #{forward.3} parent=55 // pred_fallthru
          _
      $region56: #{forward.3} parent=5 // pred_fallthru
        _
    $region6: #{forward.3} parent=1 // loop_footer
      %s20 = sadd.s32 1, %s16
    $region7: #{forward.3} parent=1 // loop_footer_branch
      %15 = sbr.rel target = $region3
    $region8: #{forward.3} parent=1 // loop_exit
      _
    %1737 = vsyncpa [#allocation3], 1
    %s1738 = scalar_lea.sflag [#allocation3], 1
    %1739 = vsyncpa %s1738, 1

// kernel: forward.2
$region0: #{forward.2}
  #allocation0 [shape = 'u32[]', space=smem, size = 0x4, offset = 0x4, fixed_abs, tag = 'smem constant byte address 0x4 - core index']
  #allocation1 [shape = 'u32[144,128]{1,0:T(1,128)}', space=vmem, size = 0x12000, scoped, tag = 'internal scratch']
  %s0 = inlined_call_operand.vmem [shape: f32[2,25,192], index: 0, kind: input, shape index: {}]
  %s1 = inlined_call_operand.vmem [shape: bf16[4,192,512], index: 1, kind: input, shape index: {}]
  %s2 = inlined_call_operand.vmem [shape: f32[1,128], index: 2, kind: input, shape index: {}]
  %s3 = inlined_call_operand.vmem [shape: bf16[4,128,512], index: 3, kind: input, shape index: {}]
  %s4 = inlined_call_operand.vmem [shape: f32[1,128], index: 4, kind: input, shape index: {}]
  %s5 = inlined_call_operand.vmem [shape: bf16[2,13,128], index: 5, kind: output, shape index: {}]
  %s6 = sld [smem:[#allocation0]]
  $region53: #{forward.2} parent=0
    _
  %s8 = ssub.s32 1, %s6
  %s9 = scalar_select 0, %s8, %s6
  loop: start=0, step=1, limit=4
  $region2: #{forward.2} parent=0 // loop_pre_header
    _
  $region3: #{forward.2} parent=0 // loop_header
    %s11 = sphi 0, %s15
    %p12 = scmp.ge.s32.totalorder %s11, 4
    %s21 = sphi 0, %s23
    %s24 = sphi 0, %s21
    %s25 = sphi 0, %s24
    %s41 = sphi 0, %s25
    %s45 = sphi 0, %s45
    %s47 = sphi 0, %s45
    %s48 = sphi 0, %s47
    %s62 = sphi 0, %s48
    %s66 = sphi 0, %s66
    %s68 = sphi 0, %s66
    %s69 = sphi 0, %s68
    %s83 = sphi 0, %s69
    %s87 = sphi 0, %s87
    %s89 = sphi 0, %s87
    %s90 = sphi 0, %s89
    %s104 = sphi 0, %s90
    %s108 = sphi 0, %s108
    %s110 = sphi 0, %s108
    %s111 = sphi 0, %s110
    %s125 = sphi 0, %s111
    %s131 = sphi 0, %s133
    %s134 = sphi 0, %s131
    %s135 = sphi 0, %s134
    %s151 = sphi 0, %s135
  $region4: #{forward.2} parent=0 // loop_header_branch
    %14 = sbr.rel (%p12) target = $region8
  $region5: #{forward.2} parent=0 // loop_body
    %s16 = ssub.s32 %s11, 1
    %s17 = ssub.s32 %s11, 2
    %s18 = sadd.s32 %s11, 1
    %s19 = ssub.s32 %s11, %s18
    %p20 = scmp.eq.s32.totalorder %s19, 0
    %s22 = sadd.s32 %s21, 1
    %s23 = scalar_select %p20, %s21, %s22
    %p26 = pneg %p20
    %p27 = scmp.eq.s32.totalorder %s11, 1
    %p28 = por %p26, %p27
    %p29 = scmp.ne.s32.totalorder %s21, %s24
    %p30 = scmp.eq.s32.totalorder %s11, 0
    %p31 = por %p29, %p30
    %p32 = scmp.ne.s32.totalorder %s21, %s24
    %p33 = scmp.eq.s32.totalorder %s16, 1
    %p34 = por %p32, %p33
    %p35 = scmp.ne.s32.totalorder %s24, %s25
    %p36 = scmp.eq.s32.totalorder %s16, 0
    %p37 = por %p35, %p36
    %p38 = scmp.ne.s32.totalorder %s24, %s25
    %p39 = scmp.eq.s32.totalorder %s17, 1
    %p40 = por %p38, %p39
    %p42 = scmp.ne.s32.totalorder %s25, %s41
    %p43 = scmp.eq.s32.totalorder %s17, 0
    %p44 = por %p42, %p43
    %s46 = sadd.s32 %s45, 1
    %p49 = scmp.eq.s32.totalorder %s11, 1
    %p50 = scmp.ne.s32.totalorder %s45, %s47
    %p51 = scmp.eq.s32.totalorder %s11, 0
    %p52 = por %p50, %p51
    %p53 = scmp.ne.s32.totalorder %s45, %s47
    %p54 = scmp.eq.s32.totalorder %s16, 1
    %p55 = por %p53, %p54
    %p56 = scmp.ne.s32.totalorder %s47, %s48
    %p57 = scmp.eq.s32.totalorder %s16, 0
    %p58 = por %p56, %p57
    %p59 = scmp.ne.s32.totalorder %s47, %s48
    %p60 = scmp.eq.s32.totalorder %s17, 1
    %p61 = por %p59, %p60
    %p63 = scmp.ne.s32.totalorder %s48, %s62
    %p64 = scmp.eq.s32.totalorder %s17, 0
    %p65 = por %p63, %p64
    %s67 = sadd.s32 %s66, 1
    %p70 = scmp.eq.s32.totalorder %s11, 1
    %p71 = scmp.ne.s32.totalorder %s66, %s68
    %p72 = scmp.eq.s32.totalorder %s11, 0
    %p73 = por %p71, %p72
    %p74 = scmp.ne.s32.totalorder %s66, %s68
    %p75 = scmp.eq.s32.totalorder %s16, 1
    %p76 = por %p74, %p75
    %p77 = scmp.ne.s32.totalorder %s68, %s69
    %p78 = scmp.eq.s32.totalorder %s16, 0
    %p79 = por %p77, %p78
    %p80 = scmp.ne.s32.totalorder %s68, %s69
    %p81 = scmp.eq.s32.totalorder %s17, 1
    %p82 = por %p80, %p81
    %p84 = scmp.ne.s32.totalorder %s69, %s83
    %p85 = scmp.eq.s32.totalorder %s17, 0
    %p86 = por %p84, %p85
    %s88 = sadd.s32 %s87, 1
    %p91 = scmp.eq.s32.totalorder %s11, 1
    %p92 = scmp.ne.s32.totalorder %s87, %s89
    %p93 = scmp.eq.s32.totalorder %s11, 0
    %p94 = por %p92, %p93
    %p95 = scmp.ne.s32.totalorder %s87, %s89
    %p96 = scmp.eq.s32.totalorder %s16, 1
    %p97 = por %p95, %p96
    %p98 = scmp.ne.s32.totalorder %s89, %s90
    %p99 = scmp.eq.s32.totalorder %s16, 0
    %p100 = por %p98, %p99
    %p101 = scmp.ne.s32.totalorder %s89, %s90
    %p102 = scmp.eq.s32.totalorder %s17, 1
    %p103 = por %p101, %p102
    %p105 = scmp.ne.s32.totalorder %s90, %s104
    %p106 = scmp.eq.s32.totalorder %s17, 0
    %p107 = por %p105, %p106
    %s109 = sadd.s32 %s108, 1
    %p112 = scmp.eq.s32.totalorder %s11, 1
    %p113 = scmp.ne.s32.totalorder %s108, %s110
    %p114 = scmp.eq.s32.totalorder %s11, 0
    %p115 = por %p113, %p114
    %p116 = scmp.ne.s32.totalorder %s108, %s110
    %p117 = scmp.eq.s32.totalorder %s16, 1
    %p118 = por %p116, %p117
    %p119 = scmp.ne.s32.totalorder %s110, %s111
    %p120 = scmp.eq.s32.totalorder %s16, 0
    %p121 = por %p119, %p120
    %p122 = scmp.ne.s32.totalorder %s110, %s111
    %p123 = scmp.eq.s32.totalorder %s17, 1
    %p124 = por %p122, %p123
    %p126 = scmp.ne.s32.totalorder %s111, %s125
    %p127 = scmp.eq.s32.totalorder %s17, 0
    %p128 = por %p126, %p127
    %s129 = ssub.s32 %s11, %s18
    %p130 = scmp.eq.s32.totalorder %s129, 0
    %s132 = sadd.s32 %s131, 1
    %s133 = scalar_select %p130, %s131, %s132
    %p136 = pneg %p130
    %p137 = scmp.eq.s32.totalorder %s11, 1
    %p138 = por %p136, %p137
    %p139 = scmp.ne.s32.totalorder %s131, %s134
    %p140 = scmp.eq.s32.totalorder %s11, 0
    %p141 = por %p139, %p140
    %p142 = scmp.ne.s32.totalorder %s131, %s134
    %p143 = scmp.eq.s32.totalorder %s16, 1
    %p144 = por %p142, %p143
    %p145 = scmp.ne.s32.totalorder %s134, %s135
    %p146 = scmp.eq.s32.totalorder %s16, 0
    %p147 = por %p145, %p146
    %p148 = scmp.ne.s32.totalorder %s134, %s135
    %p149 = scmp.eq.s32.totalorder %s17, 1
    %p150 = por %p148, %p149
    %p152 = scmp.ne.s32.totalorder %s135, %s151
    %p153 = scmp.eq.s32.totalorder %s17, 0
    %p154 = por %p152, %p153
    %p155 = scmp.le.s32.totalorder 1, %s11
    %p156 = scmp.lt.s32.totalorder %s11, 3
    %p157 = pnand %p155, %p156
    %p158 = pneg %p157
    // Predicated region
    $region9: #{forward.2} parent=5 // pred_check
      _
    $region10: #{forward.2} parent=5 // pred_check_branch
      %160 = sbr.rel (%p157) target = $region12
    $region11: #{forward.2} parent=5 // pred_region
      %s161 = ssub.s32 %s11, 1
      // Predicated region
      $region13: #{forward.2} parent=11 // pred_check
        %p162 = pneg %p58
      $region14: #{forward.2} parent=11 // pred_check_branch
        %164 = sbr.rel (%p162) target = $region16
      $region15: #{forward.2} parent=11 // pred_region
        _
      $region16: #{forward.2} parent=11 // pred_fallthru
        _
      // Predicated region
      $region17: #{forward.2} parent=11 // pred_check
        %p165 = pneg %p79
      $region18: #{forward.2} parent=11 // pred_check_branch
        %167 = sbr.rel (%p165) target = $region20
      $region19: #{forward.2} parent=11 // pred_region
        _
      $region20: #{forward.2} parent=11 // pred_fallthru
        _
      // Predicated region
      $region21: #{forward.2} parent=11 // pred_check
        %p168 = pneg %p100
      $region22: #{forward.2} parent=11 // pred_check_branch
        %170 = sbr.rel (%p168) target = $region24
      $region23: #{forward.2} parent=11 // pred_region
        _
      $region24: #{forward.2} parent=11 // pred_fallthru
        _
      // Predicated region
      $region25: #{forward.2} parent=11 // pred_check
        %p171 = pneg %p121
      $region26: #{forward.2} parent=11 // pred_check_branch
        %173 = sbr.rel (%p171) target = $region28
      $region27: #{forward.2} parent=11 // pred_region
        _
      $region28: #{forward.2} parent=11 // pred_fallthru
        _
    $region12: #{forward.2} parent=5 // pred_fallthru
      _
    %p174 = scmp.lt.s32.totalorder %s11, 2
    // Predicated region
    $region29: #{forward.2} parent=5 // pred_check
      %p175 = pneg %p174
    $region30: #{forward.2} parent=5 // pred_check_branch
      %177 = sbr.rel (%p175) target = $region32
    $region31: #{forward.2} parent=5 // pred_region
      // Predicated region
      $region33: #{forward.2} parent=31 // pred_check
        %p178 = pneg %p31
      $region34: #{forward.2} parent=31 // pred_check_branch
        %180 = sbr.rel (%p178) target = $region36
      $region35: #{forward.2} parent=31 // pred_region
        %p181 = scmp.lt.s32.totalorder %s11, 1
        %s182 = scalar_select %p181, %s11, 1
        %s183 = smul.addr %s182, 8
        %s184 = smul.addr %s183, 8
        %s185 = scalar_lea.vmem %s0, %s184
      $region36: #{forward.2} parent=31 // pred_fallthru
        _
    $region32: #{forward.2} parent=5 // pred_fallthru
      _
    %p186 = scmp.le.s32.totalorder 1, %s11
    %p187 = scmp.lt.s32.totalorder %s11, 3
    %p188 = pnand %p186, %p187
    %p189 = pneg %p188
    // Predicated region
    $region37: #{forward.2} parent=5 // pred_check
      _
    $region38: #{forward.2} parent=5 // pred_check_branch
      %191 = sbr.rel (%p188) target = $region40
    $region39: #{forward.2} parent=5 // pred_region
      %s192 = ssub.s32 %s11, 1
      %p193 = scmp.lt.s32.totalorder %s16, 1
      %s194 = scalar_select %p193, %s16, 1
      %s195 = smul.addr %s194, 8
      %s196 = smul.addr %s195, 8
      %s197 = scalar_lea.vmem %s0, %s196
      %p198 = pneg %p37
      %p199 = pneg %p34
      %p200 = pneg %p58
      %p201 = pneg %p55
      %p202 = pneg %p79
      %p203 = pneg %p76
      %p204 = pneg %p100
      %p205 = pneg %p97
      %p206 = pneg %p121
      %p207 = pneg %p118
      %p208 = pneg %p147
      %p209 = pneg %p144
      %p210 = scmp.lt.s32.totalorder %s16, 1
      %s211 = scalar_select %p210, %s16, 1
      %s212 = smul.addr %s211, 2
      %s213 = smul.addr %s212, 4
      %s214 = scalar_lea.vmem %s5, %s213
      %p215 = scmp.lt.s32.totalorder %s16, 1
      %s216 = scalar_select %p215, %s16, 1
      %s217 = smul.addr %s216, 8
      %s218 = smul.addr %s217, 8
      %s219 = scalar_lea.vmem %s0, %s218
      %p220 = scmp.lt.s32.totalorder %s16, 1
      %s221 = scalar_select %p220, %s16, 1
      %s222 = smul.addr %s221, 2
      %s223 = smul.addr %s222, 4
      %s224 = scalar_lea.vmem %s5, %s223
      %v226 = vld [vmem:[%s219] sm:$0xff]
      %v227 = vld [vmem:[%s219 + $0x8] sm:$0xff]
      %v228 = vld [vmem:[%s219 + $0x10] sm:$0xff]
      %v229 = vld [vmem:[%s219 + $0x18] sm:$0xff]
      %v230 = vld [vmem:[%s219 + $0x20] sm:$0xff]
      %v231 = vld [vmem:[%s219 + $0x28] sm:$0xff]
      %v232 = vld [vmem:[%s219 + $0x30] sm:$0x1]
      %v233 = vld [vmem:[%s219 + $0x38] sm:$0x1]
      %v234 = vpack.c.bf16 %v228, %v226
      %v235 = vpack.c.bf16 %v229, %v227
      %v236 = vpack.c.bf16 %v230, %v230
      %v237 = vpack.c.bf16 %v231, %v231
      %v238 = vld [vmem:[%s1] sm:$0xff]
      %v239 = vld [vmem:[%s1 + $0x8] sm:$0xff]
      %v240 = vld [vmem:[%s1 + $0x10] sm:$0xff]
      %v241 = vld [vmem:[%s1 + $0x18] sm:$0xff]
      %v242 = vld [vmem:[%s1 + $0x20] sm:$0xff]
      %v243 = vld [vmem:[%s1 + $0x28] sm:$0xff]
      %v244 = vld [vmem:[%s1 + $0x30] sm:$0xff]
      %v245 = vld [vmem:[%s1 + $0x38] sm:$0xff]
      %v246 = vld [vmem:[%s1 + $0x40] sm:$0xff]
      %v247 = vld [vmem:[%s1 + $0x48] sm:$0xff]
      %v248 = vld [vmem:[%s1 + $0x50] sm:$0xff]
      %v249 = vld [vmem:[%s1 + $0x58] sm:$0xff]
      %v250 = vld [vmem:[%s1 + $0x60] sm:$0xff]
      %v251 = vld [vmem:[%s1 + $0x68] sm:$0xff]
      %v252 = vld [vmem:[%s1 + $0x70] sm:$0xff]
      %v253 = vld [vmem:[%s1 + $0x78] sm:$0xff]
      %v254 = vld [vmem:[%s1 + $0x80] sm:$0xff]
      %v255 = vld [vmem:[%s1 + $0x88] sm:$0xff]
      %v256 = vld [vmem:[%s1 + $0x90] sm:$0xff]
      %v257 = vld [vmem:[%s1 + $0x98] sm:$0xff]
      %v258 = vld [vmem:[%s1 + $0xa0] sm:$0xff]
      %v259 = vld [vmem:[%s1 + $0xa8] sm:$0xff]
      %v260 = vld [vmem:[%s1 + $0xb0] sm:$0xff]
      %v261 = vld [vmem:[%s1 + $0xb8] sm:$0xff]
      %v262 = vld [vmem:[%s1 + $0xc0] sm:$0xff]
      %v263 = vld [vmem:[%s1 + $0xc8] sm:$0xff]
      %v264 = vld [vmem:[%s1 + $0xd0] sm:$0xff]
      %v265 = vld [vmem:[%s1 + $0xd8] sm:$0xff]
      %v266 = vld [vmem:[%s1 + $0xe0] sm:$0xff]
      %v267 = vld [vmem:[%s1 + $0xe8] sm:$0xff]
      %v268 = vld [vmem:[%s1 + $0xf0] sm:$0xff]
      %v269 = vld [vmem:[%s1 + $0xf8] sm:$0xff]
      %v270 = vld [vmem:[%s1 + $0x100] sm:$0xff]
      %v271 = vld [vmem:[%s1 + $0x108] sm:$0xff]
      %v272 = vld [vmem:[%s1 + $0x110] sm:$0xff]
      %v273 = vld [vmem:[%s1 + $0x118] sm:$0xff]
      %v274 = vld [vmem:[%s1 + $0x120] sm:$0xff]
      %v275 = vld [vmem:[%s1 + $0x128] sm:$0xff]
      %v276 = vld [vmem:[%s1 + $0x130] sm:$0xff]
      %v277 = vld [vmem:[%s1 + $0x138] sm:$0xff]
      %v278 = vld [vmem:[%s1 + $0x140] sm:$0xff]
      %v279 = vld [vmem:[%s1 + $0x148] sm:$0xff]
      %v280 = vld [vmem:[%s1 + $0x150] sm:$0xff]
      %v281 = vld [vmem:[%s1 + $0x158] sm:$0xff]
      %v282 = vld [vmem:[%s1 + $0x160] sm:$0xff]
      %v283 = vld [vmem:[%s1 + $0x168] sm:$0xff]
      %v284 = vld [vmem:[%s1 + $0x170] sm:$0xff]
      %v285 = vld [vmem:[%s1 + $0x178] sm:$0xff]
      %s286 = scalar_lea.vmem %s1, 384
      %v287 = vld [vmem:[%s286] sm:$0xff]
      %v288 = vld [vmem:[%s286 + $0x8] sm:$0xff]
      %v289 = vld [vmem:[%s286 + $0x10] sm:$0xff]
      %v290 = vld [vmem:[%s286 + $0x18] sm:$0xff]
      %v291 = vld [vmem:[%s286 + $0x20] sm:$0xff]
      %v292 = vld [vmem:[%s286 + $0x28] sm:$0xff]
      %v293 = vld [vmem:[%s286 + $0x30] sm:$0xff]
      %v294 = vld [vmem:[%s286 + $0x38] sm:$0xff]
      %v295 = vld [vmem:[%s286 + $0x40] sm:$0xff]
      %v296 = vld [vmem:[%s286 + $0x48] sm:$0xff]
      %v297 = vld [vmem:[%s286 + $0x50] sm:$0xff]
      %v298 = vld [vmem:[%s286 + $0x58] sm:$0xff]
      %v299 = vld [vmem:[%s286 + $0x60] sm:$0xff]
      %v300 = vld [vmem:[%s286 + $0x68] sm:$0xff]
      %v301 = vld [vmem:[%s286 + $0x70] sm:$0xff]
      %v302 = vld [vmem:[%s286 + $0x78] sm:$0xff]
      %v303 = vld [vmem:[%s286 + $0x80] sm:$0xff]
      %v304 = vld [vmem:[%s286 + $0x88] sm:$0xff]
      %v305 = vld [vmem:[%s286 + $0x90] sm:$0xff]
      %v306 = vld [vmem:[%s286 + $0x98] sm:$0xff]
      %v307 = vld [vmem:[%s286 + $0xa0] sm:$0xff]
      %v308 = vld [vmem:[%s286 + $0xa8] sm:$0xff]
      %v309 = vld [vmem:[%s286 + $0xb0] sm:$0xff]
      %v310 = vld [vmem:[%s286 + $0xb8] sm:$0xff]
      %v311 = vld [vmem:[%s286 + $0xc0] sm:$0xff]
      %v312 = vld [vmem:[%s286 + $0xc8] sm:$0xff]
      %v313 = vld [vmem:[%s286 + $0xd0] sm:$0xff]
      %v314 = vld [vmem:[%s286 + $0xd8] sm:$0xff]
      %v315 = vld [vmem:[%s286 + $0xe0] sm:$0xff]
      %v316 = vld [vmem:[%s286 + $0xe8] sm:$0xff]
      %v317 = vld [vmem:[%s286 + $0xf0] sm:$0xff]
      %v318 = vld [vmem:[%s286 + $0xf8] sm:$0xff]
      %v319 = vld [vmem:[%s286 + $0x100] sm:$0xff]
      %v320 = vld [vmem:[%s286 + $0x108] sm:$0xff]
      %v321 = vld [vmem:[%s286 + $0x110] sm:$0xff]
      %v322 = vld [vmem:[%s286 + $0x118] sm:$0xff]
      %v323 = vld [vmem:[%s286 + $0x120] sm:$0xff]
      %v324 = vld [vmem:[%s286 + $0x128] sm:$0xff]
      %v325 = vld [vmem:[%s286 + $0x130] sm:$0xff]
      %v326 = vld [vmem:[%s286 + $0x138] sm:$0xff]
      %v327 = vld [vmem:[%s286 + $0x140] sm:$0xff]
      %v328 = vld [vmem:[%s286 + $0x148] sm:$0xff]
      %v329 = vld [vmem:[%s286 + $0x150] sm:$0xff]
      %v330 = vld [vmem:[%s286 + $0x158] sm:$0xff]
      %v331 = vld [vmem:[%s286 + $0x160] sm:$0xff]
      %v332 = vld [vmem:[%s286 + $0x168] sm:$0xff]
      %v333 = vld [vmem:[%s286 + $0x170] sm:$0xff]
      %v334 = vld [vmem:[%s286 + $0x178] sm:$0xff]
      %vm335 = vsmask.f32 7424
      %v337 = vshrl.u32 %v234, 16
      %v339 = vshll.u32 %v234, 16
      %v341 = vrot.slane %v339, 1
      %v342 = vor.u32 %v337, %v341
      %v344 = vshll.u32 %v236, 16
      %v346 = vrot.slane %v344, 1
      %v347 = vsel %vm335, %v342, %v346
      %v349 = vshrl.u32 %v235, 16
      %v351 = vshll.u32 %v235, 16
      %v353 = vrot.slane %v351, 1
      %v354 = vor.u32 %v349, %v353
      %v356 = vshll.u32 %v237, 16
      %v358 = vrot.slane %v356, 1
      %v359 = vsel %vm335, %v354, %v358
      %v360 = vshrl.u32 %v236, 16
      %v362 = vor.u32 %v360, %v346
      %v363 = vshrl.u32 %v237, 16
      %v365 = vor.u32 %v363, %v358
      %v416 = vunpack.c.l.b16 %v287
      %v417 = vunpack.c.h.b16 %v287
      %v418 = vunpack.c.l.b16 %v288
      %v419 = vunpack.c.h.b16 %v288
      %v420 = vunpack.c.l.b16 %v289
      %v421 = vunpack.c.h.b16 %v289
      %v422 = vunpack.c.l.b16 %v290
      %v423 = vunpack.c.h.b16 %v290
      %v424 = vunpack.c.l.b16 %v291
      %v425 = vunpack.c.h.b16 %v291
      %v426 = vunpack.c.l.b16 %v292
      %v427 = vunpack.c.h.b16 %v292
      %v428 = vunpack.c.l.b16 %v293
      %v429 = vunpack.c.h.b16 %v293
      %v430 = vunpack.c.l.b16 %v294
      %v431 = vunpack.c.h.b16 %v294
      %v432 = vunpack.c.l.b16 %v295
      %v433 = vunpack.c.h.b16 %v295
      %v434 = vunpack.c.l.b16 %v296
      %v435 = vunpack.c.h.b16 %v296
      %v436 = vunpack.c.l.b16 %v297
      %v437 = vunpack.c.h.b16 %v297
      %v438 = vunpack.c.l.b16 %v298
      %v439 = vunpack.c.h.b16 %v298
      %v440 = vunpack.c.l.b16 %v299
      %v441 = vunpack.c.h.b16 %v299
      %v442 = vunpack.c.l.b16 %v300
      %v443 = vunpack.c.h.b16 %v300
      %v444 = vunpack.c.l.b16 %v301
      %v445 = vunpack.c.h.b16 %v301
      %v446 = vunpack.c.l.b16 %v302
      %v447 = vunpack.c.h.b16 %v302
      %v448 = vunpack.c.l.b16 %v303
      %v449 = vunpack.c.h.b16 %v303
      %v450 = vunpack.c.l.b16 %v304
      %v451 = vunpack.c.h.b16 %v304
      %v452 = vunpack.c.l.b16 %v305
      %v453 = vunpack.c.h.b16 %v305
      %v454 = vunpack.c.l.b16 %v306
      %v455 = vunpack.c.h.b16 %v306
      %v456 = vunpack.c.l.b16 %v307
      %v457 = vunpack.c.h.b16 %v307
      %v458 = vunpack.c.l.b16 %v308
      %v459 = vunpack.c.h.b16 %v308
      %v460 = vunpack.c.l.b16 %v309
      %v461 = vunpack.c.h.b16 %v309
      %v462 = vunpack.c.l.b16 %v310
      %v463 = vunpack.c.h.b16 %v310
      %v464 = vunpack.c.l.b16 %v311
      %v465 = vunpack.c.h.b16 %v311
      %v466 = vunpack.c.l.b16 %v312
      %v467 = vunpack.c.h.b16 %v312
      %v468 = vunpack.c.l.b16 %v313
      %v469 = vunpack.c.h.b16 %v313
      %v470 = vunpack.c.l.b16 %v314
      %v471 = vunpack.c.h.b16 %v314
      %v472 = vunpack.c.l.b16 %v315
      %v473 = vunpack.c.h.b16 %v315
      %v474 = vunpack.c.l.b16 %v316
      %v475 = vunpack.c.h.b16 %v316
      %v476 = vunpack.c.l.b16 %v317
      %v477 = vunpack.c.h.b16 %v317
      %v478 = vunpack.c.l.b16 %v318
      %v479 = vunpack.c.h.b16 %v318
      %v480 = vunpack.c.l.b16 %v319
      %v481 = vunpack.c.h.b16 %v319
      %v482 = vunpack.c.l.b16 %v320
      %v483 = vunpack.c.h.b16 %v320
      %v484 = vunpack.c.l.b16 %v321
      %v485 = vunpack.c.h.b16 %v321
      %v486 = vunpack.c.l.b16 %v322
      %v487 = vunpack.c.h.b16 %v322
      %v488 = vunpack.c.l.b16 %v323
      %v489 = vunpack.c.h.b16 %v323
      %v490 = vunpack.c.l.b16 %v324
      %v491 = vunpack.c.h.b16 %v324
      %v492 = vunpack.c.l.b16 %v325
      %v493 = vunpack.c.h.b16 %v325
      %v494 = vunpack.c.l.b16 %v326
      %v495 = vunpack.c.h.b16 %v326
      %v496 = vunpack.c.l.b16 %v327
      %v497 = vunpack.c.h.b16 %v327
      %v498 = vunpack.c.l.b16 %v328
      %v499 = vunpack.c.h.b16 %v328
      %v500 = vunpack.c.l.b16 %v329
      %v501 = vunpack.c.h.b16 %v329
      %v502 = vunpack.c.l.b16 %v330
      %v503 = vunpack.c.h.b16 %v330
      %v504 = vunpack.c.l.b16 %v331
      %v505 = vunpack.c.h.b16 %v331
      %v506 = vunpack.c.l.b16 %v332
      %v507 = vunpack.c.h.b16 %v332
      %v508 = vunpack.c.l.b16 %v333
      %v509 = vunpack.c.h.b16 %v333
      %v510 = vunpack.c.l.b16 %v334
      %v511 = vunpack.c.h.b16 %v334
      %v512 = vpack.c.b16 %v420, %v416
      %v513 = vpack.c.b16 %v421, %v417
      %v514 = vpack.c.b16 %v422, %v418
      %v515 = vpack.c.b16 %v423, %v419
      %v516 = vpack.c.b16 %v428, %v424
      %v517 = vpack.c.b16 %v429, %v425
      %v518 = vpack.c.b16 %v430, %v426
      %v519 = vpack.c.b16 %v431, %v427
      %v520 = vpack.c.b16 %v436, %v432
      %v521 = vpack.c.b16 %v437, %v433
      %v522 = vpack.c.b16 %v438, %v434
      %v523 = vpack.c.b16 %v439, %v435
      %v524 = vpack.c.b16 %v444, %v440
      %v525 = vpack.c.b16 %v445, %v441
      %v526 = vpack.c.b16 %v446, %v442
      %v527 = vpack.c.b16 %v447, %v443
      %v528 = vpack.c.b16 %v452, %v448
      %v529 = vpack.c.b16 %v453, %v449
      %v530 = vpack.c.b16 %v454, %v450
      %v531 = vpack.c.b16 %v455, %v451
      %v532 = vpack.c.b16 %v460, %v456
      %v533 = vpack.c.b16 %v461, %v457
      %v534 = vpack.c.b16 %v462, %v458
      %v535 = vpack.c.b16 %v463, %v459
      %v536 = vpack.c.b16 %v468, %v464
      %v537 = vpack.c.b16 %v469, %v465
      %v538 = vpack.c.b16 %v470, %v466
      %v539 = vpack.c.b16 %v471, %v467
      %v540 = vpack.c.b16 %v476, %v472
      %v541 = vpack.c.b16 %v477, %v473
      %v542 = vpack.c.b16 %v478, %v474
      %v543 = vpack.c.b16 %v479, %v475
      %v544 = vpack.c.b16 %v484, %v480
      %v545 = vpack.c.b16 %v485, %v481
      %v546 = vpack.c.b16 %v486, %v482
      %v547 = vpack.c.b16 %v487, %v483
      %v548 = vpack.c.b16 %v492, %v488
      %v549 = vpack.c.b16 %v493, %v489
      %v550 = vpack.c.b16 %v494, %v490
      %v551 = vpack.c.b16 %v495, %v491
      %v552 = vpack.c.b16 %v500, %v496
      %v553 = vpack.c.b16 %v501, %v497
      %v554 = vpack.c.b16 %v502, %v498
      %v555 = vpack.c.b16 %v503, %v499
      %v556 = vpack.c.b16 %v508, %v504
      %v557 = vpack.c.b16 %v509, %v505
      %v558 = vpack.c.b16 %v510, %v506
      %v559 = vpack.c.b16 %v511, %v507
      %vm608 = vcmask 523264
      %v610 = vsel %vm608, %v359, 0
      %v613 = vsel %vm608, %v365, 0
      %615 = vmatprep.subr.bf16.mxu0 %v513
      %616 = vmatpush1.bf16.msra.mxu0 %v512
      %617 = vmatprep.subr.bf16.mxu0 %v517
      %618 = vmatpush1.bf16.msra.mxu0 %v516
      %619 = vmatprep.subr.bf16.mxu0 %v521
      %620 = vmatpush1.bf16.msra.mxu0 %v520
      %621 = vmatprep.subr.bf16.mxu0 %v525
      %622 = vmatpush1.bf16.msra.mxu0 %v524
      %623 = vmatprep.subr.bf16.mxu0 %v529
      %624 = vmatpush1.bf16.msra.mxu0 %v528
      %625 = vmatprep.subr.bf16.mxu0 %v533
      %626 = vmatpush1.bf16.msra.mxu0 %v532
      %627 = vmatprep.subr.bf16.mxu0 %v537
      %628 = vmatpush1.bf16.msra.mxu0 %v536
      %629 = vmatprep.subr.bf16.mxu0 %v541
      %630 = vmatpush1.bf16.msra.mxu0 %v540
      %631 = vmatprep.subr.bf16.mxu0 %v545
      %632 = vmatpush1.bf16.msra.mxu0 %v544
      %633 = vmatprep.subr.bf16.mxu0 %v549
      %634 = vmatpush1.bf16.msra.mxu0 %v548
      %635 = vmatprep.subr.bf16.mxu0 %v553
      %636 = vmatpush1.bf16.msra.mxu0 %v552
      %637 = vmatprep.subr.bf16.mxu0 %v557
      %638 = vmatpush1.bf16.msra.mxu0 %v556
      %639 = vmatprep.subr.bf16.mxu0 0
      %640 = vmatpush1.bf16.msra.mxu0 0
      %641 = vmatprep.subr.bf16.mxu0 0
      %642 = vmatpush1.bf16.msra.mxu0 0
      %643 = vmatprep.subr.bf16.mxu0 0
      %644 = vmatpush1.bf16.msra.mxu0 0
      %645 = vmatprep.subr.bf16.mxu0 0
      %646 = vmatpush1.bf16.msra.mxu0 0
      %647 = vmatprep.mubr.bf16.mxu0 %v610
      %648 = vmatmul.mubr.bf16.gmra.mrb[0].mxu0 %v347
      %v649 = vpop.f32.mrb[0].mxu0
      %v650 = vadd.f32 0.0, %v649
      %v651 = vpop.f32.mrb[0].mxu0
      %v652 = vadd.f32 0.0, %v651
      %v653 = vpop.f32.mrb[0].mxu0
      %v654 = vadd.f32 0.0, %v653
      %v655 = vpop.f32.mrb[0].mxu0
      %v656 = vadd.f32 0.0, %v655
      %657 = vmatprep.mubr.bf16.mxu0 %v613
      %658 = vmatmul.mubr.bf16.gmra.mrb[0].mxu0 %v362
      %v659 = vpop.f32.mrb[0].mxu0
      %v660 = vadd.f32 0.0, %v659
      %v661 = vpop.f32.mrb[0].mxu0
      %v662 = vadd.f32 0.0, %v661
      %v663 = vpop.f32.mrb[0].mxu0
      %v664 = vpop.f32.mrb[0].mxu0
      %665 = vdwg.mxu0
      %666 = vmatprep.subr.bf16.mxu0 %v515
      %667 = vmatpush1.bf16.msra.mxu0 %v514
      %668 = vmatprep.subr.bf16.mxu0 %v519
      %669 = vmatpush1.bf16.msra.mxu0 %v518
      %670 = vmatprep.subr.bf16.mxu0 %v523
      %671 = vmatpush1.bf16.msra.mxu0 %v522
      %672 = vmatprep.subr.bf16.mxu0 %v527
      %673 = vmatpush1.bf16.msra.mxu0 %v526
      %674 = vmatprep.subr.bf16.mxu0 %v531
      %675 = vmatpush1.bf16.msra.mxu0 %v530
      %676 = vmatprep.subr.bf16.mxu0 %v535
      %677 = vmatpush1.bf16.msra.mxu0 %v534
      %678 = vmatprep.subr.bf16.mxu0 %v539
      %679 = vmatpush1.bf16.msra.mxu0 %v538
      %680 = vmatprep.subr.bf16.mxu0 %v543
      %681 = vmatpush1.bf16.msra.mxu0 %v542
      %682 = vmatprep.subr.bf16.mxu0 %v547
      %683 = vmatpush1.bf16.msra.mxu0 %v546
      %684 = vmatprep.subr.bf16.mxu0 %v551
      %685 = vmatpush1.bf16.msra.mxu0 %v550
      %686 = vmatprep.subr.bf16.mxu0 %v555
      %687 = vmatpush1.bf16.msra.mxu0 %v554
      %688 = vmatprep.subr.bf16.mxu0 %v559
      %689 = vmatpush1.bf16.msra.mxu0 %v558
      %690 = vmatprep.subr.bf16.mxu0 0
      %691 = vmatpush1.bf16.msra.mxu0 0
      %692 = vmatprep.subr.bf16.mxu0 0
      %693 = vmatpush1.bf16.msra.mxu0 0
      %694 = vmatprep.subr.bf16.mxu0 0
      %695 = vmatpush1.bf16.msra.mxu0 0
      %696 = vmatprep.subr.bf16.mxu0 0
      %697 = vmatpush1.bf16.msra.mxu0 0
      %698 = vmatprep.mubr.bf16.mxu0 %v610
      %699 = vmatmul.mubr.bf16.gmra.mrb[0].mxu0 %v347
      %v700 = vpop.f32.mrb[0].mxu0
      %v701 = vadd.f32 0.0, %v700
      %v702 = vpop.f32.mrb[0].mxu0
      %v703 = vadd.f32 0.0, %v702
      %v704 = vpop.f32.mrb[0].mxu0
      %v705 = vadd.f32 0.0, %v704
      %v706 = vpop.f32.mrb[0].mxu0
      %v707 = vadd.f32 0.0, %v706
      %708 = vmatprep.mubr.bf16.mxu0 %v613
      %709 = vmatmul.mubr.bf16.gmra.mrb[0].mxu0 %v362
      %v710 = vpop.f32.mrb[0].mxu0
      %v711 = vadd.f32 0.0, %v710
      %v712 = vpop.f32.mrb[0].mxu0
      %v713 = vadd.f32 0.0, %v712
      %v714 = vpop.f32.mrb[0].mxu0
      %v715 = vpop.f32.mrb[0].mxu0
      %716 = vdwg.mxu0
      %v765 = vunpack.c.l.b16 %v238
      %v766 = vunpack.c.h.b16 %v238
      %v767 = vunpack.c.l.b16 %v239
      %v768 = vunpack.c.h.b16 %v239
      %v769 = vunpack.c.l.b16 %v240
      %v770 = vunpack.c.h.b16 %v240
      %v771 = vunpack.c.l.b16 %v241
      %v772 = vunpack.c.h.b16 %v241
      %v773 = vunpack.c.l.b16 %v242
      %v774 = vunpack.c.h.b16 %v242
      %v775 = vunpack.c.l.b16 %v243
      %v776 = vunpack.c.h.b16 %v243
      %v777 = vunpack.c.l.b16 %v244
      %v778 = vunpack.c.h.b16 %v244
      %v779 = vunpack.c.l.b16 %v245
      %v780 = vunpack.c.h.b16 %v245
      %v781 = vunpack.c.l.b16 %v246
      %v782 = vunpack.c.h.b16 %v246
      %v783 = vunpack.c.l.b16 %v247
      %v784 = vunpack.c.h.b16 %v247
      %v785 = vunpack.c.l.b16 %v248
      %v786 = vunpack.c.h.b16 %v248
      %v787 = vunpack.c.l.b16 %v249
      %v788 = vunpack.c.h.b16 %v249
      %v789 = vunpack.c.l.b16 %v250
      %v790 = vunpack.c.h.b16 %v250
      %v791 = vunpack.c.l.b16 %v251
      %v792 = vunpack.c.h.b16 %v251
      %v793 = vunpack.c.l.b16 %v252
      %v794 = vunpack.c.h.b16 %v252
      %v795 = vunpack.c.l.b16 %v253
      %v796 = vunpack.c.h.b16 %v253
      %v797 = vunpack.c.l.b16 %v254
      %v798 = vunpack.c.h.b16 %v254
      %v799 = vunpack.c.l.b16 %v255
      %v800 = vunpack.c.h.b16 %v255
      %v801 = vunpack.c.l.b16 %v256
      %v802 = vunpack.c.h.b16 %v256
      %v803 = vunpack.c.l.b16 %v257
      %v804 = vunpack.c.h.b16 %v257
      %v805 = vunpack.c.l.b16 %v258
      %v806 = vunpack.c.h.b16 %v258
      %v807 = vunpack.c.l.b16 %v259
      %v808 = vunpack.c.h.b16 %v259
      %v809 = vunpack.c.l.b16 %v260
      %v810 = vunpack.c.h.b16 %v260
      %v811 = vunpack.c.l.b16 %v261
      %v812 = vunpack.c.h.b16 %v261
      %v813 = vunpack.c.l.b16 %v262
      %v814 = vunpack.c.h.b16 %v262
      %v815 = vunpack.c.l.b16 %v263
      %v816 = vunpack.c.h.b16 %v263
      %v817 = vunpack.c.l.b16 %v264
      %v818 = vunpack.c.h.b16 %v264
      %v819 = vunpack.c.l.b16 %v265
      %v820 = vunpack.c.h.b16 %v265
      %v821 = vunpack.c.l.b16 %v266
      %v822 = vunpack.c.h.b16 %v266
      %v823 = vunpack.c.l.b16 %v267
      %v824 = vunpack.c.h.b16 %v267
      %v825 = vunpack.c.l.b16 %v268
      %v826 = vunpack.c.h.b16 %v268
      %v827 = vunpack.c.l.b16 %v269
      %v828 = vunpack.c.h.b16 %v269
      %v829 = vunpack.c.l.b16 %v270
      %v830 = vunpack.c.h.b16 %v270
      %v831 = vunpack.c.l.b16 %v271
      %v832 = vunpack.c.h.b16 %v271
      %v833 = vunpack.c.l.b16 %v272
      %v834 = vunpack.c.h.b16 %v272
      %v835 = vunpack.c.l.b16 %v273
      %v836 = vunpack.c.h.b16 %v273
      %v837 = vunpack.c.l.b16 %v274
      %v838 = vunpack.c.h.b16 %v274
      %v839 = vunpack.c.l.b16 %v275
      %v840 = vunpack.c.h.b16 %v275
      %v841 = vunpack.c.l.b16 %v276
      %v842 = vunpack.c.h.b16 %v276
      %v843 = vunpack.c.l.b16 %v277
      %v844 = vunpack.c.h.b16 %v277
      %v845 = vunpack.c.l.b16 %v278
      %v846 = vunpack.c.h.b16 %v278
      %v847 = vunpack.c.l.b16 %v279
      %v848 = vunpack.c.h.b16 %v279
      %v849 = vunpack.c.l.b16 %v280
      %v850 = vunpack.c.h.b16 %v280
      %v851 = vunpack.c.l.b16 %v281
      %v852 = vunpack.c.h.b16 %v281
      %v853 = vunpack.c.l.b16 %v282
      %v854 = vunpack.c.h.b16 %v282
      %v855 = vunpack.c.l.b16 %v283
      %v856 = vunpack.c.h.b16 %v283
      %v857 = vunpack.c.l.b16 %v284
      %v858 = vunpack.c.h.b16 %v284
      %v859 = vunpack.c.l.b16 %v285
      %v860 = vunpack.c.h.b16 %v285
      %v861 = vpack.c.b16 %v769, %v765
      %v862 = vpack.c.b16 %v770, %v766
      %v863 = vpack.c.b16 %v771, %v767
      %v864 = vpack.c.b16 %v772, %v768
      %v865 = vpack.c.b16 %v777, %v773
      %v866 = vpack.c.b16 %v778, %v774
      %v867 = vpack.c.b16 %v779, %v775
      %v868 = vpack.c.b16 %v780, %v776
      %v869 = vpack.c.b16 %v785, %v781
      %v870 = vpack.c.b16 %v786, %v782
      %v871 = vpack.c.b16 %v787, %v783
      %v872 = vpack.c.b16 %v788, %v784
      %v873 = vpack.c.b16 %v793, %v789
      %v874 = vpack.c.b16 %v794, %v790
      %v875 = vpack.c.b16 %v795, %v791
      %v876 = vpack.c.b16 %v796, %v792
      %v877 = vpack.c.b16 %v801, %v797
      %v878 = vpack.c.b16 %v802, %v798
      %v879 = vpack.c.b16 %v803, %v799
      %v880 = vpack.c.b16 %v804, %v800
      %v881 = vpack.c.b16 %v809, %v805
      %v882 = vpack.c.b16 %v810, %v806
      %v883 = vpack.c.b16 %v811, %v807
      %v884 = vpack.c.b16 %v812, %v808
      %v885 = vpack.c.b16 %v817, %v813
      %v886 = vpack.c.b16 %v818, %v814
      %v887 = vpack.c.b16 %v819, %v815
      %v888 = vpack.c.b16 %v820, %v816
      %v889 = vpack.c.b16 %v825, %v821
      %v890 = vpack.c.b16 %v826, %v822
      %v891 = vpack.c.b16 %v827, %v823
      %v892 = vpack.c.b16 %v828, %v824
      %v893 = vpack.c.b16 %v833, %v829
      %v894 = vpack.c.b16 %v834, %v830
      %v895 = vpack.c.b16 %v835, %v831
      %v896 = vpack.c.b16 %v836, %v832
      %v897 = vpack.c.b16 %v841, %v837
      %v898 = vpack.c.b16 %v842, %v838
      %v899 = vpack.c.b16 %v843, %v839
      %v900 = vpack.c.b16 %v844, %v840
      %v901 = vpack.c.b16 %v849, %v845
      %v902 = vpack.c.b16 %v850, %v846
      %v903 = vpack.c.b16 %v851, %v847
      %v904 = vpack.c.b16 %v852, %v848
      %v905 = vpack.c.b16 %v857, %v853
      %v906 = vpack.c.b16 %v858, %v854
      %v907 = vpack.c.b16 %v859, %v855
      %v908 = vpack.c.b16 %v860, %v856
      %v957 = vsel %vm608, %v235, 0
      %v959 = vsel %vm608, %v237, 0
      %961 = vmatprep.subr.bf16.mxu0 %v862
      %962 = vmatpush1.bf16.msra.mxu0 %v861
      %963 = vmatprep.subr.bf16.mxu0 %v866
      %964 = vmatpush1.bf16.msra.mxu0 %v865
      %965 = vmatprep.subr.bf16.mxu0 %v870
      %966 = vmatpush1.bf16.msra.mxu0 %v869
      %967 = vmatprep.subr.bf16.mxu0 %v874
      %968 = vmatpush1.bf16.msra.mxu0 %v873
      %969 = vmatprep.subr.bf16.mxu0 %v878
      %970 = vmatpush1.bf16.msra.mxu0 %v877
      %971 = vmatprep.subr.bf16.mxu0 %v882
      %972 = vmatpush1.bf16.msra.mxu0 %v881
      %973 = vmatprep.subr.bf16.mxu0 %v886
      %974 = vmatpush1.bf16.msra.mxu0 %v885
      %975 = vmatprep.subr.bf16.mxu0 %v890
      %976 = vmatpush1.bf16.msra.mxu0 %v889
      %977 = vmatprep.subr.bf16.mxu0 %v894
      %978 = vmatpush1.bf16.msra.mxu0 %v893
      %979 = vmatprep.subr.bf16.mxu0 %v898
      %980 = vmatpush1.bf16.msra.mxu0 %v897
      %981 = vmatprep.subr.bf16.mxu0 %v902
      %982 = vmatpush1.bf16.msra.mxu0 %v901
      %983 = vmatprep.subr.bf16.mxu0 %v906
      %984 = vmatpush1.bf16.msra.mxu0 %v905
      %985 = vmatprep.subr.bf16.mxu0 0
      %986 = vmatpush1.bf16.msra.mxu0 0
      %987 = vmatprep.subr.bf16.mxu0 0
      %988 = vmatpush1.bf16.msra.mxu0 0
      %989 = vmatprep.subr.bf16.mxu0 0
      %990 = vmatpush1.bf16.msra.mxu0 0
      %991 = vmatprep.subr.bf16.mxu0 0
      %992 = vmatpush1.bf16.msra.mxu0 0
      %993 = vmatprep.mubr.bf16.mxu0 %v957
      %994 = vmatmul.mubr.bf16.gmra.mrb[0].mxu0 %v234
      %v995 = vpop.f32.mrb[0].mxu0
      %v996 = vadd.f32 %v650, %v995
      %v997 = vpop.f32.mrb[0].mxu0
      %v998 = vadd.f32 %v652, %v997
      %v999 = vpop.f32.mrb[0].mxu0
      %v1000 = vadd.f32 %v654, %v999
      %v1001 = vpop.f32.mrb[0].mxu0
      %v1002 = vadd.f32 %v656, %v1001
      %1003 = vmatprep.mubr.bf16.mxu0 %v959
      %1004 = vmatmul.mubr.bf16.gmra.mrb[0].mxu0 %v236
      %v1005 = vpop.f32.mrb[0].mxu0
      %v1006 = vadd.f32 %v660, %v1005
      %v1007 = vpop.f32.mrb[0].mxu0
      %v1008 = vadd.f32 %v662, %v1007
      %v1009 = vpop.f32.mrb[0].mxu0
      %v1010 = vpop.f32.mrb[0].mxu0
      %1011 = vdwg.mxu0
      %1012 = vmatprep.subr.bf16.mxu0 %v864
      %1013 = vmatpush1.bf16.msra.mxu0 %v863
      %1014 = vmatprep.subr.bf16.mxu0 %v868
      %1015 = vmatpush1.bf16.msra.mxu0 %v867
      %1016 = vmatprep.subr.bf16.mxu0 %v872
      %1017 = vmatpush1.bf16.msra.mxu0 %v871
      %1018 = vmatprep.subr.bf16.mxu0 %v876
      %1019 = vmatpush1.bf16.msra.mxu0 %v875
      %1020 = vmatprep.subr.bf16.mxu0 %v880
      %1021 = vmatpush1.bf16.msra.mxu0 %v879
      %1022 = vmatprep.subr.bf16.mxu0 %v884
      %1023 = vmatpush1.bf16.msra.mxu0 %v883
      %1024 = vmatprep.subr.bf16.mxu0 %v888
      %1025 = vmatpush1.bf16.msra.mxu0 %v887
      %1026 = vmatprep.subr.bf16.mxu0 %v892
      %1027 = vmatpush1.bf16.msra.mxu0 %v891
      %1028 = vmatprep.subr.bf16.mxu0 %v896
      %1029 = vmatpush1.bf16.msra.mxu0 %v895
      %1030 = vmatprep.subr.bf16.mxu0 %v900
      %1031 = vmatpush1.bf16.msra.mxu0 %v899
      %1032 = vmatprep.subr.bf16.mxu0 %v904
      %1033 = vmatpush1.bf16.msra.mxu0 %v903
      %1034 = vmatprep.subr.bf16.mxu0 %v908
      %1035 = vmatpush1.bf16.msra.mxu0 %v907
      %1036 = vmatprep.subr.bf16.mxu0 0
      %1037 = vmatpush1.bf16.msra.mxu0 0
      %1038 = vmatprep.subr.bf16.mxu0 0
      %1039 = vmatpush1.bf16.msra.mxu0 0
      %1040 = vmatprep.subr.bf16.mxu0 0
      %1041 = vmatpush1.bf16.msra.mxu0 0
      %1042 = vmatprep.subr.bf16.mxu0 0
      %1043 = vmatpush1.bf16.msra.mxu0 0
      %1044 = vmatprep.mubr.bf16.mxu0 %v957
      %1045 = vmatmul.mubr.bf16.gmra.mrb[0].mxu0 %v234
      %v1046 = vpop.f32.mrb[0].mxu0
      %v1047 = vadd.f32 %v701, %v1046
      %v1048 = vpop.f32.mrb[0].mxu0
      %v1049 = vadd.f32 %v703, %v1048
      %v1050 = vpop.f32.mrb[0].mxu0
      %v1051 = vadd.f32 %v705, %v1050
      %v1052 = vpop.f32.mrb[0].mxu0
      %v1053 = vadd.f32 %v707, %v1052
      %1054 = vmatprep.mubr.bf16.mxu0 %v959
      %1055 = vmatmul.mubr.bf16.gmra.mrb[0].mxu0 %v236
      %v1056 = vpop.f32.mrb[0].mxu0
      %v1057 = vadd.f32 %v711, %v1056
      %v1058 = vpop.f32.mrb[0].mxu0
      %v1059 = vadd.f32 %v713, %v1058
      %v1060 = vpop.f32.mrb[0].mxu0
      %v1061 = vpop.f32.mrb[0].mxu0
      %1062 = vdwg.mxu0
      %s1063 = scalar_lea.vmem %s1, 768
      %v1064 = vld [vmem:[%s1063] sm:$0xff]
      %v1065 = vld [vmem:[%s1063 + $0x8] sm:$0xff]
      %v1066 = vld [vmem:[%s1063 + $0x10] sm:$0xff]
      %v1067 = vld [vmem:[%s1063 + $0x18] sm:$0xff]
      %v1068 = vld [vmem:[%s1063 + $0x20] sm:$0xff]
      %v1069 = vld [vmem:[%s1063 + $0x28] sm:$0xff]
      %v1070 = vld [vmem:[%s1063 + $0x30] sm:$0xff]
      %v1071 = vld [vmem:[%s1063 + $0x38] sm:$0xff]
      %v1072 = vld [vmem:[%s1063 + $0x40] sm:$0xff]
      %v1073 = vld [vmem:[%s1063 + $0x48] sm:$0xff]
      %v1074 = vld [vmem:[%s1063 + $0x50] sm:$0xff]
      %v1075 = vld [vmem:[%s1063 + $0x58] sm:$0xff]
      %v1076 = vld [vmem:[%s1063 + $0x60] sm:$0xff]
      %v1077 = vld [vmem:[%s1063 + $0x68] sm:$0xff]
      %v1078 = vld [vmem:[%s1063 + $0x70] sm:$0xff]
      %v1079 = vld [vmem:[%s1063 + $0x78] sm:$0xff]
      %v1080 = vld [vmem:[%s1063 + $0x80] sm:$0xff]
      %v1081 = vld [vmem:[%s1063 + $0x88] sm:$0xff]
      %v1082 = vld [vmem:[%s1063 + $0x90] sm:$0xff]
      %v1083 = vld [vmem:[%s1063 + $0x98] sm:$0xff]
      %v1084 = vld [vmem:[%s1063 + $0xa0] sm:$0xff]
      %v1085 = vld [vmem:[%s1063 + $0xa8] sm:$0xff]
      %v1086 = vld [vmem:[%s1063 + $0xb0] sm:$0xff]
      %v1087 = vld [vmem:[%s1063 + $0xb8] sm:$0xff]
      %v1088 = vld [vmem:[%s1063 + $0xc0] sm:$0xff]
      %v1089 = vld [vmem:[%s1063 + $0xc8] sm:$0xff]
      %v1090 = vld [vmem:[%s1063 + $0xd0] sm:$0xff]
      %v1091 = vld [vmem:[%s1063 + $0xd8] sm:$0xff]
      %v1092 = vld [vmem:[%s1063 + $0xe0] sm:$0xff]
      %v1093 = vld [vmem:[%s1063 + $0xe8] sm:$0xff]
      %v1094 = vld [vmem:[%s1063 + $0xf0] sm:$0xff]
      %v1095 = vld [vmem:[%s1063 + $0xf8] sm:$0xff]
      %v1096 = vld [vmem:[%s1063 + $0x100] sm:$0xff]
      %v1097 = vld [vmem:[%s1063 + $0x108] sm:$0xff]
      %v1098 = vld [vmem:[%s1063 + $0x110] sm:$0xff]
      %v1099 = vld [vmem:[%s1063 + $0x118] sm:$0xff]
      %v1100 = vld [vmem:[%s1063 + $0x120] sm:$0xff]
      %v1101 = vld [vmem:[%s1063 + $0x128] sm:$0xff]
      %v1102 = vld [vmem:[%s1063 + $0x130] sm:$0xff]
      %v1103 = vld [vmem:[%s1063 + $0x138] sm:$0xff]
      %v1104 = vld [vmem:[%s1063 + $0x140] sm:$0xff]
      %v1105 = vld [vmem:[%s1063 + $0x148] sm:$0xff]
      %v1106 = vld [vmem:[%s1063 + $0x150] sm:$0xff]
      %v1107 = vld [vmem:[%s1063 + $0x158] sm:$0xff]
      %v1108 = vld [vmem:[%s1063 + $0x160] sm:$0xff]
      %v1109 = vld [vmem:[%s1063 + $0x168] sm:$0xff]
      %v1110 = vld [vmem:[%s1063 + $0x170] sm:$0xff]
      %v1111 = vld [vmem:[%s1063 + $0x178] sm:$0xff]
      %vm1112 = vsmask.f32 5376
      %v1113 = vrot.slane %v337, 2
      %v1114 = vrot.slane %v339, 3
      %v1115 = vor.u32 %v1113, %v1114
      %v1116 = vrot.slane %v360, 2
      %v1117 = vrot.slane %v344, 3
      %v1118 = vor.u32 %v1116, %v1117
      %v1119 = vsel %vm1112, %v1115, %v1118
      %v1120 = vrot.slane %v349, 2
      %v1121 = vrot.slane %v351, 3
      %v1122 = vor.u32 %v1120, %v1121
      %v1123 = vrot.slane %v363, 2
      %v1124 = vrot.slane %v356, 3
      %v1125 = vor.u32 %v1123, %v1124
      %v1126 = vsel %vm1112, %v1122, %v1125
      %v1177 = vunpack.c.l.b16 %v1064
      %v1178 = vunpack.c.h.b16 %v1064
      %v1179 = vunpack.c.l.b16 %v1065
      %v1180 = vunpack.c.h.b16 %v1065
      %v1181 = vunpack.c.l.b16 %v1066
      %v1182 = vunpack.c.h.b16 %v1066
      %v1183 = vunpack.c.l.b16 %v1067
      %v1184 = vunpack.c.h.b16 %v1067
      %v1185 = vunpack.c.l.b16 %v1068
      %v1186 = vunpack.c.h.b16 %v1068
      %v1187 = vunpack.c.l.b16 %v1069
      %v1188 = vunpack.c.h.b16 %v1069
      %v1189 = vunpack.c.l.b16 %v1070
      %v1190 = vunpack.c.h.b16 %v1070
      %v1191 = vunpack.c.l.b16 %v1071
      %v1192 = vunpack.c.h.b16 %v1071
      %v1193 = vunpack.c.l.b16 %v1072
      %v1194 = vunpack.c.h.b16 %v1072
      %v1195 = vunpack.c.l.b16 %v1073
      %v1196 = vunpack.c.h.b16 %v1073
      %v1197 = vunpack.c.l.b16 %v1074
      %v1198 = vunpack.c.h.b16 %v1074
      %v1199 = vunpack.c.l.b16 %v1075
      %v1200 = vunpack.c.h.b16 %v1075
      %v1201 = vunpack.c.l.b16 %v1076
      %v1202 = vunpack.c.h.b16 %v1076
      %v1203 = vunpack.c.l.b16 %v1077
      %v1204 = vunpack.c.h.b16 %v1077
      %v1205 = vunpack.c.l.b16 %v1078
      %v1206 = vunpack.c.h.b16 %v1078
      %v1207 = vunpack.c.l.b16 %v1079
      %v1208 = vunpack.c.h.b16 %v1079
      %v1209 = vunpack.c.l.b16 %v1080
      %v1210 = vunpack.c.h.b16 %v1080
      %v1211 = vunpack.c.l.b16 %v1081
      %v1212 = vunpack.c.h.b16 %v1081
      %v1213 = vunpack.c.l.b16 %v1082
      %v1214 = vunpack.c.h.b16 %v1082
      %v1215 = vunpack.c.l.b16 %v1083
      %v1216 = vunpack.c.h.b16 %v1083
      %v1217 = vunpack.c.l.b16 %v1084
      %v1218 = vunpack.c.h.b16 %v1084
      %v1219 = vunpack.c.l.b16 %v1085
      %v1220 = vunpack.c.h.b16 %v1085
      %v1221 = vunpack.c.l.b16 %v1086
      %v1222 = vunpack.c.h.b16 %v1086
      %v1223 = vunpack.c.l.b16 %v1087
      %v1224 = vunpack.c.h.b16 %v1087
      %v1225 = vunpack.c.l.b16 %v1088
      %v1226 = vunpack.c.h.b16 %v1088
      %v1227 = vunpack.c.l.b16 %v1089
      %v1228 = vunpack.c.h.b16 %v1089
      %v1229 = vunpack.c.l.b16 %v1090
      %v1230 = vunpack.c.h.b16 %v1090
      %v1231 = vunpack.c.l.b16 %v1091
      %v1232 = vunpack.c.h.b16 %v1091
      %v1233 = vunpack.c.l.b16 %v1092
      %v1234 = vunpack.c.h.b16 %v1092
      %v1235 = vunpack.c.l.b16 %v1093
      %v1236 = vunpack.c.h.b16 %v1093
      %v1237 = vunpack.c.l.b16 %v1094
      %v1238 = vunpack.c.h.b16 %v1094
      %v1239 = vunpack.c.l.b16 %v1095
      %v1240 = vunpack.c.h.b16 %v1095
      %v1241 = vunpack.c.l.b16 %v1096
      %v1242 = vunpack.c.h.b16 %v1096
      %v1243 = vunpack.c.l.b16 %v1097
      %v1244 = vunpack.c.h.b16 %v1097
      %v1245 = vunpack.c.l.b16 %v1098
      %v1246 = vunpack.c.h.b16 %v1098
      %v1247 = vunpack.c.l.b16 %v1099
      %v1248 = vunpack.c.h.b16 %v1099
      %v1249 = vunpack.c.l.b16 %v1100
      %v1250 = vunpack.c.h.b16 %v1100
      %v1251 = vunpack.c.l.b16 %v1101
      %v1252 = vunpack.c.h.b16 %v1101
      %v1253 = vunpack.c.l.b16 %v1102
      %v1254 = vunpack.c.h.b16 %v1102
      %v1255 = vunpack.c.l.b16 %v1103
      %v1256 = vunpack.c.h.b16 %v1103
      %v1257 = vunpack.c.l.b16 %v1104
      %v1258 = vunpack.c.h.b16 %v1104
      %v1259 = vunpack.c.l.b16 %v1105
      %v1260 = vunpack.c.h.b16 %v1105
      %v1261 = vunpack.c.l.b16 %v1106
      %v1262 = vunpack.c.h.b16 %v1106
      %v1263 = vunpack.c.l.b16 %v1107
      %v1264 = vunpack.c.h.b16 %v1107
      %v1265 = vunpack.c.l.b16 %v1108
      %v1266 = vunpack.c.h.b16 %v1108
      %v1267 = vunpack.c.l.b16 %v1109
      %v1268 = vunpack.c.h.b16 %v1109
      %v1269 = vunpack.c.l.b16 %v1110
      %v1270 = vunpack.c.h.b16 %v1110
      %v1271 = vunpack.c.l.b16 %v1111
      %v1272 = vunpack.c.h.b16 %v1111
      %v1273 = vpack.c.b16 %v1181, %v1177
      %v1274 = vpack.c.b16 %v1182, %v1178
      %v1275 = vpack.c.b16 %v1183, %v1179
      %v1276 = vpack.c.b16 %v1184, %v1180
      %v1277 = vpack.c.b16 %v1189, %v1185
      %v1278 = vpack.c.b16 %v1190, %v1186
      %v1279 = vpack.c.b16 %v1191, %v1187
      %v1280 = vpack.c.b16 %v1192, %v1188
      %v1281 = vpack.c.b16 %v1197, %v1193
      %v1282 = vpack.c.b16 %v1198, %v1194
      %v1283 = vpack.c.b16 %v1199, %v1195
      %v1284 = vpack.c.b16 %v1200, %v1196
      %v1285 = vpack.c.b16 %v1205, %v1201
      %v1286 = vpack.c.b16 %v1206, %v1202
      %v1287 = vpack.c.b16 %v1207, %v1203
      %v1288 = vpack.c.b16 %v1208, %v1204
      %v1289 = vpack.c.b16 %v1213, %v1209
      %v1290 = vpack.c.b16 %v1214, %v1210
      %v1291 = vpack.c.b16 %v1215, %v1211
      %v1292 = vpack.c.b16 %v1216, %v1212
      %v1293 = vpack.c.b16 %v1221, %v1217
      %v1294 = vpack.c.b16 %v1222, %v1218
      %v1295 = vpack.c.b16 %v1223, %v1219
      %v1296 = vpack.c.b16 %v1224, %v1220
      %v1297 = vpack.c.b16 %v1229, %v1225
      %v1298 = vpack.c.b16 %v1230, %v1226
      %v1299 = vpack.c.b16 %v1231, %v1227
      %v1300 = vpack.c.b16 %v1232, %v1228
      %v1301 = vpack.c.b16 %v1237, %v1233
      %v1302 = vpack.c.b16 %v1238, %v1234
      %v1303 = vpack.c.b16 %v1239, %v1235
      %v1304 = vpack.c.b16 %v1240, %v1236
      %v1305 = vpack.c.b16 %v1245, %v1241
      %v1306 = vpack.c.b16 %v1246, %v1242
      %v1307 = vpack.c.b16 %v1247, %v1243
      %v1308 = vpack.c.b16 %v1248, %v1244
      %v1309 = vpack.c.b16 %v1253, %v1249
      %v1310 = vpack.c.b16 %v1254, %v1250
      %v1311 = vpack.c.b16 %v1255, %v1251
      %v1312 = vpack.c.b16 %v1256, %v1252
      %v1313 = vpack.c.b16 %v1261, %v1257
      %v1314 = vpack.c.b16 %v1262, %v1258
      %v1315 = vpack.c.b16 %v1263, %v1259
      %v1316 = vpack.c.b16 %v1264, %v1260
      %v1317 = vpack.c.b16 %v1269, %v1265
      %v1318 = vpack.c.b16 %v1270, %v1266
      %v1319 = vpack.c.b16 %v1271, %v1267
      %v1320 = vpack.c.b16 %v1272, %v1268
      %v1370 = vsel %vm608, %v1126, 0
      %v1373 = vsel %vm608, %v1125, 0
      %1375 = vmatprep.subr.bf16.mxu0 %v1274
      %1376 = vmatpush1.bf16.msra.mxu0 %v1273
      %1377 = vmatprep.subr.bf16.mxu0 %v1278
      %1378 = vmatpush1.bf16.msra.mxu0 %v1277
      %1379 = vmatprep.subr.bf16.mxu0 %v1282
      %1380 = vmatpush1.bf16.msra.mxu0 %v1281
      %1381 = vmatprep.subr.bf16.mxu0 %v1286
      %1382 = vmatpush1.bf16.msra.mxu0 %v1285
      %1383 = vmatprep.subr.bf16.mxu0 %v1290
      %1384 = vmatpush1.bf16.msra.mxu0 %v1289
      %1385 = vmatprep.subr.bf16.mxu0 %v1294
      %1386 = vmatpush1.bf16.msra.mxu0 %v1293
      %1387 = vmatprep.subr.bf16.mxu0 %v1298
      %1388 = vmatpush1.bf16.msra.mxu0 %v1297
      %1389 = vmatprep.subr.bf16.mxu0 %v1302
      %1390 = vmatpush1.bf16.msra.mxu0 %v1301
      %1391 = vmatprep.subr.bf16.mxu0 %v1306
      %1392 = vmatpush1.bf16.msra.mxu0 %v1305
      %1393 = vmatprep.subr.bf16.mxu0 %v1310
      %1394 = vmatpush1.bf16.msra.mxu0 %v1309
      %1395 = vmatprep.subr.bf16.mxu0 %v1314
      %1396 = vmatpush1.bf16.msra.mxu0 %v1313
      %1397 = vmatprep.subr.bf16.mxu0 %v1318
      %1398 = vmatpush1.bf16.msra.mxu0 %v1317
      %1399 = vmatprep.subr.bf16.mxu0 0
      %1400 = vmatpush1.bf16.msra.mxu0 0
      %1401 = vmatprep.subr.bf16.mxu0 0
      %1402 = vmatpush1.bf16.msra.mxu0 0
      %1403 = vmatprep.subr.bf16.mxu0 0
      %1404 = vmatpush1.bf16.msra.mxu0 0
      %1405 = vmatprep.subr.bf16.mxu0 0
      %1406 = vmatpush1.bf16.msra.mxu0 0
      %1407 = vmatprep.mubr.bf16.mxu0 %v1370
      %1408 = vmatmul.mubr.bf16.gmra.mrb[0].mxu0 %v1119
      %v1409 = vpop.f32.mrb[0].mxu0
      %v1410 = vadd.f32 0.0, %v1409
      %v1411 = vpop.f32.mrb[0].mxu0
      %v1412 = vadd.f32 0.0, %v1411
      %v1413 = vpop.f32.mrb[0].mxu0
      %v1414 = vadd.f32 0.0, %v1413
      %v1415 = vpop.f32.mrb[0].mxu0
      %v1416 = vadd.f32 0.0, %v1415
      %1417 = vmatprep.mubr.bf16.mxu0 %v1373
      %1418 = vmatmul.mubr.bf16.gmra.mrb[0].mxu0 %v1118
      %v1419 = vpop.f32.mrb[0].mxu0
      %v1420 = vadd.f32 0.0, %v1419
      %v1421 = vpop.f32.mrb[0].mxu0
      %v1422 = vadd.f32 0.0, %v1421
      %v1423 = vpop.f32.mrb[0].mxu0
      %v1424 = vpop.f32.mrb[0].mxu0
      %1425 = vdwg.mxu0
      %1426 = vmatprep.subr.bf16.mxu0 %v1276
      %1427 = vmatpush1.bf16.msra.mxu0 %v1275
      %1428 = vmatprep.subr.bf16.mxu0 %v1280
      %1429 = vmatpush1.bf16.msra.mxu0 %v1279
      %1430 = vmatprep.subr.bf16.mxu0 %v1284
      %1431 = vmatpush1.bf16.msra.mxu0 %v1283
      %1432 = vmatprep.subr.bf16.mxu0 %v1288
      %1433 = vmatpush1.bf16.msra.mxu0 %v1287
      %1434 = vmatprep.subr.bf16.mxu0 %v1292
      %1435 = vmatpush1.bf16.msra.mxu0 %v1291
      %1436 = vmatprep.subr.bf16.mxu0 %v1296
      %1437 = vmatpush1.bf16.msra.mxu0 %v1295
      %1438 = vmatprep.subr.bf16.mxu0 %v1300
      %1439 = vmatpush1.bf16.msra.mxu0 %v1299
      %1440 = vmatprep.subr.bf16.mxu0 %v1304
      %1441 = vmatpush1.bf16.msra.mxu0 %v1303
      %1442 = vmatprep.subr.bf16.mxu0 %v1308
      %1443 = vmatpush1.bf16.msra.mxu0 %v1307
      %1444 = vmatprep.subr.bf16.mxu0 %v1312
      %1445 = vmatpush1.bf16.msra.mxu0 %v1311
      %1446 = vmatprep.subr.bf16.mxu0 %v1316
      %1447 = vmatpush1.bf16.msra.mxu0 %v1315
      %1448 = vmatprep.subr.bf16.mxu0 %v1320
      %1449 = vmatpush1.bf16.msra.mxu0 %v1319
      %1450 = vmatprep.subr.bf16.mxu0 0
      %1451 = vmatpush1.bf16.msra.mxu0 0
      %1452 = vmatprep.subr.bf16.mxu0 0
      %1453 = vmatpush1.bf16.msra.mxu0 0
      %1454 = vmatprep.subr.bf16.mxu0 0
      %1455 = vmatpush1.bf16.msra.mxu0 0
      %1456 = vmatprep.subr.bf16.mxu0 0
      %1457 = vmatpush1.bf16.msra.mxu0 0
      %1458 = vmatprep.mubr.bf16.mxu0 %v1370
      %1459 = vmatmul.mubr.bf16.gmra.mrb[0].mxu0 %v1119
      %v1460 = vpop.f32.mrb[0].mxu0
      %v1461 = vadd.f32 0.0, %v1460
      %v1462 = vpop.f32.mrb[0].mxu0
      %v1463 = vadd.f32 0.0, %v1462
      %v1464 = vpop.f32.mrb[0].mxu0
      %v1465 = vadd.f32 0.0, %v1464
      %v1466 = vpop.f32.mrb[0].mxu0
      %v1467 = vadd.f32 0.0, %v1466
      %1468 = vmatprep.mubr.bf16.mxu0 %v1373
      %1469 = vmatmul.mubr.bf16.gmra.mrb[0].mxu0 %v1118
      %v1470 = vpop.f32.mrb[0].mxu0
      %v1471 = vadd.f32 0.0, %v1470
      %v1472 = vpop.f32.mrb[0].mxu0
      %v1473 = vadd.f32 0.0, %v1472
      %v1474 = vpop.f32.mrb[0].mxu0
      %v1475 = vpop.f32.mrb[0].mxu0
      %1476 = vdwg.mxu0
      %v1477 = vadd.f32 %v996, %v1410
      %v1478 = vadd.f32 %v998, %v1412
      %v1479 = vadd.f32 %v1047, %v1461
      %v1480 = vadd.f32 %v1049, %v1463
      %v1481 = vadd.f32 %v1000, %v1414
      %v1482 = vadd.f32 %v1002, %v1416
      %v1483 = vadd.f32 %v1051, %v1465
      %v1484 = vadd.f32 %v1053, %v1467
      %v1485 = vadd.f32 %v1006, %v1420
      %v1486 = vadd.f32 %v1008, %v1422
      %v1487 = vadd.f32 %v1057, %v1471
      %v1488 = vadd.f32 %v1059, %v1473
      %v1489 = vpack.c.bf16 %v232, %v230
      %v1490 = vpack.c.bf16 %v233, %v231
      %s1491 = scalar_lea.vmem %s1, 1152
      %v1492 = vld [vmem:[%s1491] sm:$0xff]
      %v1493 = vld [vmem:[%s1491 + $0x8] sm:$0xff]
      %v1494 = vld [vmem:[%s1491 + $0x10] sm:$0xff]
      %v1495 = vld [vmem:[%s1491 + $0x18] sm:$0xff]
      %v1496 = vld [vmem:[%s1491 + $0x20] sm:$0xff]
      %v1497 = vld [vmem:[%s1491 + $0x28] sm:$0xff]
      %v1498 = vld [vmem:[%s1491 + $0x30] sm:$0xff]
      %v1499 = vld [vmem:[%s1491 + $0x38] sm:$0xff]
      %v1500 = vld [vmem:[%s1491 + $0x40] sm:$0xff]
      %v1501 = vld [vmem:[%s1491 + $0x48] sm:$0xff]
      %v1502 = vld [vmem:[%s1491 + $0x50] sm:$0xff]
      %v1503 = vld [vmem:[%s1491 + $0x58] sm:$0xff]
      %v1504 = vld [vmem:[%s1491 + $0x60] sm:$0xff]
      %v1505 = vld [vmem:[%s1491 + $0x68] sm:$0xff]
      %v1506 = vld [vmem:[%s1491 + $0x70] sm:$0xff]
      %v1507 = vld [vmem:[%s1491 + $0x78] sm:$0xff]
      %v1508 = vld [vmem:[%s1491 + $0x80] sm:$0xff]
      %v1509 = vld [vmem:[%s1491 + $0x88] sm:$0xff]
      %v1510 = vld [vmem:[%s1491 + $0x90] sm:$0xff]
      %v1511 = vld [vmem:[%s1491 + $0x98] sm:$0xff]
      %v1512 = vld [vmem:[%s1491 + $0xa0] sm:$0xff]
      %v1513 = vld [vmem:[%s1491 + $0xa8] sm:$0xff]
      %v1514 = vld [vmem:[%s1491 + $0xb0] sm:$0xff]
      %v1515 = vld [vmem:[%s1491 + $0xb8] sm:$0xff]
      %v1516 = vld [vmem:[%s1491 + $0xc0] sm:$0xff]
      %v1517 = vld [vmem:[%s1491 + $0xc8] sm:$0xff]
      %v1518 = vld [vmem:[%s1491 + $0xd0] sm:$0xff]
      %v1519 = vld [vmem:[%s1491 + $0xd8] sm:$0xff]
      %v1520 = vld [vmem:[%s1491 + $0xe0] sm:$0xff]
      %v1521 = vld [vmem:[%s1491 + $0xe8] sm:$0xff]
      %v1522 = vld [vmem:[%s1491 + $0xf0] sm:$0xff]
      %v1523 = vld [vmem:[%s1491 + $0xf8] sm:$0xff]
      %v1524 = vld [vmem:[%s1491 + $0x100] sm:$0xff]
      %v1525 = vld [vmem:[%s1491 + $0x108] sm:$0xff]
      %v1526 = vld [vmem:[%s1491 + $0x110] sm:$0xff]
      %v1527 = vld [vmem:[%s1491 + $0x118] sm:$0xff]
      %v1528 = vld [vmem:[%s1491 + $0x120] sm:$0xff]
      %v1529 = vld [vmem:[%s1491 + $0x128] sm:$0xff]
      %v1530 = vld [vmem:[%s1491 + $0x130] sm:$0xff]
      %v1531 = vld [vmem:[%s1491 + $0x138] sm:$0xff]
      %v1532 = vld [vmem:[%s1491 + $0x140] sm:$0xff]
      %v1533 = vld [vmem:[%s1491 + $0x148] sm:$0xff]
      %v1534 = vld [vmem:[%s1491 + $0x150] sm:$0xff]
      %v1535 = vld [vmem:[%s1491 + $0x158] sm:$0xff]
      %v1536 = vld [vmem:[%s1491 + $0x160] sm:$0xff]
      %v1537 = vld [vmem:[%s1491 + $0x168] sm:$0xff]
      %v1538 = vld [vmem:[%s1491 + $0x170] sm:$0xff]
      %v1539 = vld [vmem:[%s1491 + $0x178] sm:$0xff]
      %vm1544 = vcmask 1044480
      %v1545 = vrot.slane %v234, 3
      %v1546 = vrot.slane %v1489, 3
      %v1547 = vsel %vm1544, %v1545, %v1546
      %v1548 = vrot.slane %v235, 3
      %v1549 = vrot.slane %v1490, 3
      %v1550 = vsel %vm1544, %v1548, %v1549
      %v1601 = vunpack.c.l.b16 %v1492
      %v1602 = vunpack.c.h.b16 %v1492
      %v1603 = vunpack.c.l.b16 %v1493
      %v1604 = vunpack.c.h.b16 %v1493
      %v1605 = vunpack.c.l.b16 %v1494
      %v1606 = vunpack.c.h.b16 %v1494
      %v1607 = vunpack.c.l.b16 %v1495
      %v1608 = vunpack.c.h.b16 %v1495
      %v1609 = vunpack.c.l.b16 %v1496
      %v1610 = vunpack.c.h.b16 %v1496
      %v1611 = vunpack.c.l.b16 %v1497
      %v1612 = vunpack.c.h.b16 %v1497
      %v1613 = vunpack.c.l.b16 %v1498
      %v1614 = vunpack.c.h.b16 %v1498
      %v1615 = vunpack.c.l.b16 %v1499
      %v1616 = vunpack.c.h.b16 %v1499
      %v1617 = vunpack.c.l.b16 %v1500
      %v1618 = vunpack.c.h.b16 %v1500
      %v1619 = vunpack.c.l.b16 %v1501
      %v1620 = vunpack.c.h.b16 %v1501
      %v1621 = vunpack.c.l.b16 %v1502
      %v1622 = vunpack.c.h.b16 %v1502
      %v1623 = vunpack.c.l.b16 %v1503
      %v1624 = vunpack.c.h.b16 %v1503
      %v1625 = vunpack.c.l.b16 %v1504
      %v1626 = vunpack.c.h.b16 %v1504
      %v1627 = vunpack.c.l.b16 %v1505
      %v1628 = vunpack.c.h.b16 %v1505
      %v1629 = vunpack.c.l.b16 %v1506
      %v1630 = vunpack.c.h.b16 %v1506
      %v1631 = vunpack.c.l.b16 %v1507
      %v1632 = vunpack.c.h.b16 %v1507
      %v1633 = vunpack.c.l.b16 %v1508
      %v1634 = vunpack.c.h.b16 %v1508
      %v1635 = vunpack.c.l.b16 %v1509
      %v1636 = vunpack.c.h.b16 %v1509
      %v1637 = vunpack.c.l.b16 %v1510
      %v1638 = vunpack.c.h.b16 %v1510
      %v1639 = vunpack.c.l.b16 %v1511
      %v1640 = vunpack.c.h.b16 %v1511
      %v1641 = vunpack.c.l.b16 %v1512
      %v1642 = vunpack.c.h.b16 %v1512
      %v1643 = vunpack.c.l.b16 %v1513
      %v1644 = vunpack.c.h.b16 %v1513
      %v1645 = vunpack.c.l.b16 %v1514
      %v1646 = vunpack.c.h.b16 %v1514
      %v1647 = vunpack.c.l.b16 %v1515
      %v1648 = vunpack.c.h.b16 %v1515
      %v1649 = vunpack.c.l.b16 %v1516
      %v1650 = vunpack.c.h.b16 %v1516
      %v1651 = vunpack.c.l.b16 %v1517
      %v1652 = vunpack.c.h.b16 %v1517
      %v1653 = vunpack.c.l.b16 %v1518
      %v1654 = vunpack.c.h.b16 %v1518
      %v1655 = vunpack.c.l.b16 %v1519
      %v1656 = vunpack.c.h.b16 %v1519
      %v1657 = vunpack.c.l.b16 %v1520
      %v1658 = vunpack.c.h.b16 %v1520
      %v1659 = vunpack.c.l.b16 %v1521
      %v1660 = vunpack.c.h.b16 %v1521
      %v1661 = vunpack.c.l.b16 %v1522
      %v1662 = vunpack.c.h.b16 %v1522
      %v1663 = vunpack.c.l.b16 %v1523
      %v1664 = vunpack.c.h.b16 %v1523
      %v1665 = vunpack.c.l.b16 %v1524
      %v1666 = vunpack.c.h.b16 %v1524
      %v1667 = vunpack.c.l.b16 %v1525
      %v1668 = vunpack.c.h.b16 %v1525
      %v1669 = vunpack.c.l.b16 %v1526
      %v1670 = vunpack.c.h.b16 %v1526
      %v1671 = vunpack.c.l.b16 %v1527
      %v1672 = vunpack.c.h.b16 %v1527
      %v1673 = vunpack.c.l.b16 %v1528
      %v1674 = vunpack.c.h.b16 %v1528
      %v1675 = vunpack.c.l.b16 %v1529
      %v1676 = vunpack.c.h.b16 %v1529
      %v1677 = vunpack.c.l.b16 %v1530
      %v1678 = vunpack.c.h.b16 %v1530
      %v1679 = vunpack.c.l.b16 %v1531
      %v1680 = vunpack.c.h.b16 %v1531
      %v1681 = vunpack.c.l.b16 %v1532
      %v1682 = vunpack.c.h.b16 %v1532
      %v1683 = vunpack.c.l.b16 %v1533
      %v1684 = vunpack.c.h.b16 %v1533
      %v1685 = vunpack.c.l.b16 %v1534
      %v1686 = vunpack.c.h.b16 %v1534
      %v1687 = vunpack.c.l.b16 %v1535
      %v1688 = vunpack.c.h.b16 %v1535
      %v1689 = vunpack.c.l.b16 %v1536
      %v1690 = vunpack.c.h.b16 %v1536
      %v1691 = vunpack.c.l.b16 %v1537
      %v1692 = vunpack.c.h.b16 %v1537
      %v1693 = vunpack.c.l.b16 %v1538
      %v1694 = vunpack.c.h.b16 %v1538
      %v1695 = vunpack.c.l.b16 %v1539
      %v1696 = vunpack.c.h.b16 %v1539
      %v1697 = vpack.c.b16 %v1605, %v1601
      %v1698 = vpack.c.b16 %v1606, %v1602
      %v1699 = vpack.c.b16 %v1607, %v1603
      %v1700 = vpack.c.b16 %v1608, %v1604
      %v1701 = vpack.c.b16 %v1613, %v1609
      %v1702 = vpack.c.b16 %v1614, %v1610
      %v1703 = vpack.c.b16 %v1615, %v1611
      %v1704 = vpack.c.b16 %v1616, %v1612
      %v1705 = vpack.c.b16 %v1621, %v1617
      %v1706 = vpack.c.b16 %v1622, %v1618
      %v1707 = vpack.c.b16 %v1623, %v1619
      %v1708 = vpack.c.b16 %v1624, %v1620
      %v1709 = vpack.c.b16 %v1629, %v1625
      %v1710 = vpack.c.b16 %v1630, %v1626
      %v1711 = vpack.c.b16 %v1631, %v1627
      %v1712 = vpack.c.b16 %v1632, %v1628
      %v1713 = vpack.c.b16 %v1637, %v1633
      %v1714 = vpack.c.b16 %v1638, %v1634
      %v1715 = vpack.c.b16 %v1639, %v1635
      %v1716 = vpack.c.b16 %v1640, %v1636
      %v1717 = vpack.c.b16 %v1645, %v1641
      %v1718 = vpack.c.b16 %v1646, %v1642
      %v1719 = vpack.c.b16 %v1647, %v1643
      %v1720 = vpack.c.b16 %v1648, %v1644
      %v1721 = vpack.c.b16 %v1653, %v1649
      %v1722 = vpack.c.b16 %v1654, %v1650
      %v1723 = vpack.c.b16 %v1655, %v1651
      %v1724 = vpack.c.b16 %v1656, %v1652
      %v1725 = vpack.c.b16 %v1661, %v1657
      %v1726 = vpack.c.b16 %v1662, %v1658
      %v1727 = vpack.c.b16 %v1663, %v1659
      %v1728 = vpack.c.b16 %v1664, %v1660
      %v1729 = vpack.c.b16 %v1669, %v1665
      %v1730 = vpack.c.b16 %v1670, %v1666
      %v1731 = vpack.c.b16 %v1671, %v1667
      %v1732 = vpack.c.b16 %v1672, %v1668
      %v1733 = vpack.c.b16 %v1677, %v1673
      %v1734 = vpack.c.b16 %v1678, %v1674
      %v1735 = vpack.c.b16 %v1679, %v1675
      %v1736 = vpack.c.b16 %v1680, %v1676
      %v1737 = vpack.c.b16 %v1685, %v1681
      %v1738 = vpack.c.b16 %v1686, %v1682
      %v1739 = vpack.c.b16 %v1687, %v1683
      %v1740 = vpack.c.b16 %v1688, %v1684
      %v1741 = vpack.c.b16 %v1693, %v1689
      %v1742 = vpack.c.b16 %v1694, %v1690
      %v1743 = vpack.c.b16 %v1695, %v1691
      %v1744 = vpack.c.b16 %v1696, %v1692
      %v1794 = vsel %vm608, %v1550, 0
      %v1797 = vsel %vm608, %v1549, 0
      %1799 = vmatprep.subr.bf16.mxu0 %v1698
      %1800 = vmatpush1.bf16.msra.mxu0 %v1697
      %1801 = vmatprep.subr.bf16.mxu0 %v1702
      %1802 = vmatpush1.bf16.msra.mxu0 %v1701
      %1803 = vmatprep.subr.bf16.mxu0 %v1706
      %1804 = vmatpush1.bf16.msra.mxu0 %v1705
      %1805 = vmatprep.subr.bf16.mxu0 %v1710
      %1806 = vmatpush1.bf16.msra.mxu0 %v1709
      %1807 = vmatprep.subr.bf16.mxu0 %v1714
      %1808 = vmatpush1.bf16.msra.mxu0 %v1713
      %1809 = vmatprep.subr.bf16.mxu0 %v1718
      %1810 = vmatpush1.bf16.msra.mxu0 %v1717
      %1811 = vmatprep.subr.bf16.mxu0 %v1722
      %1812 = vmatpush1.bf16.msra.mxu0 %v1721
      %1813 = vmatprep.subr.bf16.mxu0 %v1726
      %1814 = vmatpush1.bf16.msra.mxu0 %v1725
      %1815 = vmatprep.subr.bf16.mxu0 %v1730
      %1816 = vmatpush1.bf16.msra.mxu0 %v1729
      %1817 = vmatprep.subr.bf16.mxu0 %v1734
      %1818 = vmatpush1.bf16.msra.mxu0 %v1733
      %1819 = vmatprep.subr.bf16.mxu0 %v1738
      %1820 = vmatpush1.bf16.msra.mxu0 %v1737
      %1821 = vmatprep.subr.bf16.mxu0 %v1742
      %1822 = vmatpush1.bf16.msra.mxu0 %v1741
      %1823 = vmatprep.subr.bf16.mxu0 0
      %1824 = vmatpush1.bf16.msra.mxu0 0
      %1825 = vmatprep.subr.bf16.mxu0 0
      %1826 = vmatpush1.bf16.msra.mxu0 0
      %1827 = vmatprep.subr.bf16.mxu0 0
      %1828 = vmatpush1.bf16.msra.mxu0 0
      %1829 = vmatprep.subr.bf16.mxu0 0
      %1830 = vmatpush1.bf16.msra.mxu0 0
      %1831 = vmatprep.mubr.bf16.mxu0 %v1794
      %1832 = vmatmul.mubr.bf16.gmra.mrb[0].mxu0 %v1547
      %v1833 = vpop.f32.mrb[0].mxu0
      %v1834 = vadd.f32 0.0, %v1833
      %v1835 = vpop.f32.mrb[0].mxu0
      %v1836 = vadd.f32 0.0, %v1835
      %v1837 = vpop.f32.mrb[0].mxu0
      %v1838 = vadd.f32 0.0, %v1837
      %v1839 = vpop.f32.mrb[0].mxu0
      %v1840 = vadd.f32 0.0, %v1839
      %1841 = vmatprep.mubr.bf16.mxu0 %v1797
      %1842 = vmatmul.mubr.bf16.gmra.mrb[0].mxu0 %v1546
      %v1843 = vpop.f32.mrb[0].mxu0
      %v1844 = vadd.f32 0.0, %v1843
      %v1845 = vpop.f32.mrb[0].mxu0
      %v1846 = vadd.f32 0.0, %v1845
      %v1847 = vpop.f32.mrb[0].mxu0
      %v1848 = vpop.f32.mrb[0].mxu0
      %1849 = vdwg.mxu0
      %1850 = vmatprep.subr.bf16.mxu0 %v1700
      %1851 = vmatpush1.bf16.msra.mxu0 %v1699
      %1852 = vmatprep.subr.bf16.mxu0 %v1704
      %1853 = vmatpush1.bf16.msra.mxu0 %v1703
      %1854 = vmatprep.subr.bf16.mxu0 %v1708
      %1855 = vmatpush1.bf16.msra.mxu0 %v1707
      %1856 = vmatprep.subr.bf16.mxu0 %v1712
      %1857 = vmatpush1.bf16.msra.mxu0 %v1711
      %1858 = vmatprep.subr.bf16.mxu0 %v1716
      %1859 = vmatpush1.bf16.msra.mxu0 %v1715
      %1860 = vmatprep.subr.bf16.mxu0 %v1720
      %1861 = vmatpush1.bf16.msra.mxu0 %v1719
      %1862 = vmatprep.subr.bf16.mxu0 %v1724
      %1863 = vmatpush1.bf16.msra.mxu0 %v1723
      %1864 = vmatprep.subr.bf16.mxu0 %v1728
      %1865 = vmatpush1.bf16.msra.mxu0 %v1727
      %1866 = vmatprep.subr.bf16.mxu0 %v1732
      %1867 = vmatpush1.bf16.msra.mxu0 %v1731
      %1868 = vmatprep.subr.bf16.mxu0 %v1736
      %1869 = vmatpush1.bf16.msra.mxu0 %v1735
      %1870 = vmatprep.subr.bf16.mxu0 %v1740
      %1871 = vmatpush1.bf16.msra.mxu0 %v1739
      %1872 = vmatprep.subr.bf16.mxu0 %v1744
      %1873 = vmatpush1.bf16.msra.mxu0 %v1743
      %1874 = vmatprep.subr.bf16.mxu0 0
      %1875 = vmatpush1.bf16.msra.mxu0 0
      %1876 = vmatprep.subr.bf16.mxu0 0
      %1877 = vmatpush1.bf16.msra.mxu0 0
      %1878 = vmatprep.subr.bf16.mxu0 0
      %1879 = vmatpush1.bf16.msra.mxu0 0
      %1880 = vmatprep.subr.bf16.mxu0 0
      %1881 = vmatpush1.bf16.msra.mxu0 0
      %1882 = vmatprep.mubr.bf16.mxu0 %v1794
      %1883 = vmatmul.mubr.bf16.gmra.mrb[0].mxu0 %v1547
      %v1884 = vpop.f32.mrb[0].mxu0
      %v1885 = vadd.f32 0.0, %v1884
      %v1886 = vpop.f32.mrb[0].mxu0
      %v1887 = vadd.f32 0.0, %v1886
      %v1888 = vpop.f32.mrb[0].mxu0
      %v1889 = vadd.f32 0.0, %v1888
      %v1890 = vpop.f32.mrb[0].mxu0
      %v1891 = vadd.f32 0.0, %v1890
      %1892 = vmatprep.mubr.bf16.mxu0 %v1797
      %1893 = vmatmul.mubr.bf16.gmra.mrb[0].mxu0 %v1546
      %v1894 = vpop.f32.mrb[0].mxu0
      %v1895 = vadd.f32 0.0, %v1894
      %v1896 = vpop.f32.mrb[0].mxu0
      %v1897 = vadd.f32 0.0, %v1896
      %v1898 = vpop.f32.mrb[0].mxu0
      %v1899 = vpop.f32.mrb[0].mxu0
      %1900 = vdwg.mxu0
      %v1901 = vadd.f32 %v1477, %v1834
      %v1902 = vadd.f32 %v1478, %v1836
      %v1903 = vadd.f32 %v1479, %v1885
      %v1904 = vadd.f32 %v1480, %v1887
      %v1905 = vadd.f32 %v1481, %v1838
      %v1906 = vadd.f32 %v1482, %v1840
      %v1907 = vadd.f32 %v1483, %v1889
      %v1908 = vadd.f32 %v1484, %v1891
      %v1909 = vadd.f32 %v1485, %v1844
      %v1910 = vadd.f32 %v1486, %v1846
      %v1911 = vadd.f32 %v1487, %v1895
      %v1912 = vadd.f32 %v1488, %v1897
      %v1913 = vmax.f32 %v1901, %v1902
      %v1914 = vmax.f32 %v1905, %v1906
      %v1915 = vmax.f32 %v1909, %v1910
      %v1916 = vmax.f32 %v1903, %v1904
      %v1917 = vmax.f32 %v1907, %v1908
      %v1918 = vmax.f32 %v1911, %v1912
      %v1919 = vmax.f32 %v1913, %v1916
      %v1920 = vmax.f32 %v1914, %v1917
      %v1921 = vmax.f32 %v1915, %v1918
      %v1922 = vld [vmem:[%s2] sm:$0x1]
      %v1924 = vlaneseq
      %v1925 = vshrl.u32 %v1924, 7
      %v1926 = vsub.s32 0, %v1925
      %v1927 = vrot.slane %v1922, %v1926
      %v1929 = vadd.f32 %v1919, %v1927
      %v1930 = vadd.f32 %v1920, %v1927
      %v1931 = vadd.f32 %v1921, %v1927
      %v1932 = vmax.f32 %v1929, 0.0
      %v1933 = vmax.f32 %v1930, 0.0
      %v1934 = vmax.f32 %v1931, 0.0
      %v1935 = vpack.c.bf16 %v1933, %v1932
      %v1936 = vld [vmem:[%s3] sm:$0xff]
      %v1937 = vld [vmem:[%s3 + $0x8] sm:$0xff]
      %v1938 = vld [vmem:[%s3 + $0x10] sm:$0xff]
      %v1939 = vld [vmem:[%s3 + $0x18] sm:$0xff]
      %v1940 = vld [vmem:[%s3 + $0x20] sm:$0xff]
      %v1941 = vld [vmem:[%s3 + $0x28] sm:$0xff]
      %v1942 = vld [vmem:[%s3 + $0x30] sm:$0xff]
      %v1943 = vld [vmem:[%s3 + $0x38] sm:$0xff]
      %v1944 = vld [vmem:[%s3 + $0x40] sm:$0xff]
      %v1945 = vld [vmem:[%s3 + $0x48] sm:$0xff]
      %v1946 = vld [vmem:[%s3 + $0x50] sm:$0xff]
      %v1947 = vld [vmem:[%s3 + $0x58] sm:$0xff]
      %v1948 = vld [vmem:[%s3 + $0x60] sm:$0xff]
      %v1949 = vld [vmem:[%s3 + $0x68] sm:$0xff]
      %v1950 = vld [vmem:[%s3 + $0x70] sm:$0xff]
      %v1951 = vld [vmem:[%s3 + $0x78] sm:$0xff]
      %v1952 = vld [vmem:[%s3 + $0x80] sm:$0xff]
      %v1953 = vld [vmem:[%s3 + $0x88] sm:$0xff]
      %v1954 = vld [vmem:[%s3 + $0x90] sm:$0xff]
      %v1955 = vld [vmem:[%s3 + $0x98] sm:$0xff]
      %v1956 = vld [vmem:[%s3 + $0xa0] sm:$0xff]
      %v1957 = vld [vmem:[%s3 + $0xa8] sm:$0xff]
      %v1958 = vld [vmem:[%s3 + $0xb0] sm:$0xff]
      %v1959 = vld [vmem:[%s3 + $0xb8] sm:$0xff]
      %v1960 = vld [vmem:[%s3 + $0xc0] sm:$0xff]
      %v1961 = vld [vmem:[%s3 + $0xc8] sm:$0xff]
      %v1962 = vld [vmem:[%s3 + $0xd0] sm:$0xff]
      %v1963 = vld [vmem:[%s3 + $0xd8] sm:$0xff]
      %v1964 = vld [vmem:[%s3 + $0xe0] sm:$0xff]
      %v1965 = vld [vmem:[%s3 + $0xe8] sm:$0xff]
      %v1966 = vld [vmem:[%s3 + $0xf0] sm:$0xff]
      %v1967 = vld [vmem:[%s3 + $0xf8] sm:$0xff]
      %s1968 = scalar_lea.vmem %s3, 256
      %v1969 = vld [vmem:[%s1968] sm:$0xff]
      %v1970 = vld [vmem:[%s1968 + $0x8] sm:$0xff]
      %v1971 = vld [vmem:[%s1968 + $0x10] sm:$0xff]
      %v1972 = vld [vmem:[%s1968 + $0x18] sm:$0xff]
      %v1973 = vld [vmem:[%s1968 + $0x20] sm:$0xff]
      %v1974 = vld [vmem:[%s1968 + $0x28] sm:$0xff]
      %v1975 = vld [vmem:[%s1968 + $0x30] sm:$0xff]
      %v1976 = vld [vmem:[%s1968 + $0x38] sm:$0xff]
      %v1977 = vld [vmem:[%s1968 + $0x40] sm:$0xff]
      %v1978 = vld [vmem:[%s1968 + $0x48] sm:$0xff]
      %v1979 = vld [vmem:[%s1968 + $0x50] sm:$0xff]
      %v1980 = vld [vmem:[%s1968 + $0x58] sm:$0xff]
      %v1981 = vld [vmem:[%s1968 + $0x60] sm:$0xff]
      %v1982 = vld [vmem:[%s1968 + $0x68] sm:$0xff]
      %v1983 = vld [vmem:[%s1968 + $0x70] sm:$0xff]
      %v1984 = vld [vmem:[%s1968 + $0x78] sm:$0xff]
      %v1985 = vld [vmem:[%s1968 + $0x80] sm:$0xff]
      %v1986 = vld [vmem:[%s1968 + $0x88] sm:$0xff]
      %v1987 = vld [vmem:[%s1968 + $0x90] sm:$0xff]
      %v1988 = vld [vmem:[%s1968 + $0x98] sm:$0xff]
      %v1989 = vld [vmem:[%s1968 + $0xa0] sm:$0xff]
      %v1990 = vld [vmem:[%s1968 + $0xa8] sm:$0xff]
      %v1991 = vld [vmem:[%s1968 + $0xb0] sm:$0xff]
      %v1992 = vld [vmem:[%s1968 + $0xb8] sm:$0xff]
      %v1993 = vld [vmem:[%s1968 + $0xc0] sm:$0xff]
      %v1994 = vld [vmem:[%s1968 + $0xc8] sm:$0xff]
      %v1995 = vld [vmem:[%s1968 + $0xd0] sm:$0xff]
      %v1996 = vld [vmem:[%s1968 + $0xd8] sm:$0xff]
      %v1997 = vld [vmem:[%s1968 + $0xe0] sm:$0xff]
      %v1998 = vld [vmem:[%s1968 + $0xe8] sm:$0xff]
      %v1999 = vld [vmem:[%s1968 + $0xf0] sm:$0xff]
      %v2000 = vld [vmem:[%s1968 + $0xf8] sm:$0xff]
      %v2002 = vshrl.u32 %v1935, 16
      %v2004 = vshll.u32 %v1935, 16
      %v2006 = vrot.slane %v2004, 1
      %v2007 = vor.u32 %v2002, %v2006
      %v2041 = vunpack.c.l.b16 %v1969
      %v2042 = vunpack.c.h.b16 %v1969
      %v2043 = vunpack.c.l.b16 %v1970
      %v2044 = vunpack.c.h.b16 %v1970
      %v2045 = vunpack.c.l.b16 %v1971
      %v2046 = vunpack.c.h.b16 %v1971
      %v2047 = vunpack.c.l.b16 %v1972
      %v2048 = vunpack.c.h.b16 %v1972
      %v2049 = vunpack.c.l.b16 %v1973
      %v2050 = vunpack.c.h.b16 %v1973
      %v2051 = vunpack.c.l.b16 %v1974
      %v2052 = vunpack.c.h.b16 %v1974
      %v2053 = vunpack.c.l.b16 %v1975
      %v2054 = vunpack.c.h.b16 %v1975
      %v2055 = vunpack.c.l.b16 %v1976
      %v2056 = vunpack.c.h.b16 %v1976
      %v2057 = vunpack.c.l.b16 %v1977
      %v2058 = vunpack.c.h.b16 %v1977
      %v2059 = vunpack.c.l.b16 %v1978
      %v2060 = vunpack.c.h.b16 %v1978
      %v2061 = vunpack.c.l.b16 %v1979
      %v2062 = vunpack.c.h.b16 %v1979
      %v2063 = vunpack.c.l.b16 %v1980
      %v2064 = vunpack.c.h.b16 %v1980
      %v2065 = vunpack.c.l.b16 %v1981
      %v2066 = vunpack.c.h.b16 %v1981
      %v2067 = vunpack.c.l.b16 %v1982
      %v2068 = vunpack.c.h.b16 %v1982
      %v2069 = vunpack.c.l.b16 %v1983
      %v2070 = vunpack.c.h.b16 %v1983
      %v2071 = vunpack.c.l.b16 %v1984
      %v2072 = vunpack.c.h.b16 %v1984
      %v2073 = vunpack.c.l.b16 %v1985
      %v2074 = vunpack.c.h.b16 %v1985
      %v2075 = vunpack.c.l.b16 %v1986
      %v2076 = vunpack.c.h.b16 %v1986
      %v2077 = vunpack.c.l.b16 %v1987
      %v2078 = vunpack.c.h.b16 %v1987
      %v2079 = vunpack.c.l.b16 %v1988
      %v2080 = vunpack.c.h.b16 %v1988
      %v2081 = vunpack.c.l.b16 %v1989
      %v2082 = vunpack.c.h.b16 %v1989
      %v2083 = vunpack.c.l.b16 %v1990
      %v2084 = vunpack.c.h.b16 %v1990
      %v2085 = vunpack.c.l.b16 %v1991
      %v2086 = vunpack.c.h.b16 %v1991
      %v2087 = vunpack.c.l.b16 %v1992
      %v2088 = vunpack.c.h.b16 %v1992
      %v2089 = vunpack.c.l.b16 %v1993
      %v2090 = vunpack.c.h.b16 %v1993
      %v2091 = vunpack.c.l.b16 %v1994
      %v2092 = vunpack.c.h.b16 %v1994
      %v2093 = vunpack.c.l.b16 %v1995
      %v2094 = vunpack.c.h.b16 %v1995
      %v2095 = vunpack.c.l.b16 %v1996
      %v2096 = vunpack.c.h.b16 %v1996
      %v2097 = vunpack.c.l.b16 %v1997
      %v2098 = vunpack.c.h.b16 %v1997
      %v2099 = vunpack.c.l.b16 %v1998
      %v2100 = vunpack.c.h.b16 %v1998
      %v2101 = vunpack.c.l.b16 %v1999
      %v2102 = vunpack.c.h.b16 %v1999
      %v2103 = vunpack.c.l.b16 %v2000
      %v2104 = vunpack.c.h.b16 %v2000
      %v2105 = vpack.c.b16 %v2045, %v2041
      %v2106 = vpack.c.b16 %v2046, %v2042
      %v2107 = vpack.c.b16 %v2047, %v2043
      %v2108 = vpack.c.b16 %v2048, %v2044
      %v2109 = vpack.c.b16 %v2053, %v2049
      %v2110 = vpack.c.b16 %v2054, %v2050
      %v2111 = vpack.c.b16 %v2055, %v2051
      %v2112 = vpack.c.b16 %v2056, %v2052
      %v2113 = vpack.c.b16 %v2061, %v2057
      %v2114 = vpack.c.b16 %v2062, %v2058
      %v2115 = vpack.c.b16 %v2063, %v2059
      %v2116 = vpack.c.b16 %v2064, %v2060
      %v2117 = vpack.c.b16 %v2069, %v2065
      %v2118 = vpack.c.b16 %v2070, %v2066
      %v2119 = vpack.c.b16 %v2071, %v2067
      %v2120 = vpack.c.b16 %v2072, %v2068
      %v2121 = vpack.c.b16 %v2077, %v2073
      %v2122 = vpack.c.b16 %v2078, %v2074
      %v2123 = vpack.c.b16 %v2079, %v2075
      %v2124 = vpack.c.b16 %v2080, %v2076
      %v2125 = vpack.c.b16 %v2085, %v2081
      %v2126 = vpack.c.b16 %v2086, %v2082
      %v2127 = vpack.c.b16 %v2087, %v2083
      %v2128 = vpack.c.b16 %v2088, %v2084
      %v2129 = vpack.c.b16 %v2093, %v2089
      %v2130 = vpack.c.b16 %v2094, %v2090
      %v2131 = vpack.c.b16 %v2095, %v2091
      %v2132 = vpack.c.b16 %v2096, %v2092
      %v2133 = vpack.c.b16 %v2101, %v2097
      %v2134 = vpack.c.b16 %v2102, %v2098
      %v2135 = vpack.c.b16 %v2103, %v2099
      %v2136 = vpack.c.b16 %v2104, %v2100
      %2169 = vmatprep.subr.bf16.mxu0 %v2106
      %2170 = vmatpush1.bf16.msra.mxu0 %v2105
      %2171 = vmatprep.subr.bf16.mxu0 %v2110
      %2172 = vmatpush1.bf16.msra.mxu0 %v2109
      %2173 = vmatprep.subr.bf16.mxu0 %v2114
      %2174 = vmatpush1.bf16.msra.mxu0 %v2113
      %2175 = vmatprep.subr.bf16.mxu0 %v2118
      %2176 = vmatpush1.bf16.msra.mxu0 %v2117
      %2177 = vmatprep.subr.bf16.mxu0 %v2122
      %2178 = vmatpush1.bf16.msra.mxu0 %v2121
      %2179 = vmatprep.subr.bf16.mxu0 %v2126
      %2180 = vmatpush1.bf16.msra.mxu0 %v2125
      %2181 = vmatprep.subr.bf16.mxu0 %v2130
      %2182 = vmatpush1.bf16.msra.mxu0 %v2129
      %2183 = vmatprep.subr.bf16.mxu0 %v2134
      %2184 = vmatpush1.bf16.msra.mxu0 %v2133
      %2185 = vmatprep.subr.bf16.mxu0 0
      %2186 = vmatpush1.bf16.msra.mxu0 0
      %2187 = vmatprep.subr.bf16.mxu0 0
      %2188 = vmatpush1.bf16.msra.mxu0 0
      %2189 = vmatprep.subr.bf16.mxu0 0
      %2190 = vmatpush1.bf16.msra.mxu0 0
      %2191 = vmatprep.subr.bf16.mxu0 0
      %2192 = vmatpush1.bf16.msra.mxu0 0
      %2193 = vmatprep.subr.bf16.mxu0 0
      %2194 = vmatpush1.bf16.msra.mxu0 0
      %2195 = vmatprep.subr.bf16.mxu0 0
      %2196 = vmatpush1.bf16.msra.mxu0 0
      %2197 = vmatprep.subr.bf16.mxu0 0
      %2198 = vmatpush1.bf16.msra.mxu0 0
      %2199 = vmatprep.subr.bf16.mxu0 0
      %2200 = vmatpush1.bf16.msra.mxu0 0
      %2201 = vmatprep.mubr.bf16.mxu0 0
      %2202 = vmatmul.mubr.bf16.gmra.mrb[0].mxu0 %v2007
      %v2203 = vpop.f32.mrb[0].mxu0
      %v2204 = vadd.f32 0.0, %v2203
      %v2205 = vpop.f32.mrb[0].mxu0
      %v2206 = vadd.f32 0.0, %v2205
      %v2207 = vpop.f32.mrb[0].mxu0
      %v2208 = vadd.f32 0.0, %v2207
      %v2209 = vpop.f32.mrb[0].mxu0
      %v2210 = vadd.f32 0.0, %v2209
      %2211 = vdwg.mxu0
      %2212 = vmatprep.subr.bf16.mxu0 %v2108
      %2213 = vmatpush1.bf16.msra.mxu0 %v2107
      %2214 = vmatprep.subr.bf16.mxu0 %v2112
      %2215 = vmatpush1.bf16.msra.mxu0 %v2111
      %2216 = vmatprep.subr.bf16.mxu0 %v2116
      %2217 = vmatpush1.bf16.msra.mxu0 %v2115
      %2218 = vmatprep.subr.bf16.mxu0 %v2120
      %2219 = vmatpush1.bf16.msra.mxu0 %v2119
      %2220 = vmatprep.subr.bf16.mxu0 %v2124
      %2221 = vmatpush1.bf16.msra.mxu0 %v2123
      %2222 = vmatprep.subr.bf16.mxu0 %v2128
      %2223 = vmatpush1.bf16.msra.mxu0 %v2127
      %2224 = vmatprep.subr.bf16.mxu0 %v2132
      %2225 = vmatpush1.bf16.msra.mxu0 %v2131
      %2226 = vmatprep.subr.bf16.mxu0 %v2136
      %2227 = vmatpush1.bf16.msra.mxu0 %v2135
      %2228 = vmatprep.subr.bf16.mxu0 0
      %2229 = vmatpush1.bf16.msra.mxu0 0
      %2230 = vmatprep.subr.bf16.mxu0 0
      %2231 = vmatpush1.bf16.msra.mxu0 0
      %2232 = vmatprep.subr.bf16.mxu0 0
      %2233 = vmatpush1.bf16.msra.mxu0 0
      %2234 = vmatprep.subr.bf16.mxu0 0
      %2235 = vmatpush1.bf16.msra.mxu0 0
      %2236 = vmatprep.subr.bf16.mxu0 0
      %2237 = vmatpush1.bf16.msra.mxu0 0
      %2238 = vmatprep.subr.bf16.mxu0 0
      %2239 = vmatpush1.bf16.msra.mxu0 0
      %2240 = vmatprep.subr.bf16.mxu0 0
      %2241 = vmatpush1.bf16.msra.mxu0 0
      %2242 = vmatprep.subr.bf16.mxu0 0
      %2243 = vmatpush1.bf16.msra.mxu0 0
      %2244 = vmatprep.mubr.bf16.mxu0 0
      %2245 = vmatmul.mubr.bf16.gmra.mrb[0].mxu0 %v2007
      %v2246 = vpop.f32.mrb[0].mxu0
      %v2247 = vadd.f32 0.0, %v2246
      %v2248 = vpop.f32.mrb[0].mxu0
      %v2249 = vadd.f32 0.0, %v2248
      %v2250 = vpop.f32.mrb[0].mxu0
      %v2251 = vadd.f32 0.0, %v2250
      %v2252 = vpop.f32.mrb[0].mxu0
      %v2253 = vadd.f32 0.0, %v2252
      %2254 = vdwg.mxu0
      %v2287 = vunpack.c.l.b16 %v1936
      %v2288 = vunpack.c.h.b16 %v1936
      %v2289 = vunpack.c.l.b16 %v1937
      %v2290 = vunpack.c.h.b16 %v1937
      %v2291 = vunpack.c.l.b16 %v1938
      %v2292 = vunpack.c.h.b16 %v1938
      %v2293 = vunpack.c.l.b16 %v1939
      %v2294 = vunpack.c.h.b16 %v1939
      %v2295 = vunpack.c.l.b16 %v1940
      %v2296 = vunpack.c.h.b16 %v1940
      %v2297 = vunpack.c.l.b16 %v1941
      %v2298 = vunpack.c.h.b16 %v1941
      %v2299 = vunpack.c.l.b16 %v1942
      %v2300 = vunpack.c.h.b16 %v1942
      %v2301 = vunpack.c.l.b16 %v1943
      %v2302 = vunpack.c.h.b16 %v1943
      %v2303 = vunpack.c.l.b16 %v1944
      %v2304 = vunpack.c.h.b16 %v1944
      %v2305 = vunpack.c.l.b16 %v1945
      %v2306 = vunpack.c.h.b16 %v1945
      %v2307 = vunpack.c.l.b16 %v1946
      %v2308 = vunpack.c.h.b16 %v1946
      %v2309 = vunpack.c.l.b16 %v1947
      %v2310 = vunpack.c.h.b16 %v1947
      %v2311 = vunpack.c.l.b16 %v1948
      %v2312 = vunpack.c.h.b16 %v1948
      %v2313 = vunpack.c.l.b16 %v1949
      %v2314 = vunpack.c.h.b16 %v1949
      %v2315 = vunpack.c.l.b16 %v1950
      %v2316 = vunpack.c.h.b16 %v1950
      %v2317 = vunpack.c.l.b16 %v1951
      %v2318 = vunpack.c.h.b16 %v1951
      %v2319 = vunpack.c.l.b16 %v1952
      %v2320 = vunpack.c.h.b16 %v1952
      %v2321 = vunpack.c.l.b16 %v1953
      %v2322 = vunpack.c.h.b16 %v1953
      %v2323 = vunpack.c.l.b16 %v1954
      %v2324 = vunpack.c.h.b16 %v1954
      %v2325 = vunpack.c.l.b16 %v1955
      %v2326 = vunpack.c.h.b16 %v1955
      %v2327 = vunpack.c.l.b16 %v1956
      %v2328 = vunpack.c.h.b16 %v1956
      %v2329 = vunpack.c.l.b16 %v1957
      %v2330 = vunpack.c.h.b16 %v1957
      %v2331 = vunpack.c.l.b16 %v1958
      %v2332 = vunpack.c.h.b16 %v1958
      %v2333 = vunpack.c.l.b16 %v1959
      %v2334 = vunpack.c.h.b16 %v1959
      %v2335 = vunpack.c.l.b16 %v1960
      %v2336 = vunpack.c.h.b16 %v1960
      %v2337 = vunpack.c.l.b16 %v1961
      %v2338 = vunpack.c.h.b16 %v1961
      %v2339 = vunpack.c.l.b16 %v1962
      %v2340 = vunpack.c.h.b16 %v1962
      %v2341 = vunpack.c.l.b16 %v1963
      %v2342 = vunpack.c.h.b16 %v1963
      %v2343 = vunpack.c.l.b16 %v1964
      %v2344 = vunpack.c.h.b16 %v1964
      %v2345 = vunpack.c.l.b16 %v1965
      %v2346 = vunpack.c.h.b16 %v1965
      %v2347 = vunpack.c.l.b16 %v1966
      %v2348 = vunpack.c.h.b16 %v1966
      %v2349 = vunpack.c.l.b16 %v1967
      %v2350 = vunpack.c.h.b16 %v1967
      %v2351 = vpack.c.b16 %v2291, %v2287
      %v2352 = vpack.c.b16 %v2292, %v2288
      %v2353 = vpack.c.b16 %v2293, %v2289
      %v2354 = vpack.c.b16 %v2294, %v2290
      %v2355 = vpack.c.b16 %v2299, %v2295
      %v2356 = vpack.c.b16 %v2300, %v2296
      %v2357 = vpack.c.b16 %v2301, %v2297
      %v2358 = vpack.c.b16 %v2302, %v2298
      %v2359 = vpack.c.b16 %v2307, %v2303
      %v2360 = vpack.c.b16 %v2308, %v2304
      %v2361 = vpack.c.b16 %v2309, %v2305
      %v2362 = vpack.c.b16 %v2310, %v2306
      %v2363 = vpack.c.b16 %v2315, %v2311
      %v2364 = vpack.c.b16 %v2316, %v2312
      %v2365 = vpack.c.b16 %v2317, %v2313
      %v2366 = vpack.c.b16 %v2318, %v2314
      %v2367 = vpack.c.b16 %v2323, %v2319
      %v2368 = vpack.c.b16 %v2324, %v2320
      %v2369 = vpack.c.b16 %v2325, %v2321
      %v2370 = vpack.c.b16 %v2326, %v2322
      %v2371 = vpack.c.b16 %v2331, %v2327
      %v2372 = vpack.c.b16 %v2332, %v2328
      %v2373 = vpack.c.b16 %v2333, %v2329
      %v2374 = vpack.c.b16 %v2334, %v2330
      %v2375 = vpack.c.b16 %v2339, %v2335
      %v2376 = vpack.c.b16 %v2340, %v2336
      %v2377 = vpack.c.b16 %v2341, %v2337
      %v2378 = vpack.c.b16 %v2342, %v2338
      %v2379 = vpack.c.b16 %v2347, %v2343
      %v2380 = vpack.c.b16 %v2348, %v2344
      %v2381 = vpack.c.b16 %v2349, %v2345
      %v2382 = vpack.c.b16 %v2350, %v2346
      %2415 = vmatprep.subr.bf16.mxu0 %v2352
      %2416 = vmatpush1.bf16.msra.mxu0 %v2351
      %2417 = vmatprep.subr.bf16.mxu0 %v2356
      %2418 = vmatpush1.bf16.msra.mxu0 %v2355
      %2419 = vmatprep.subr.bf16.mxu0 %v2360
      %2420 = vmatpush1.bf16.msra.mxu0 %v2359
      %2421 = vmatprep.subr.bf16.mxu0 %v2364
      %2422 = vmatpush1.bf16.msra.mxu0 %v2363
      %2423 = vmatprep.subr.bf16.mxu0 %v2368
      %2424 = vmatpush1.bf16.msra.mxu0 %v2367
      %2425 = vmatprep.subr.bf16.mxu0 %v2372
      %2426 = vmatpush1.bf16.msra.mxu0 %v2371
      %2427 = vmatprep.subr.bf16.mxu0 %v2376
      %2428 = vmatpush1.bf16.msra.mxu0 %v2375
      %2429 = vmatprep.subr.bf16.mxu0 %v2380
      %2430 = vmatpush1.bf16.msra.mxu0 %v2379
      %2431 = vmatprep.subr.bf16.mxu0 0
      %2432 = vmatpush1.bf16.msra.mxu0 0
      %2433 = vmatprep.subr.bf16.mxu0 0
      %2434 = vmatpush1.bf16.msra.mxu0 0
      %2435 = vmatprep.subr.bf16.mxu0 0
      %2436 = vmatpush1.bf16.msra.mxu0 0
      %2437 = vmatprep.subr.bf16.mxu0 0
      %2438 = vmatpush1.bf16.msra.mxu0 0
      %2439 = vmatprep.subr.bf16.mxu0 0
      %2440 = vmatpush1.bf16.msra.mxu0 0
      %2441 = vmatprep.subr.bf16.mxu0 0
      %2442 = vmatpush1.bf16.msra.mxu0 0
      %2443 = vmatprep.subr.bf16.mxu0 0
      %2444 = vmatpush1.bf16.msra.mxu0 0
      %2445 = vmatprep.subr.bf16.mxu0 0
      %2446 = vmatpush1.bf16.msra.mxu0 0
      %2447 = vmatprep.mubr.bf16.mxu0 0
      %2448 = vmatmul.mubr.bf16.gmra.mrb[0].mxu0 %v1935
      %v2449 = vpop.f32.mrb[0].mxu0
      %v2450 = vadd.f32 %v2204, %v2449
      %v2451 = vpop.f32.mrb[0].mxu0
      %v2452 = vadd.f32 %v2206, %v2451
      %v2453 = vpop.f32.mrb[0].mxu0
      %v2454 = vadd.f32 %v2208, %v2453
      %v2455 = vpop.f32.mrb[0].mxu0
      %v2456 = vadd.f32 %v2210, %v2455
      %2457 = vdwg.mxu0
      %2458 = vmatprep.subr.bf16.mxu0 %v2354
      %2459 = vmatpush1.bf16.msra.mxu0 %v2353
      %2460 = vmatprep.subr.bf16.mxu0 %v2358
      %2461 = vmatpush1.bf16.msra.mxu0 %v2357
      %2462 = vmatprep.subr.bf16.mxu0 %v2362
      %2463 = vmatpush1.bf16.msra.mxu0 %v2361
      %2464 = vmatprep.subr.bf16.mxu0 %v2366
      %2465 = vmatpush1.bf16.msra.mxu0 %v2365
      %2466 = vmatprep.subr.bf16.mxu0 %v2370
      %2467 = vmatpush1.bf16.msra.mxu0 %v2369
      %2468 = vmatprep.subr.bf16.mxu0 %v2374
      %2469 = vmatpush1.bf16.msra.mxu0 %v2373
      %2470 = vmatprep.subr.bf16.mxu0 %v2378
      %2471 = vmatpush1.bf16.msra.mxu0 %v2377
      %2472 = vmatprep.subr.bf16.mxu0 %v2382
      %2473 = vmatpush1.bf16.msra.mxu0 %v2381
      %2474 = vmatprep.subr.bf16.mxu0 0
      %2475 = vmatpush1.bf16.msra.mxu0 0
      %2476 = vmatprep.subr.bf16.mxu0 0
      %2477 = vmatpush1.bf16.msra.mxu0 0
      %2478 = vmatprep.subr.bf16.mxu0 0
      %2479 = vmatpush1.bf16.msra.mxu0 0
      %2480 = vmatprep.subr.bf16.mxu0 0
      %2481 = vmatpush1.bf16.msra.mxu0 0
      %2482 = vmatprep.subr.bf16.mxu0 0
      %2483 = vmatpush1.bf16.msra.mxu0 0
      %2484 = vmatprep.subr.bf16.mxu0 0
      %2485 = vmatpush1.bf16.msra.mxu0 0
      %2486 = vmatprep.subr.bf16.mxu0 0
      %2487 = vmatpush1.bf16.msra.mxu0 0
      %2488 = vmatprep.subr.bf16.mxu0 0
      %2489 = vmatpush1.bf16.msra.mxu0 0
      %2490 = vmatprep.mubr.bf16.mxu0 0
      %2491 = vmatmul.mubr.bf16.gmra.mrb[0].mxu0 %v1935
      %v2492 = vpop.f32.mrb[0].mxu0
      %v2493 = vadd.f32 %v2247, %v2492
      %v2494 = vpop.f32.mrb[0].mxu0
      %v2495 = vadd.f32 %v2249, %v2494
      %v2496 = vpop.f32.mrb[0].mxu0
      %v2497 = vadd.f32 %v2251, %v2496
      %v2498 = vpop.f32.mrb[0].mxu0
      %v2499 = vadd.f32 %v2253, %v2498
      %2500 = vdwg.mxu0
      %v2501 = vpack.c.bf16 %v1934, %v1934
      %s2502 = scalar_lea.vmem %s3, 512
      %v2503 = vld [vmem:[%s2502] sm:$0xff]
      %v2504 = vld [vmem:[%s2502 + $0x8] sm:$0xff]
      %v2505 = vld [vmem:[%s2502 + $0x10] sm:$0xff]
      %v2506 = vld [vmem:[%s2502 + $0x18] sm:$0xff]
      %v2507 = vld [vmem:[%s2502 + $0x20] sm:$0xff]
      %v2508 = vld [vmem:[%s2502 + $0x28] sm:$0xff]
      %v2509 = vld [vmem:[%s2502 + $0x30] sm:$0xff]
      %v2510 = vld [vmem:[%s2502 + $0x38] sm:$0xff]
      %v2511 = vld [vmem:[%s2502 + $0x40] sm:$0xff]
      %v2512 = vld [vmem:[%s2502 + $0x48] sm:$0xff]
      %v2513 = vld [vmem:[%s2502 + $0x50] sm:$0xff]
      %v2514 = vld [vmem:[%s2502 + $0x58] sm:$0xff]
      %v2515 = vld [vmem:[%s2502 + $0x60] sm:$0xff]
      %v2516 = vld [vmem:[%s2502 + $0x68] sm:$0xff]
      %v2517 = vld [vmem:[%s2502 + $0x70] sm:$0xff]
      %v2518 = vld [vmem:[%s2502 + $0x78] sm:$0xff]
      %v2519 = vld [vmem:[%s2502 + $0x80] sm:$0xff]
      %v2520 = vld [vmem:[%s2502 + $0x88] sm:$0xff]
      %v2521 = vld [vmem:[%s2502 + $0x90] sm:$0xff]
      %v2522 = vld [vmem:[%s2502 + $0x98] sm:$0xff]
      %v2523 = vld [vmem:[%s2502 + $0xa0] sm:$0xff]
      %v2524 = vld [vmem:[%s2502 + $0xa8] sm:$0xff]
      %v2525 = vld [vmem:[%s2502 + $0xb0] sm:$0xff]
      %v2526 = vld [vmem:[%s2502 + $0xb8] sm:$0xff]
      %v2527 = vld [vmem:[%s2502 + $0xc0] sm:$0xff]
      %v2528 = vld [vmem:[%s2502 + $0xc8] sm:$0xff]
      %v2529 = vld [vmem:[%s2502 + $0xd0] sm:$0xff]
      %v2530 = vld [vmem:[%s2502 + $0xd8] sm:$0xff]
      %v2531 = vld [vmem:[%s2502 + $0xe0] sm:$0xff]
      %v2532 = vld [vmem:[%s2502 + $0xe8] sm:$0xff]
      %v2533 = vld [vmem:[%s2502 + $0xf0] sm:$0xff]
      %v2534 = vld [vmem:[%s2502 + $0xf8] sm:$0xff]
      %v2535 = vrot.slane %v2002, 2
      %v2536 = vrot.slane %v2004, 3
      %v2537 = vor.u32 %v2535, %v2536
      %v2539 = vshrl.u32 %v2501, 16
      %v2541 = vrot.slane %v2539, 2
      %v2542 = vshll.u32 %v2501, 16
      %v2544 = vrot.slane %v2542, 3
      %v2545 = vor.u32 %v2541, %v2544
      %v2546 = vsel %vm1112, %v2537, %v2545
      %v2580 = vunpack.c.l.b16 %v2503
      %v2581 = vunpack.c.h.b16 %v2503
      %v2582 = vunpack.c.l.b16 %v2504
      %v2583 = vunpack.c.h.b16 %v2504
      %v2584 = vunpack.c.l.b16 %v2505
      %v2585 = vunpack.c.h.b16 %v2505
      %v2586 = vunpack.c.l.b16 %v2506
      %v2587 = vunpack.c.h.b16 %v2506
      %v2588 = vunpack.c.l.b16 %v2507
      %v2589 = vunpack.c.h.b16 %v2507
      %v2590 = vunpack.c.l.b16 %v2508
      %v2591 = vunpack.c.h.b16 %v2508
      %v2592 = vunpack.c.l.b16 %v2509
      %v2593 = vunpack.c.h.b16 %v2509
      %v2594 = vunpack.c.l.b16 %v2510
      %v2595 = vunpack.c.h.b16 %v2510
      %v2596 = vunpack.c.l.b16 %v2511
      %v2597 = vunpack.c.h.b16 %v2511
      %v2598 = vunpack.c.l.b16 %v2512
      %v2599 = vunpack.c.h.b16 %v2512
      %v2600 = vunpack.c.l.b16 %v2513
      %v2601 = vunpack.c.h.b16 %v2513
      %v2602 = vunpack.c.l.b16 %v2514
      %v2603 = vunpack.c.h.b16 %v2514
      %v2604 = vunpack.c.l.b16 %v2515
      %v2605 = vunpack.c.h.b16 %v2515
      %v2606 = vunpack.c.l.b16 %v2516
      %v2607 = vunpack.c.h.b16 %v2516
      %v2608 = vunpack.c.l.b16 %v2517
      %v2609 = vunpack.c.h.b16 %v2517
      %v2610 = vunpack.c.l.b16 %v2518
      %v2611 = vunpack.c.h.b16 %v2518
      %v2612 = vunpack.c.l.b16 %v2519
      %v2613 = vunpack.c.h.b16 %v2519
      %v2614 = vunpack.c.l.b16 %v2520
      %v2615 = vunpack.c.h.b16 %v2520
      %v2616 = vunpack.c.l.b16 %v2521
      %v2617 = vunpack.c.h.b16 %v2521
      %v2618 = vunpack.c.l.b16 %v2522
      %v2619 = vunpack.c.h.b16 %v2522
      %v2620 = vunpack.c.l.b16 %v2523
      %v2621 = vunpack.c.h.b16 %v2523
      %v2622 = vunpack.c.l.b16 %v2524
      %v2623 = vunpack.c.h.b16 %v2524
      %v2624 = vunpack.c.l.b16 %v2525
      %v2625 = vunpack.c.h.b16 %v2525
      %v2626 = vunpack.c.l.b16 %v2526
      %v2627 = vunpack.c.h.b16 %v2526
      %v2628 = vunpack.c.l.b16 %v2527
      %v2629 = vunpack.c.h.b16 %v2527
      %v2630 = vunpack.c.l.b16 %v2528
      %v2631 = vunpack.c.h.b16 %v2528
      %v2632 = vunpack.c.l.b16 %v2529
      %v2633 = vunpack.c.h.b16 %v2529
      %v2634 = vunpack.c.l.b16 %v2530
      %v2635 = vunpack.c.h.b16 %v2530
      %v2636 = vunpack.c.l.b16 %v2531
      %v2637 = vunpack.c.h.b16 %v2531
      %v2638 = vunpack.c.l.b16 %v2532
      %v2639 = vunpack.c.h.b16 %v2532
      %v2640 = vunpack.c.l.b16 %v2533
      %v2641 = vunpack.c.h.b16 %v2533
      %v2642 = vunpack.c.l.b16 %v2534
      %v2643 = vunpack.c.h.b16 %v2534
      %v2644 = vpack.c.b16 %v2584, %v2580
      %v2645 = vpack.c.b16 %v2585, %v2581
      %v2646 = vpack.c.b16 %v2586, %v2582
      %v2647 = vpack.c.b16 %v2587, %v2583
      %v2648 = vpack.c.b16 %v2592, %v2588
      %v2649 = vpack.c.b16 %v2593, %v2589
      %v2650 = vpack.c.b16 %v2594, %v2590
      %v2651 = vpack.c.b16 %v2595, %v2591
      %v2652 = vpack.c.b16 %v2600, %v2596
      %v2653 = vpack.c.b16 %v2601, %v2597
      %v2654 = vpack.c.b16 %v2602, %v2598
      %v2655 = vpack.c.b16 %v2603, %v2599
      %v2656 = vpack.c.b16 %v2608, %v2604
      %v2657 = vpack.c.b16 %v2609, %v2605
      %v2658 = vpack.c.b16 %v2610, %v2606
      %v2659 = vpack.c.b16 %v2611, %v2607
      %v2660 = vpack.c.b16 %v2616, %v2612
      %v2661 = vpack.c.b16 %v2617, %v2613
      %v2662 = vpack.c.b16 %v2618, %v2614
      %v2663 = vpack.c.b16 %v2619, %v2615
      %v2664 = vpack.c.b16 %v2624, %v2620
      %v2665 = vpack.c.b16 %v2625, %v2621
      %v2666 = vpack.c.b16 %v2626, %v2622
      %v2667 = vpack.c.b16 %v2627, %v2623
      %v2668 = vpack.c.b16 %v2632, %v2628
      %v2669 = vpack.c.b16 %v2633, %v2629
      %v2670 = vpack.c.b16 %v2634, %v2630
      %v2671 = vpack.c.b16 %v2635, %v2631
      %v2672 = vpack.c.b16 %v2640, %v2636
      %v2673 = vpack.c.b16 %v2641, %v2637
      %v2674 = vpack.c.b16 %v2642, %v2638
      %v2675 = vpack.c.b16 %v2643, %v2639
      %2708 = vmatprep.subr.bf16.mxu0 %v2645
      %2709 = vmatpush1.bf16.msra.mxu0 %v2644
      %2710 = vmatprep.subr.bf16.mxu0 %v2649
      %2711 = vmatpush1.bf16.msra.mxu0 %v2648
      %2712 = vmatprep.subr.bf16.mxu0 %v2653
      %2713 = vmatpush1.bf16.msra.mxu0 %v2652
      %2714 = vmatprep.subr.bf16.mxu0 %v2657
      %2715 = vmatpush1.bf16.msra.mxu0 %v2656
      %2716 = vmatprep.subr.bf16.mxu0 %v2661
      %2717 = vmatpush1.bf16.msra.mxu0 %v2660
      %2718 = vmatprep.subr.bf16.mxu0 %v2665
      %2719 = vmatpush1.bf16.msra.mxu0 %v2664
      %2720 = vmatprep.subr.bf16.mxu0 %v2669
      %2721 = vmatpush1.bf16.msra.mxu0 %v2668
      %2722 = vmatprep.subr.bf16.mxu0 %v2673
      %2723 = vmatpush1.bf16.msra.mxu0 %v2672
      %2724 = vmatprep.subr.bf16.mxu0 0
      %2725 = vmatpush1.bf16.msra.mxu0 0
      %2726 = vmatprep.subr.bf16.mxu0 0
      %2727 = vmatpush1.bf16.msra.mxu0 0
      %2728 = vmatprep.subr.bf16.mxu0 0
      %2729 = vmatpush1.bf16.msra.mxu0 0
      %2730 = vmatprep.subr.bf16.mxu0 0
      %2731 = vmatpush1.bf16.msra.mxu0 0
      %2732 = vmatprep.subr.bf16.mxu0 0
      %2733 = vmatpush1.bf16.msra.mxu0 0
      %2734 = vmatprep.subr.bf16.mxu0 0
      %2735 = vmatpush1.bf16.msra.mxu0 0
      %2736 = vmatprep.subr.bf16.mxu0 0
      %2737 = vmatpush1.bf16.msra.mxu0 0
      %2738 = vmatprep.subr.bf16.mxu0 0
      %2739 = vmatpush1.bf16.msra.mxu0 0
      %2740 = vmatprep.mubr.bf16.mxu0 0
      %2741 = vmatmul.mubr.bf16.gmra.mrb[0].mxu0 %v2546
      %v2742 = vpop.f32.mrb[0].mxu0
      %v2743 = vadd.f32 0.0, %v2742
      %v2744 = vpop.f32.mrb[0].mxu0
      %v2745 = vadd.f32 0.0, %v2744
      %v2746 = vpop.f32.mrb[0].mxu0
      %v2747 = vadd.f32 0.0, %v2746
      %v2748 = vpop.f32.mrb[0].mxu0
      %v2749 = vadd.f32 0.0, %v2748
      %2750 = vdwg.mxu0
      %2751 = vmatprep.subr.bf16.mxu0 %v2647
      %2752 = vmatpush1.bf16.msra.mxu0 %v2646
      %2753 = vmatprep.subr.bf16.mxu0 %v2651
      %2754 = vmatpush1.bf16.msra.mxu0 %v2650
      %2755 = vmatprep.subr.bf16.mxu0 %v2655
      %2756 = vmatpush1.bf16.msra.mxu0 %v2654
      %2757 = vmatprep.subr.bf16.mxu0 %v2659
      %2758 = vmatpush1.bf16.msra.mxu0 %v2658
      %2759 = vmatprep.subr.bf16.mxu0 %v2663
      %2760 = vmatpush1.bf16.msra.mxu0 %v2662
      %2761 = vmatprep.subr.bf16.mxu0 %v2667
      %2762 = vmatpush1.bf16.msra.mxu0 %v2666
      %2763 = vmatprep.subr.bf16.mxu0 %v2671
      %2764 = vmatpush1.bf16.msra.mxu0 %v2670
      %2765 = vmatprep.subr.bf16.mxu0 %v2675
      %2766 = vmatpush1.bf16.msra.mxu0 %v2674
      %2767 = vmatprep.subr.bf16.mxu0 0
      %2768 = vmatpush1.bf16.msra.mxu0 0
      %2769 = vmatprep.subr.bf16.mxu0 0
      %2770 = vmatpush1.bf16.msra.mxu0 0
      %2771 = vmatprep.subr.bf16.mxu0 0
      %2772 = vmatpush1.bf16.msra.mxu0 0
      %2773 = vmatprep.subr.bf16.mxu0 0
      %2774 = vmatpush1.bf16.msra.mxu0 0
      %2775 = vmatprep.subr.bf16.mxu0 0
      %2776 = vmatpush1.bf16.msra.mxu0 0
      %2777 = vmatprep.subr.bf16.mxu0 0
      %2778 = vmatpush1.bf16.msra.mxu0 0
      %2779 = vmatprep.subr.bf16.mxu0 0
      %2780 = vmatpush1.bf16.msra.mxu0 0
      %2781 = vmatprep.subr.bf16.mxu0 0
      %2782 = vmatpush1.bf16.msra.mxu0 0
      %2783 = vmatprep.mubr.bf16.mxu0 0
      %2784 = vmatmul.mubr.bf16.gmra.mrb[0].mxu0 %v2546
      %v2785 = vpop.f32.mrb[0].mxu0
      %v2786 = vadd.f32 0.0, %v2785
      %v2787 = vpop.f32.mrb[0].mxu0
      %v2788 = vadd.f32 0.0, %v2787
      %v2789 = vpop.f32.mrb[0].mxu0
      %v2790 = vadd.f32 0.0, %v2789
      %v2791 = vpop.f32.mrb[0].mxu0
      %v2792 = vadd.f32 0.0, %v2791
      %2793 = vdwg.mxu0
      %v2794 = vadd.f32 %v2450, %v2743
      %v2795 = vadd.f32 %v2452, %v2745
      %v2796 = vadd.f32 %v2493, %v2786
      %v2797 = vadd.f32 %v2495, %v2788
      %v2798 = vadd.f32 %v2454, %v2747
      %v2799 = vadd.f32 %v2456, %v2749
      %v2800 = vadd.f32 %v2497, %v2790
      %v2801 = vadd.f32 %v2499, %v2792
      %s2802 = scalar_lea.vmem %s3, 768
      %v2803 = vld [vmem:[%s2802] sm:$0xff]
      %v2804 = vld [vmem:[%s2802 + $0x8] sm:$0xff]
      %v2805 = vld [vmem:[%s2802 + $0x10] sm:$0xff]
      %v2806 = vld [vmem:[%s2802 + $0x18] sm:$0xff]
      %v2807 = vld [vmem:[%s2802 + $0x20] sm:$0xff]
      %v2808 = vld [vmem:[%s2802 + $0x28] sm:$0xff]
      %v2809 = vld [vmem:[%s2802 + $0x30] sm:$0xff]
      %v2810 = vld [vmem:[%s2802 + $0x38] sm:$0xff]
      %v2811 = vld [vmem:[%s2802 + $0x40] sm:$0xff]
      %v2812 = vld [vmem:[%s2802 + $0x48] sm:$0xff]
      %v2813 = vld [vmem:[%s2802 + $0x50] sm:$0xff]
      %v2814 = vld [vmem:[%s2802 + $0x58] sm:$0xff]
      %v2815 = vld [vmem:[%s2802 + $0x60] sm:$0xff]
      %v2816 = vld [vmem:[%s2802 + $0x68] sm:$0xff]
      %v2817 = vld [vmem:[%s2802 + $0x70] sm:$0xff]
      %v2818 = vld [vmem:[%s2802 + $0x78] sm:$0xff]
      %v2819 = vld [vmem:[%s2802 + $0x80] sm:$0xff]
      %v2820 = vld [vmem:[%s2802 + $0x88] sm:$0xff]
      %v2821 = vld [vmem:[%s2802 + $0x90] sm:$0xff]
      %v2822 = vld [vmem:[%s2802 + $0x98] sm:$0xff]
      %v2823 = vld [vmem:[%s2802 + $0xa0] sm:$0xff]
      %v2824 = vld [vmem:[%s2802 + $0xa8] sm:$0xff]
      %v2825 = vld [vmem:[%s2802 + $0xb0] sm:$0xff]
      %v2826 = vld [vmem:[%s2802 + $0xb8] sm:$0xff]
      %v2827 = vld [vmem:[%s2802 + $0xc0] sm:$0xff]
      %v2828 = vld [vmem:[%s2802 + $0xc8] sm:$0xff]
      %v2829 = vld [vmem:[%s2802 + $0xd0] sm:$0xff]
      %v2830 = vld [vmem:[%s2802 + $0xd8] sm:$0xff]
      %v2831 = vld [vmem:[%s2802 + $0xe0] sm:$0xff]
      %v2832 = vld [vmem:[%s2802 + $0xe8] sm:$0xff]
      %v2833 = vld [vmem:[%s2802 + $0xf0] sm:$0xff]
      %v2834 = vld [vmem:[%s2802 + $0xf8] sm:$0xff]
      %v2837 = vrot.slane %v1935, 3
      %v2838 = vrot.slane %v2501, 3
      %v2839 = vsel %vm1544, %v2837, %v2838
      %v2873 = vunpack.c.l.b16 %v2803
      %v2874 = vunpack.c.h.b16 %v2803
      %v2875 = vunpack.c.l.b16 %v2804
      %v2876 = vunpack.c.h.b16 %v2804
      %v2877 = vunpack.c.l.b16 %v2805
      %v2878 = vunpack.c.h.b16 %v2805
      %v2879 = vunpack.c.l.b16 %v2806
      %v2880 = vunpack.c.h.b16 %v2806
      %v2881 = vunpack.c.l.b16 %v2807
      %v2882 = vunpack.c.h.b16 %v2807
      %v2883 = vunpack.c.l.b16 %v2808
      %v2884 = vunpack.c.h.b16 %v2808
      %v2885 = vunpack.c.l.b16 %v2809
      %v2886 = vunpack.c.h.b16 %v2809
      %v2887 = vunpack.c.l.b16 %v2810
      %v2888 = vunpack.c.h.b16 %v2810
      %v2889 = vunpack.c.l.b16 %v2811
      %v2890 = vunpack.c.h.b16 %v2811
      %v2891 = vunpack.c.l.b16 %v2812
      %v2892 = vunpack.c.h.b16 %v2812
      %v2893 = vunpack.c.l.b16 %v2813
      %v2894 = vunpack.c.h.b16 %v2813
      %v2895 = vunpack.c.l.b16 %v2814
      %v2896 = vunpack.c.h.b16 %v2814
      %v2897 = vunpack.c.l.b16 %v2815
      %v2898 = vunpack.c.h.b16 %v2815
      %v2899 = vunpack.c.l.b16 %v2816
      %v2900 = vunpack.c.h.b16 %v2816
      %v2901 = vunpack.c.l.b16 %v2817
      %v2902 = vunpack.c.h.b16 %v2817
      %v2903 = vunpack.c.l.b16 %v2818
      %v2904 = vunpack.c.h.b16 %v2818
      %v2905 = vunpack.c.l.b16 %v2819
      %v2906 = vunpack.c.h.b16 %v2819
      %v2907 = vunpack.c.l.b16 %v2820
      %v2908 = vunpack.c.h.b16 %v2820
      %v2909 = vunpack.c.l.b16 %v2821
      %v2910 = vunpack.c.h.b16 %v2821
      %v2911 = vunpack.c.l.b16 %v2822
      %v2912 = vunpack.c.h.b16 %v2822
      %v2913 = vunpack.c.l.b16 %v2823
      %v2914 = vunpack.c.h.b16 %v2823
      %v2915 = vunpack.c.l.b16 %v2824
      %v2916 = vunpack.c.h.b16 %v2824
      %v2917 = vunpack.c.l.b16 %v2825
      %v2918 = vunpack.c.h.b16 %v2825
      %v2919 = vunpack.c.l.b16 %v2826
      %v2920 = vunpack.c.h.b16 %v2826
      %v2921 = vunpack.c.l.b16 %v2827
      %v2922 = vunpack.c.h.b16 %v2827
      %v2923 = vunpack.c.l.b16 %v2828
      %v2924 = vunpack.c.h.b16 %v2828
      %v2925 = vunpack.c.l.b16 %v2829
      %v2926 = vunpack.c.h.b16 %v2829
      %v2927 = vunpack.c.l.b16 %v2830
      %v2928 = vunpack.c.h.b16 %v2830
      %v2929 = vunpack.c.l.b16 %v2831
      %v2930 = vunpack.c.h.b16 %v2831
      %v2931 = vunpack.c.l.b16 %v2832
      %v2932 = vunpack.c.h.b16 %v2832
      %v2933 = vunpack.c.l.b16 %v2833
      %v2934 = vunpack.c.h.b16 %v2833
      %v2935 = vunpack.c.l.b16 %v2834
      %v2936 = vunpack.c.h.b16 %v2834
      %v2937 = vpack.c.b16 %v2877, %v2873
      %v2938 = vpack.c.b16 %v2878, %v2874
      %v2939 = vpack.c.b16 %v2879, %v2875
      %v2940 = vpack.c.b16 %v2880, %v2876
      %v2941 = vpack.c.b16 %v2885, %v2881
      %v2942 = vpack.c.b16 %v2886, %v2882
      %v2943 = vpack.c.b16 %v2887, %v2883
      %v2944 = vpack.c.b16 %v2888, %v2884
      %v2945 = vpack.c.b16 %v2893, %v2889
      %v2946 = vpack.c.b16 %v2894, %v2890
      %v2947 = vpack.c.b16 %v2895, %v2891
      %v2948 = vpack.c.b16 %v2896, %v2892
      %v2949 = vpack.c.b16 %v2901, %v2897
      %v2950 = vpack.c.b16 %v2902, %v2898
      %v2951 = vpack.c.b16 %v2903, %v2899
      %v2952 = vpack.c.b16 %v2904, %v2900
      %v2953 = vpack.c.b16 %v2909, %v2905
      %v2954 = vpack.c.b16 %v2910, %v2906
      %v2955 = vpack.c.b16 %v2911, %v2907
      %v2956 = vpack.c.b16 %v2912, %v2908
      %v2957 = vpack.c.b16 %v2917, %v2913
      %v2958 = vpack.c.b16 %v2918, %v2914
      %v2959 = vpack.c.b16 %v2919, %v2915
      %v2960 = vpack.c.b16 %v2920, %v2916
      %v2961 = vpack.c.b16 %v2925, %v2921
      %v2962 = vpack.c.b16 %v2926, %v2922
      %v2963 = vpack.c.b16 %v2927, %v2923
      %v2964 = vpack.c.b16 %v2928, %v2924
      %v2965 = vpack.c.b16 %v2933, %v2929
      %v2966 = vpack.c.b16 %v2934, %v2930
      %v2967 = vpack.c.b16 %v2935, %v2931
      %v2968 = vpack.c.b16 %v2936, %v2932
      %3001 = vmatprep.subr.bf16.mxu0 %v2938
      %3002 = vmatpush1.bf16.msra.mxu0 %v2937
      %3003 = vmatprep.subr.bf16.mxu0 %v2942
      %3004 = vmatpush1.bf16.msra.mxu0 %v2941
      %3005 = vmatprep.subr.bf16.mxu0 %v2946
      %3006 = vmatpush1.bf16.msra.mxu0 %v2945
      %3007 = vmatprep.subr.bf16.mxu0 %v2950
      %3008 = vmatpush1.bf16.msra.mxu0 %v2949
      %3009 = vmatprep.subr.bf16.mxu0 %v2954
      %3010 = vmatpush1.bf16.msra.mxu0 %v2953
      %3011 = vmatprep.subr.bf16.mxu0 %v2958
      %3012 = vmatpush1.bf16.msra.mxu0 %v2957
      %3013 = vmatprep.subr.bf16.mxu0 %v2962
      %3014 = vmatpush1.bf16.msra.mxu0 %v2961
      %3015 = vmatprep.subr.bf16.mxu0 %v2966
      %3016 = vmatpush1.bf16.msra.mxu0 %v2965
      %3017 = vmatprep.subr.bf16.mxu0 0
      %3018 = vmatpush1.bf16.msra.mxu0 0
      %3019 = vmatprep.subr.bf16.mxu0 0
      %3020 = vmatpush1.bf16.msra.mxu0 0
      %3021 = vmatprep.subr.bf16.mxu0 0
      %3022 = vmatpush1.bf16.msra.mxu0 0
      %3023 = vmatprep.subr.bf16.mxu0 0
      %3024 = vmatpush1.bf16.msra.mxu0 0
      %3025 = vmatprep.subr.bf16.mxu0 0
      %3026 = vmatpush1.bf16.msra.mxu0 0
      %3027 = vmatprep.subr.bf16.mxu0 0
      %3028 = vmatpush1.bf16.msra.mxu0 0
      %3029 = vmatprep.subr.bf16.mxu0 0
      %3030 = vmatpush1.bf16.msra.mxu0 0
      %3031 = vmatprep.subr.bf16.mxu0 0
      %3032 = vmatpush1.bf16.msra.mxu0 0
      %3033 = vmatprep.mubr.bf16.mxu0 0
      %3034 = vmatmul.mubr.bf16.gmra.mrb[0].mxu0 %v2839
      %v3035 = vpop.f32.mrb[0].mxu0
      %v3036 = vadd.f32 0.0, %v3035
      %v3037 = vpop.f32.mrb[0].mxu0
      %v3038 = vadd.f32 0.0, %v3037
      %v3039 = vpop.f32.mrb[0].mxu0
      %v3040 = vadd.f32 0.0, %v3039
      %v3041 = vpop.f32.mrb[0].mxu0
      %v3042 = vadd.f32 0.0, %v3041
      %3043 = vdwg.mxu0
      %3044 = vmatprep.subr.bf16.mxu0 %v2940
      %3045 = vmatpush1.bf16.msra.mxu0 %v2939
      %3046 = vmatprep.subr.bf16.mxu0 %v2944
      %3047 = vmatpush1.bf16.msra.mxu0 %v2943
      %3048 = vmatprep.subr.bf16.mxu0 %v2948
      %3049 = vmatpush1.bf16.msra.mxu0 %v2947
      %3050 = vmatprep.subr.bf16.mxu0 %v2952
      %3051 = vmatpush1.bf16.msra.mxu0 %v2951
      %3052 = vmatprep.subr.bf16.mxu0 %v2956
      %3053 = vmatpush1.bf16.msra.mxu0 %v2955
      %3054 = vmatprep.subr.bf16.mxu0 %v2960
      %3055 = vmatpush1.bf16.msra.mxu0 %v2959
      %3056 = vmatprep.subr.bf16.mxu0 %v2964
      %3057 = vmatpush1.bf16.msra.mxu0 %v2963
      %3058 = vmatprep.subr.bf16.mxu0 %v2968
      %3059 = vmatpush1.bf16.msra.mxu0 %v2967
      %3060 = vmatprep.subr.bf16.mxu0 0
      %3061 = vmatpush1.bf16.msra.mxu0 0
      %3062 = vmatprep.subr.bf16.mxu0 0
      %3063 = vmatpush1.bf16.msra.mxu0 0
      %3064 = vmatprep.subr.bf16.mxu0 0
      %3065 = vmatpush1.bf16.msra.mxu0 0
      %3066 = vmatprep.subr.bf16.mxu0 0
      %3067 = vmatpush1.bf16.msra.mxu0 0
      %3068 = vmatprep.subr.bf16.mxu0 0
      %3069 = vmatpush1.bf16.msra.mxu0 0
      %3070 = vmatprep.subr.bf16.mxu0 0
      %3071 = vmatpush1.bf16.msra.mxu0 0
      %3072 = vmatprep.subr.bf16.mxu0 0
      %3073 = vmatpush1.bf16.msra.mxu0 0
      %3074 = vmatprep.subr.bf16.mxu0 0
      %3075 = vmatpush1.bf16.msra.mxu0 0
      %3076 = vmatprep.mubr.bf16.mxu0 0
      %3077 = vmatmul.mubr.bf16.gmra.mrb[0].mxu0 %v2839
      %v3078 = vpop.f32.mrb[0].mxu0
      %v3079 = vadd.f32 0.0, %v3078
      %v3080 = vpop.f32.mrb[0].mxu0
      %v3081 = vadd.f32 0.0, %v3080
      %v3082 = vpop.f32.mrb[0].mxu0
      %v3083 = vadd.f32 0.0, %v3082
      %v3084 = vpop.f32.mrb[0].mxu0
      %v3085 = vadd.f32 0.0, %v3084
      %3086 = vdwg.mxu0
      %v3087 = vadd.f32 %v2794, %v3036
      %v3088 = vadd.f32 %v2795, %v3038
      %v3089 = vadd.f32 %v2796, %v3079
      %v3090 = vadd.f32 %v2797, %v3081
      %v3091 = vadd.f32 %v2798, %v3040
      %v3092 = vadd.f32 %v2799, %v3042
      %v3093 = vadd.f32 %v2800, %v3083
      %v3094 = vadd.f32 %v2801, %v3085
      %v3095 = vmax.f32 %v3087, %v3088
      %v3096 = vmax.f32 %v3091, %v3092
      %v3097 = vmax.f32 %v3089, %v3090
      %v3098 = vmax.f32 %v3093, %v3094
      %v3099 = vmax.f32 %v3095, %v3097
      %v3100 = vmax.f32 %v3096, %v3098
      %v3101 = vld [vmem:[%s4] sm:$0x1]
      %v3103 = vlaneseq
      %v3104 = vshrl.u32 %v3103, 7
      %v3105 = vsub.s32 0, %v3104
      %v3106 = vrot.slane %v3101, %v3105
      %v3108 = vadd.f32 %v3099, %v3106
      %v3109 = vadd.f32 %v3100, %v3106
      %v3110 = vmax.f32 %v3108, 0.0
      %v3111 = vmax.f32 %v3109, 0.0
      %v3112 = vpack.c.bf16 %v3111, %v3110
      %v3114 = vunpack.c.l.b16 %v3112
      %v3115 = vunpack.c.h.b16 %v3112
      %v3116 = vpack.c.b16 %v3114, %v3114
      %v3117 = vpack.c.b16 %v3115, %v3115
      %3120 = vst [vmem:[%s224] sm:$0xf] %v3116
      %vm3121 = vcmask 1042432
      %vm3122 = vsmask.f32 2304
      %vm3123 = vmand %vm3121, %vm3122
      %v3124 = vld [vmem:[%s224 + $0x4] sm:$0x7]
      %v3125 = vsel %vm3123, %v3117, %v3124
      %3126 = vst [vmem:[%s224 + $0x4] sm:$0x7] %v3125
      %p3127 = scmp.lt.s32.totalorder %s16, 1
      %s3128 = scalar_select %p3127, %s16, 1
      %s3129 = smul.addr %s3128, 2
      %s3130 = smul.addr %s3129, 4
      %s3131 = scalar_lea.vmem %s5, %s3130
      // Predicated region
      $region41: #{forward.2} parent=39 // pred_check
        %p3132 = pneg %p144
      $region42: #{forward.2} parent=39 // pred_check_branch
        %3134 = sbr.rel (%p3132) target = $region44
      $region43: #{forward.2} parent=39 // pred_region
        _
      $region44: #{forward.2} parent=39 // pred_fallthru
        _
    $region40: #{forward.2} parent=5 // pred_fallthru
      _
    %p3135 = scmp.le.s32.totalorder 2, %s11
    // Predicated region
    $region45: #{forward.2} parent=5 // pred_check
      %p3136 = pneg %p3135
    $region46: #{forward.2} parent=5 // pred_check_branch
      %3138 = sbr.rel (%p3136) target = $region48
    $region47: #{forward.2} parent=5 // pred_region
      %s3139 = ssub.s32 %s11, 2
      // Predicated region
      $region49: #{forward.2} parent=47 // pred_check
        %p3140 = pneg %p150
      $region50: #{forward.2} parent=47 // pred_check_branch
        %3142 = sbr.rel (%p3140) target = $region52
      $region51: #{forward.2} parent=47 // pred_region
        %p3143 = scmp.lt.s32.totalorder %s17, 1
        %s3144 = scalar_select %p3143, %s17, 1
        %s3145 = smul.addr %s3144, 2
        %s3146 = smul.addr %s3145, 4
        %s3147 = scalar_lea.vmem %s5, %s3146
      $region52: #{forward.2} parent=47 // pred_fallthru
        _
    $region48: #{forward.2} parent=5 // pred_fallthru
      _
  $region6: #{forward.2} parent=0 // loop_footer
    %s15 = sadd.s32 1, %s11
  $region7: #{forward.2} parent=0 // loop_footer_branch
    %10 = sbr.rel target = $region3
  $region8: #{forward.2} parent=0 // loop_exit
    _

</llo_original>
